<compile_context>
chip_gen: v7x
topology: tpu7x:2x2x1
jax: 0.10.0
libtpu: 0.0.40
codegen_flags: <defaults>
</compile_context>

<pallas_src>
import functools

import jax
import jax.numpy as jnp
from jax.experimental import pallas as pl
from jax.experimental.pallas import tpu as pltpu


# ----------------------------------------------------------------------------
# Fused kernel: conv1(3x3,pad1)+ReLU -> conv2(3x3,pad1)+ReLU -> global avg
# pool -> Linear -> Softmax.  One grid step == one image.
# ----------------------------------------------------------------------------
def _fused_pretrained_nn_kernel(
    x_ref,      # (H, W, Cin)      bf16   one image (leading N squeezed)
    w1_ref,     # (9, Cin, C1)     f32    conv1 taps (VPU path)
    b1_ref,     # (1, C1)          f32
    w2_ref,     # (9, C1, C2)      bf16   conv2 taps (MXU path)
    b2_ref,     # (1, C2)          f32
    fcw_ref,    # (C2, K)          bf16
    fcb_ref,    # (1, K)           f32
    probs_ref,  # (1, K)           f32    out: softmax probabilities
    feats_ref,  # (1, C2)          f32    out: pooled features (feature_extract)
    xpad_ref,   # (H+2, W+2, Cin)  f32    VMEM scratch (padded input)
    apad_ref,   # (H+2, W+2, C1)   f32    VMEM scratch (padded conv1 act)
):
    H, W, CIN = x_ref.shape
    C1 = w1_ref.shape[-1]
    C2 = w2_ref.shape[-1]
    HW = H * W

    # ---- zero-pad the input inside VMEM (conv padding=1); no HBM pad copy.
    xpad_ref[...] = jnp.zeros_like(xpad_ref)
    xpad_ref[1:H + 1, 1:W + 1, :] = x_ref[...].astype(xpad_ref.dtype)

    # ---- conv1: 3x3, stride 1, pad 1, + bias + ReLU.
    # K = Cin (1 or 3) would underfill the MXU contraction, so the tiny
    # channel sum is unrolled as VPU broadcast-MACs with f32 accumulation.
    acc1 = jnp.zeros((H, W, C1), jnp.float32)
    for t in range(9):
        dy, dx = t // 3, t % 3
        xs = xpad_ref[dy:dy + H, dx:dx + W, :]            # (H, W, Cin) f32
        wt = w1_ref[t]                                    # (Cin, C1)   f32
        for c in range(CIN):
            acc1 = acc1 + xs[:, :, c:c + 1] * wt[c:c + 1, :]
    a1 = jnp.maximum(acc1 + b1_ref[...], 0.0)             # (H, W, C1) f32

    # ---- re-pad the conv1 activation inside VMEM for conv2.
    apad_ref[...] = jnp.zeros_like(apad_ref)
    apad_ref[1:H + 1, 1:W + 1, :] = a1

    # ---- conv2: 3x3 as 9 accumulated MXU matmuls (bf16 in, f32 acc).
    acc2 = jnp.zeros((HW, C2), jnp.float32)
    for t in range(9):
        dy, dx = t // 3, t % 3
        xs = apad_ref[dy:dy + H, dx:dx + W, :].reshape(HW, C1)
        acc2 = acc2 + jnp.dot(xs.astype(w2_ref.dtype), w2_ref[t],
                              preferred_element_type=jnp.float32)
    a2 = jnp.maximum(acc2 + b2_ref[...], 0.0)             # (HW, C2) f32

    # ---- global average pool over the HW rows (f32).
    pooled = jnp.sum(a2, axis=0, keepdims=True) * (1.0 / HW)   # (1, C2)
    feats_ref[...] = pooled.astype(feats_ref.dtype)

    # ---- predictor: Linear + Softmax(dim=1).
    logits = jnp.dot(pooled.astype(fcw_ref.dtype), fcw_ref[...],
                     preferred_element_type=jnp.float32) + fcb_ref[...]
    m = jnp.max(logits, axis=-1, keepdims=True)
    e = jnp.exp(logits - m)
    denom = jnp.sum(e, axis=-1, keepdims=True)
    probs_ref[...] = (e * pl.reciprocal(denom, approx=True)).astype(
        probs_ref.dtype)


# ----------------------------------------------------------------------------
# Parameters (stand-in backbone + predictor head)
# ----------------------------------------------------------------------------
def init_params(key, c1=16, c2=32, n_classes=5):
    k1, k2, k3 = jax.random.split(key, 3)
    return {
        "conv1_w": jax.random.normal(k1, (3, 3, 3, c1), jnp.float32) * 0.1,
        "conv1_b": jnp.zeros((c1,), jnp.float32),
        "conv2_w": jax.random.normal(k2, (3, 3, c1, c2), jnp.float32) * 0.1,
        "conv2_b": jnp.zeros((c2,), jnp.float32),
        # Linear stored as (in_features, n_classes); equals PyTorch weight.T
        "fc_w": jax.random.normal(k3, (c2, n_classes), jnp.float32) * 0.1,
        "fc_b": jnp.zeros((n_classes,), jnp.float32),
    }


# ----------------------------------------------------------------------------
# Forward
# ----------------------------------------------------------------------------
@functools.partial(jax.jit, static_argnames=("feature_extract",))
def pretrained_nn_forward(params, x_nchw, feature_extract=False):
    N, C, H, W = x_nchw.shape

    w1 = params["conv1_w"]
    if C == 1:
        # torch.cat([x]*3, 1) followed by conv1 == conv of the single channel
        # with the weights summed over Cin (identical math, 3x less traffic).
        w1 = jnp.sum(w1, axis=2, keepdims=True)
    elif C != w1.shape[2]:
        raise ValueError(f"expected 1 or {w1.shape[2]} input channels, got {C}")

    cin = w1.shape[2]
    c1 = w1.shape[3]
    c2 = params["conv2_w"].shape[3]
    k = params["fc_w"].shape[1]

    # NCHW -> NHWC; activations cross HBM in bf16 (f32 accumulation in-kernel).
    x = jnp.transpose(x_nchw, (0, 2, 3, 1)).astype(jnp.bfloat16)

    w1r = w1.reshape(9, cin, c1).astype(jnp.float32)                 # VPU path
    w2r = params["conv2_w"].reshape(9, c1, c2).astype(jnp.bfloat16)  # MXU path
    b1 = params["conv1_b"].reshape(1, c1).astype(jnp.float32)
    b2 = params["conv2_b"].reshape(1, c2).astype(jnp.float32)
    fcw = params["fc_w"].astype(jnp.bfloat16)
    fcb = params["fc_b"].reshape(1, k).astype(jnp.float32)

    hw = H * W
    flops = N * (2 * hw * 9 * cin * c1 + 2 * hw * 9 * c1 * c2 + 2 * c2 * k)
    transcendentals = N * (k + 1)        # exp per class + softmax reciprocal
    bytes_accessed = (x.size * 2 + w1r.size * 4 + w2r.size * 2 + fcw.size * 2
                      + (b1.size + b2.size + fcb.size) * 4
                      + N * (k + c2) * 4)

    probs, feats = pl.pallas_call(
        _fused_pretrained_nn_kernel,
        out_shape=(
            jax.ShapeDtypeStruct((N, 1, k), jnp.float32),
            jax.ShapeDtypeStruct((N, 1, c2), jnp.float32),
        ),
        grid_spec=pltpu.PrefetchScalarGridSpec(
            num_scalar_prefetch=0,
            grid=(N,),
            in_specs=[
                pl.BlockSpec((None, H, W, cin), lambda n: (n, 0, 0, 0)),
                pl.BlockSpec((9, cin, c1), lambda n: (0, 0, 0)),
                pl.BlockSpec((1, c1), lambda n: (0, 0)),
                pl.BlockSpec((9, c1, c2), lambda n: (0, 0, 0)),
                pl.BlockSpec((1, c2), lambda n: (0, 0)),
                pl.BlockSpec((c2, k), lambda n: (0, 0)),
                pl.BlockSpec((1, k), lambda n: (0, 0)),
            ],
            out_specs=[
                pl.BlockSpec((None, 1, k), lambda n: (n, 0, 0)),
                pl.BlockSpec((None, 1, c2), lambda n: (n, 0, 0)),
            ],
            scratch_shapes=[
                pltpu.VMEM((H + 2, W + 2, cin), jnp.float32),
                pltpu.VMEM((H + 2, W + 2, c1), jnp.float32),
            ],
        ),
        compiler_params=pltpu.CompilerParams(
            dimension_semantics=("parallel",),
            vmem_limit_bytes=32 * 1024 * 1024,
        ),
        cost_estimate=pl.CostEstimate(
            flops=int(flops),
            transcendentals=int(transcendentals),
            bytes_accessed=int(bytes_accessed),
        ),
    )(x, w1r, b1, w2r, b2, fcw, fcb)

    if feature_extract:
        return feats.reshape(N, c2)      # == x.reshape(x.size(0), -1)
    return probs.reshape(N, k)           # Linear + Softmax(dim=1)


if __name__ == "__main__":
    key = jax.random.PRNGKey(0)
    k_param, k_data = jax.random.split(key)

    n_classes = 5
    params = init_params(k_param, c1=16, c2=32, n_classes=n_classes)

    # Grayscale input exercises the torch.cat([x]*3, 1) replication branch
    # (implemented via the weight-sum trick).
    x = jax.random.normal(k_data, (2, 1, 16, 16), jnp.float32)

    probs = jax.block_until_ready(
        pretrained_nn_forward(params, x, feature_extract=False))
    feats = jax.block_until_ready(
        pretrained_nn_forward(params, x, feature_extract=True))

    assert probs.shape == (2, n_classes)
    assert feats.shape == (2, 32)
    # bf16 activations + approximate (EUP) reciprocal in the softmax ->
    # slightly relaxed tolerance on the sum-to-one check.
    assert jnp.allclose(jnp.sum(probs, axis=1), 1.0, atol=1e-2)
    assert bool(jnp.all(probs >= 0.0))
    print("KERNEL_OK")
</pallas_src>

<mosaic_0001>
module attributes {stable_mosaic.version = 11 : i64} {
  func.func @_fused_pretrained_nn_kernel(%arg0: i32, %arg1: memref<1x16x16x1xbf16, #tpu.memory_space<vmem>>, %arg2: memref<9x1x16xf32, #tpu.memory_space<vmem>>, %arg3: memref<1x16xf32, #tpu.memory_space<vmem>>, %arg4: memref<9x16x32xbf16, #tpu.memory_space<vmem>>, %arg5: memref<1x32xf32, #tpu.memory_space<vmem>>, %arg6: memref<32x5xbf16, #tpu.memory_space<vmem>>, %arg7: memref<1x5xf32, #tpu.memory_space<vmem>>, %arg8: memref<1x1x5xf32, #tpu.memory_space<vmem>>, %arg9: memref<1x1x32xf32, #tpu.memory_space<vmem>>, %arg10: memref<18x18x1xf32, #tpu.memory_space<vmem>>, %arg11: memref<18x18x16xf32, #tpu.memory_space<vmem>>) attributes {dimension_semantics = [#tpu.dimension_semantics<parallel>], iteration_bounds = array<i64: 2>, scalar_prefetch = 0 : i64, scratch_operands = 2 : i64, tpu.core_type = #tpu.core_type<tc>, window_params = [{transform_indices = @transform_0, window_bounds = array<i64: 1, 16, 16, 1>}, {pipeline_mode = #tpu.pipeline_mode<synchronous>, transform_indices = @transform_1, window_bounds = array<i64: 9, 1, 16>}, {pipeline_mode = #tpu.pipeline_mode<synchronous>, transform_indices = @transform_2, window_bounds = array<i64: 1, 16>}, {pipeline_mode = #tpu.pipeline_mode<synchronous>, transform_indices = @transform_3, window_bounds = array<i64: 9, 16, 32>}, {pipeline_mode = #tpu.pipeline_mode<synchronous>, transform_indices = @transform_4, window_bounds = array<i64: 1, 32>}, {pipeline_mode = #tpu.pipeline_mode<synchronous>, transform_indices = @transform_5, window_bounds = array<i64: 32, 5>}, {pipeline_mode = #tpu.pipeline_mode<synchronous>, transform_indices = @transform_6, window_bounds = array<i64: 1, 5>}, {transform_indices = @transform_7, window_bounds = array<i64: 1, 1, 5>}, {transform_indices = @transform_8, window_bounds = array<i64: 1, 1, 32>}]} {
    %cst = arith.constant 0.000000e+00 : f32
    %0 = vector.broadcast %cst : f32 to vector<18x18x1xf32>
    %c0 = arith.constant 0 : index
    %c0_0 = arith.constant 0 : index
    %c0_1 = arith.constant 0 : index
    %1 = vector.load %arg10[%c0, %c0_0, %c0_1] : memref<18x18x1xf32, #tpu.memory_space<vmem>>, vector<18x18x1xf32>
    tpu.vector_store %arg10[%c0, %c0_0, %c0_1], %0 {strides = array<i32>} : memref<18x18x1xf32, #tpu.memory_space<vmem>>, vector<18x18x1xf32>,
    %c0_2 = arith.constant 0 : index
    %c0_3 = arith.constant 0 : index
    %c0_4 = arith.constant 0 : index
    %c0_5 = arith.constant 0 : index
    %2 = vector.load %arg1[%c0_2, %c0_3, %c0_4, %c0_5] : memref<1x16x16x1xbf16, #tpu.memory_space<vmem>>, vector<1x16x16x1xbf16>
    %3 = vector.shape_cast %2 : vector<1x16x16x1xbf16> to vector<16x16x1xbf16>
    %4 = arith.extf %3 : vector<16x16x1xbf16> to vector<16x16x1xf32>
    %c1 = arith.constant 1 : index
    %c1_6 = arith.constant 1 : index
    %c0_7 = arith.constant 0 : index
    %5 = vector.load %arg10[%c1, %c1_6, %c0_7] : memref<18x18x1xf32, #tpu.memory_space<vmem>>, vector<16x16x1xf32>
    tpu.vector_store %arg10[%c1, %c1_6, %c0_7], %4 {strides = array<i32>} : memref<18x18x1xf32, #tpu.memory_space<vmem>>, vector<16x16x1xf32>,
    %cst_8 = arith.constant 0.000000e+00 : f32
    %6 = vector.broadcast %cst_8 : f32 to vector<16x16x16xf32>
    %c0_9 = arith.constant 0 : index
    %c0_10 = arith.constant 0 : index
    %c0_11 = arith.constant 0 : index
    %7 = vector.load %arg10[%c0_9, %c0_10, %c0_11] : memref<18x18x1xf32, #tpu.memory_space<vmem>>, vector<16x16x1xf32>
    %c0_12 = arith.constant 0 : index
    %c0_13 = arith.constant 0 : index
    %c0_14 = arith.constant 0 : index
    %8 = vector.load %arg2[%c0_12, %c0_13, %c0_14] : memref<9x1x16xf32, #tpu.memory_space<vmem>>, vector<1x1x16xf32>
    %9 = vector.shape_cast %8 : vector<1x1x16xf32> to vector<1x16xf32>
    %10 = vector.shape_cast %9 : vector<1x16xf32> to vector<1x1x16xf32>
    %11 = vector.broadcast %7 : vector<16x16x1xf32> to vector<16x16x16xf32>
    %12 = vector.broadcast %10 : vector<1x1x16xf32> to vector<16x16x16xf32>
    %13 = arith.mulf %11, %12 : vector<16x16x16xf32>
    %14 = arith.addf %6, %13 : vector<16x16x16xf32>
    %c0_15 = arith.constant 0 : index
    %c1_16 = arith.constant 1 : index
    %c0_17 = arith.constant 0 : index
    %15 = vector.load %arg10[%c0_15, %c1_16, %c0_17] : memref<18x18x1xf32, #tpu.memory_space<vmem>>, vector<16x16x1xf32>
    %c1_18 = arith.constant 1 : index
    %c0_19 = arith.constant 0 : index
    %c0_20 = arith.constant 0 : index
    %16 = vector.load %arg2[%c1_18, %c0_19, %c0_20] : memref<9x1x16xf32, #tpu.memory_space<vmem>>, vector<1x1x16xf32>
    %17 = vector.shape_cast %16 : vector<1x1x16xf32> to vector<1x16xf32>
    %18 = vector.shape_cast %17 : vector<1x16xf32> to vector<1x1x16xf32>
    %19 = vector.broadcast %15 : vector<16x16x1xf32> to vector<16x16x16xf32>
    %20 = vector.broadcast %18 : vector<1x1x16xf32> to vector<16x16x16xf32>
    %21 = arith.mulf %19, %20 : vector<16x16x16xf32>
    %22 = arith.addf %14, %21 : vector<16x16x16xf32>
    %c0_21 = arith.constant 0 : index
    %c2 = arith.constant 2 : index
    %c0_22 = arith.constant 0 : index
    %23 = vector.load %arg10[%c0_21, %c2, %c0_22] : memref<18x18x1xf32, #tpu.memory_space<vmem>>, vector<16x16x1xf32>
    %c2_23 = arith.constant 2 : index
    %c0_24 = arith.constant 0 : index
    %c0_25 = arith.constant 0 : index
    %24 = vector.load %arg2[%c2_23, %c0_24, %c0_25] : memref<9x1x16xf32, #tpu.memory_space<vmem>>, vector<1x1x16xf32>
    %25 = vector.shape_cast %24 : vector<1x1x16xf32> to vector<1x16xf32>
    %26 = vector.shape_cast %25 : vector<1x16xf32> to vector<1x1x16xf32>
    %27 = vector.broadcast %23 : vector<16x16x1xf32> to vector<16x16x16xf32>
    %28 = vector.broadcast %26 : vector<1x1x16xf32> to vector<16x16x16xf32>
    %29 = arith.mulf %27, %28 : vector<16x16x16xf32>
    %30 = arith.addf %22, %29 : vector<16x16x16xf32>
    %c1_26 = arith.constant 1 : index
    %c0_27 = arith.constant 0 : index
    %c0_28 = arith.constant 0 : index
    %31 = vector.load %arg10[%c1_26, %c0_27, %c0_28] : memref<18x18x1xf32, #tpu.memory_space<vmem>>, vector<16x16x1xf32>
    %c3 = arith.constant 3 : index
    %c0_29 = arith.constant 0 : index
    %c0_30 = arith.constant 0 : index
    %32 = vector.load %arg2[%c3, %c0_29, %c0_30] : memref<9x1x16xf32, #tpu.memory_space<vmem>>, vector<1x1x16xf32>
    %33 = vector.shape_cast %32 : vector<1x1x16xf32> to vector<1x16xf32>
    %34 = vector.shape_cast %33 : vector<1x16xf32> to vector<1x1x16xf32>
    %35 = vector.broadcast %31 : vector<16x16x1xf32> to vector<16x16x16xf32>
    %36 = vector.broadcast %34 : vector<1x1x16xf32> to vector<16x16x16xf32>
    %37 = arith.mulf %35, %36 : vector<16x16x16xf32>
    %38 = arith.addf %30, %37 : vector<16x16x16xf32>
    %c1_31 = arith.constant 1 : index
    %c1_32 = arith.constant 1 : index
    %c0_33 = arith.constant 0 : index
    %39 = vector.load %arg10[%c1_31, %c1_32, %c0_33] : memref<18x18x1xf32, #tpu.memory_space<vmem>>, vector<16x16x1xf32>
    %c4 = arith.constant 4 : index
    %c0_34 = arith.constant 0 : index
    %c0_35 = arith.constant 0 : index
    %40 = vector.load %arg2[%c4, %c0_34, %c0_35] : memref<9x1x16xf32, #tpu.memory_space<vmem>>, vector<1x1x16xf32>
    %41 = vector.shape_cast %40 : vector<1x1x16xf32> to vector<1x16xf32>
    %42 = vector.shape_cast %41 : vector<1x16xf32> to vector<1x1x16xf32>
    %43 = vector.broadcast %39 : vector<16x16x1xf32> to vector<16x16x16xf32>
    %44 = vector.broadcast %42 : vector<1x1x16xf32> to vector<16x16x16xf32>
    %45 = arith.mulf %43, %44 : vector<16x16x16xf32>
    %46 = arith.addf %38, %45 : vector<16x16x16xf32>
    %c1_36 = arith.constant 1 : index
    %c2_37 = arith.constant 2 : index
    %c0_38 = arith.constant 0 : index
    %47 = vector.load %arg10[%c1_36, %c2_37, %c0_38] : memref<18x18x1xf32, #tpu.memory_space<vmem>>, vector<16x16x1xf32>
    %c5 = arith.constant 5 : index
    %c0_39 = arith.constant 0 : index
    %c0_40 = arith.constant 0 : index
    %48 = vector.load %arg2[%c5, %c0_39, %c0_40] : memref<9x1x16xf32, #tpu.memory_space<vmem>>, vector<1x1x16xf32>
    %49 = vector.shape_cast %48 : vector<1x1x16xf32> to vector<1x16xf32>
    %50 = vector.shape_cast %49 : vector<1x16xf32> to vector<1x1x16xf32>
    %51 = vector.broadcast %47 : vector<16x16x1xf32> to vector<16x16x16xf32>
    %52 = vector.broadcast %50 : vector<1x1x16xf32> to vector<16x16x16xf32>
    %53 = arith.mulf %51, %52 : vector<16x16x16xf32>
    %54 = arith.addf %46, %53 : vector<16x16x16xf32>
    %c2_41 = arith.constant 2 : index
    %c0_42 = arith.constant 0 : index
    %c0_43 = arith.constant 0 : index
    %55 = vector.load %arg10[%c2_41, %c0_42, %c0_43] : memref<18x18x1xf32, #tpu.memory_space<vmem>>, vector<16x16x1xf32>
    %c6 = arith.constant 6 : index
    %c0_44 = arith.constant 0 : index
    %c0_45 = arith.constant 0 : index
    %56 = vector.load %arg2[%c6, %c0_44, %c0_45] : memref<9x1x16xf32, #tpu.memory_space<vmem>>, vector<1x1x16xf32>
    %57 = vector.shape_cast %56 : vector<1x1x16xf32> to vector<1x16xf32>
    %58 = vector.shape_cast %57 : vector<1x16xf32> to vector<1x1x16xf32>
    %59 = vector.broadcast %55 : vector<16x16x1xf32> to vector<16x16x16xf32>
    %60 = vector.broadcast %58 : vector<1x1x16xf32> to vector<16x16x16xf32>
    %61 = arith.mulf %59, %60 : vector<16x16x16xf32>
    %62 = arith.addf %54, %61 : vector<16x16x16xf32>
    %c2_46 = arith.constant 2 : index
    %c1_47 = arith.constant 1 : index
    %c0_48 = arith.constant 0 : index
    %63 = vector.load %arg10[%c2_46, %c1_47, %c0_48] : memref<18x18x1xf32, #tpu.memory_space<vmem>>, vector<16x16x1xf32>
    %c7 = arith.constant 7 : index
    %c0_49 = arith.constant 0 : index
    %c0_50 = arith.constant 0 : index
    %64 = vector.load %arg2[%c7, %c0_49, %c0_50] : memref<9x1x16xf32, #tpu.memory_space<vmem>>, vector<1x1x16xf32>
    %65 = vector.shape_cast %64 : vector<1x1x16xf32> to vector<1x16xf32>
    %66 = vector.shape_cast %65 : vector<1x16xf32> to vector<1x1x16xf32>
    %67 = vector.broadcast %63 : vector<16x16x1xf32> to vector<16x16x16xf32>
    %68 = vector.broadcast %66 : vector<1x1x16xf32> to vector<16x16x16xf32>
    %69 = arith.mulf %67, %68 : vector<16x16x16xf32>
    %70 = arith.addf %62, %69 : vector<16x16x16xf32>
    %c2_51 = arith.constant 2 : index
    %c2_52 = arith.constant 2 : index
    %c0_53 = arith.constant 0 : index
    %71 = vector.load %arg10[%c2_51, %c2_52, %c0_53] : memref<18x18x1xf32, #tpu.memory_space<vmem>>, vector<16x16x1xf32>
    %c8 = arith.constant 8 : index
    %c0_54 = arith.constant 0 : index
    %c0_55 = arith.constant 0 : index
    %72 = vector.load %arg2[%c8, %c0_54, %c0_55] : memref<9x1x16xf32, #tpu.memory_space<vmem>>, vector<1x1x16xf32>
    %73 = vector.shape_cast %72 : vector<1x1x16xf32> to vector<1x16xf32>
    %74 = vector.shape_cast %73 : vector<1x16xf32> to vector<1x1x16xf32>
    %75 = vector.broadcast %71 : vector<16x16x1xf32> to vector<16x16x16xf32>
    %76 = vector.broadcast %74 : vector<1x1x16xf32> to vector<16x16x16xf32>
    %77 = arith.mulf %75, %76 : vector<16x16x16xf32>
    %78 = arith.addf %70, %77 : vector<16x16x16xf32>
    %c0_56 = arith.constant 0 : index
    %c0_57 = arith.constant 0 : index
    %79 = vector.load %arg3[%c0_56, %c0_57] : memref<1x16xf32, #tpu.memory_space<vmem>>, vector<1x16xf32>
    %80 = vector.shape_cast %79 : vector<1x16xf32> to vector<1x1x16xf32>
    %81 = vector.broadcast %80 : vector<1x1x16xf32> to vector<16x16x16xf32>
    %82 = arith.addf %78, %81 : vector<16x16x16xf32>
    %cst_58 = arith.constant 0.000000e+00 : f32
    %83 = vector.broadcast %cst_58 : f32 to vector<16x16x16xf32>
    %84 = arith.maximumf %82, %83 : vector<16x16x16xf32>
    %cst_59 = arith.constant 0.000000e+00 : f32
    %85 = vector.broadcast %cst_59 : f32 to vector<18x18x16xf32>
    %c0_60 = arith.constant 0 : index
    %c0_61 = arith.constant 0 : index
    %c0_62 = arith.constant 0 : index
    %86 = vector.load %arg11[%c0_60, %c0_61, %c0_62] : memref<18x18x16xf32, #tpu.memory_space<vmem>>, vector<18x18x16xf32>
    tpu.vector_store %arg11[%c0_60, %c0_61, %c0_62], %85 {strides = array<i32>} : memref<18x18x16xf32, #tpu.memory_space<vmem>>, vector<18x18x16xf32>,
    %c1_63 = arith.constant 1 : index
    %c1_64 = arith.constant 1 : index
    %c0_65 = arith.constant 0 : index
    %87 = vector.load %arg11[%c1_63, %c1_64, %c0_65] : memref<18x18x16xf32, #tpu.memory_space<vmem>>, vector<16x16x16xf32>
    tpu.vector_store %arg11[%c1_63, %c1_64, %c0_65], %84 {strides = array<i32>} : memref<18x18x16xf32, #tpu.memory_space<vmem>>, vector<16x16x16xf32>,
    %cst_66 = arith.constant 0.000000e+00 : f32
    %88 = vector.broadcast %cst_66 : f32 to vector<256x32xf32>
    %c0_67 = arith.constant 0 : index
    %c0_68 = arith.constant 0 : index
    %c0_69 = arith.constant 0 : index
    %89 = vector.load %arg11[%c0_67, %c0_68, %c0_69] : memref<18x18x16xf32, #tpu.memory_space<vmem>>, vector<16x16x16xf32>
    %90 = vector.shape_cast %89 : vector<16x16x16xf32> to vector<256x16xf32>
    %91 = arith.truncf %90 : vector<256x16xf32> to vector<256x16xbf16>
    %c0_70 = arith.constant 0 : index
    %c0_71 = arith.constant 0 : index
    %c0_72 = arith.constant 0 : index
    %92 = vector.load %arg4[%c0_70, %c0_71, %c0_72] : memref<9x16x32xbf16, #tpu.memory_space<vmem>>, vector<1x16x32xbf16>
    %93 = vector.shape_cast %92 : vector<1x16x32xbf16> to vector<16x32xbf16>
    %cst_73 = arith.constant dense<0.000000e+00> : vector<256x32xf32>
    %94 = tpu.matmul %91, %93, %cst_73 {dimension_numbers = #tpu.dot_dimension_numbers<[1], [0], [0], [1], [0, 0, 1, 1], [], []>} : vector<256x16xbf16>, vector<16x32xbf16>, vector<256x32xf32> -> vector<256x32xf32>
    %95 = arith.addf %88, %94 : vector<256x32xf32>
    %c0_74 = arith.constant 0 : index
    %c1_75 = arith.constant 1 : index
    %c0_76 = arith.constant 0 : index
    %96 = vector.load %arg11[%c0_74, %c1_75, %c0_76] : memref<18x18x16xf32, #tpu.memory_space<vmem>>, vector<16x16x16xf32>
    %97 = vector.shape_cast %96 : vector<16x16x16xf32> to vector<256x16xf32>
    %98 = arith.truncf %97 : vector<256x16xf32> to vector<256x16xbf16>
    %c1_77 = arith.constant 1 : index
    %c0_78 = arith.constant 0 : index
    %c0_79 = arith.constant 0 : index
    %99 = vector.load %arg4[%c1_77, %c0_78, %c0_79] : memref<9x16x32xbf16, #tpu.memory_space<vmem>>, vector<1x16x32xbf16>
    %100 = vector.shape_cast %99 : vector<1x16x32xbf16> to vector<16x32xbf16>
    %cst_80 = arith.constant dense<0.000000e+00> : vector<256x32xf32>
    %101 = tpu.matmul %98, %100, %cst_80 {dimension_numbers = #tpu.dot_dimension_numbers<[1], [0], [0], [1], [0, 0, 1, 1], [], []>} : vector<256x16xbf16>, vector<16x32xbf16>, vector<256x32xf32> -> vector<256x32xf32>
    %102 = arith.addf %95, %101 : vector<256x32xf32>
    %c0_81 = arith.constant 0 : index
    %c2_82 = arith.constant 2 : index
    %c0_83 = arith.constant 0 : index
    %103 = vector.load %arg11[%c0_81, %c2_82, %c0_83] : memref<18x18x16xf32, #tpu.memory_space<vmem>>, vector<16x16x16xf32>
    %104 = vector.shape_cast %103 : vector<16x16x16xf32> to vector<256x16xf32>
    %105 = arith.truncf %104 : vector<256x16xf32> to vector<256x16xbf16>
    %c2_84 = arith.constant 2 : index
    %c0_85 = arith.constant 0 : index
    %c0_86 = arith.constant 0 : index
    %106 = vector.load %arg4[%c2_84, %c0_85, %c0_86] : memref<9x16x32xbf16, #tpu.memory_space<vmem>>, vector<1x16x32xbf16>
    %107 = vector.shape_cast %106 : vector<1x16x32xbf16> to vector<16x32xbf16>
    %cst_87 = arith.constant dense<0.000000e+00> : vector<256x32xf32>
    %108 = tpu.matmul %105, %107, %cst_87 {dimension_numbers = #tpu.dot_dimension_numbers<[1], [0], [0], [1], [0, 0, 1, 1], [], []>} : vector<256x16xbf16>, vector<16x32xbf16>, vector<256x32xf32> -> vector<256x32xf32>
    %109 = arith.addf %102, %108 : vector<256x32xf32>
    %c1_88 = arith.constant 1 : index
    %c0_89 = arith.constant 0 : index
    %c0_90 = arith.constant 0 : index
    %110 = vector.load %arg11[%c1_88, %c0_89, %c0_90] : memref<18x18x16xf32, #tpu.memory_space<vmem>>, vector<16x16x16xf32>
    %111 = vector.shape_cast %110 : vector<16x16x16xf32> to vector<256x16xf32>
    %112 = arith.truncf %111 : vector<256x16xf32> to vector<256x16xbf16>
    %c3_91 = arith.constant 3 : index
    %c0_92 = arith.constant 0 : index
    %c0_93 = arith.constant 0 : index
    %113 = vector.load %arg4[%c3_91, %c0_92, %c0_93] : memref<9x16x32xbf16, #tpu.memory_space<vmem>>, vector<1x16x32xbf16>
    %114 = vector.shape_cast %113 : vector<1x16x32xbf16> to vector<16x32xbf16>
    %cst_94 = arith.constant dense<0.000000e+00> : vector<256x32xf32>
    %115 = tpu.matmul %112, %114, %cst_94 {dimension_numbers = #tpu.dot_dimension_numbers<[1], [0], [0], [1], [0, 0, 1, 1], [], []>} : vector<256x16xbf16>, vector<16x32xbf16>, vector<256x32xf32> -> vector<256x32xf32>
    %116 = arith.addf %109, %115 : vector<256x32xf32>
    %c1_95 = arith.constant 1 : index
    %c1_96 = arith.constant 1 : index
    %c0_97 = arith.constant 0 : index
    %117 = vector.load %arg11[%c1_95, %c1_96, %c0_97] : memref<18x18x16xf32, #tpu.memory_space<vmem>>, vector<16x16x16xf32>
    %118 = vector.shape_cast %117 : vector<16x16x16xf32> to vector<256x16xf32>
    %119 = arith.truncf %118 : vector<256x16xf32> to vector<256x16xbf16>
    %c4_98 = arith.constant 4 : index
    %c0_99 = arith.constant 0 : index
    %c0_100 = arith.constant 0 : index
    %120 = vector.load %arg4[%c4_98, %c0_99, %c0_100] : memref<9x16x32xbf16, #tpu.memory_space<vmem>>, vector<1x16x32xbf16>
    %121 = vector.shape_cast %120 : vector<1x16x32xbf16> to vector<16x32xbf16>
    %cst_101 = arith.constant dense<0.000000e+00> : vector<256x32xf32>
    %122 = tpu.matmul %119, %121, %cst_101 {dimension_numbers = #tpu.dot_dimension_numbers<[1], [0], [0], [1], [0, 0, 1, 1], [], []>} : vector<256x16xbf16>, vector<16x32xbf16>, vector<256x32xf32> -> vector<256x32xf32>
    %123 = arith.addf %116, %122 : vector<256x32xf32>
    %c1_102 = arith.constant 1 : index
    %c2_103 = arith.constant 2 : index
    %c0_104 = arith.constant 0 : index
    %124 = vector.load %arg11[%c1_102, %c2_103, %c0_104] : memref<18x18x16xf32, #tpu.memory_space<vmem>>, vector<16x16x16xf32>
    %125 = vector.shape_cast %124 : vector<16x16x16xf32> to vector<256x16xf32>
    %126 = arith.truncf %125 : vector<256x16xf32> to vector<256x16xbf16>
    %c5_105 = arith.constant 5 : index
    %c0_106 = arith.constant 0 : index
    %c0_107 = arith.constant 0 : index
    %127 = vector.load %arg4[%c5_105, %c0_106, %c0_107] : memref<9x16x32xbf16, #tpu.memory_space<vmem>>, vector<1x16x32xbf16>
    %128 = vector.shape_cast %127 : vector<1x16x32xbf16> to vector<16x32xbf16>
    %cst_108 = arith.constant dense<0.000000e+00> : vector<256x32xf32>
    %129 = tpu.matmul %126, %128, %cst_108 {dimension_numbers = #tpu.dot_dimension_numbers<[1], [0], [0], [1], [0, 0, 1, 1], [], []>} : vector<256x16xbf16>, vector<16x32xbf16>, vector<256x32xf32> -> vector<256x32xf32>
    %130 = arith.addf %123, %129 : vector<256x32xf32>
    %c2_109 = arith.constant 2 : index
    %c0_110 = arith.constant 0 : index
    %c0_111 = arith.constant 0 : index
    %131 = vector.load %arg11[%c2_109, %c0_110, %c0_111] : memref<18x18x16xf32, #tpu.memory_space<vmem>>, vector<16x16x16xf32>
    %132 = vector.shape_cast %131 : vector<16x16x16xf32> to vector<256x16xf32>
    %133 = arith.truncf %132 : vector<256x16xf32> to vector<256x16xbf16>
    %c6_112 = arith.constant 6 : index
    %c0_113 = arith.constant 0 : index
    %c0_114 = arith.constant 0 : index
    %134 = vector.load %arg4[%c6_112, %c0_113, %c0_114] : memref<9x16x32xbf16, #tpu.memory_space<vmem>>, vector<1x16x32xbf16>
    %135 = vector.shape_cast %134 : vector<1x16x32xbf16> to vector<16x32xbf16>
    %cst_115 = arith.constant dense<0.000000e+00> : vector<256x32xf32>
    %136 = tpu.matmul %133, %135, %cst_115 {dimension_numbers = #tpu.dot_dimension_numbers<[1], [0], [0], [1], [0, 0, 1, 1], [], []>} : vector<256x16xbf16>, vector<16x32xbf16>, vector<256x32xf32> -> vector<256x32xf32>
    %137 = arith.addf %130, %136 : vector<256x32xf32>
    %c2_116 = arith.constant 2 : index
    %c1_117 = arith.constant 1 : index
    %c0_118 = arith.constant 0 : index
    %138 = vector.load %arg11[%c2_116, %c1_117, %c0_118] : memref<18x18x16xf32, #tpu.memory_space<vmem>>, vector<16x16x16xf32>
    %139 = vector.shape_cast %138 : vector<16x16x16xf32> to vector<256x16xf32>
    %140 = arith.truncf %139 : vector<256x16xf32> to vector<256x16xbf16>
    %c7_119 = arith.constant 7 : index
    %c0_120 = arith.constant 0 : index
    %c0_121 = arith.constant 0 : index
    %141 = vector.load %arg4[%c7_119, %c0_120, %c0_121] : memref<9x16x32xbf16, #tpu.memory_space<vmem>>, vector<1x16x32xbf16>
    %142 = vector.shape_cast %141 : vector<1x16x32xbf16> to vector<16x32xbf16>
    %cst_122 = arith.constant dense<0.000000e+00> : vector<256x32xf32>
    %143 = tpu.matmul %140, %142, %cst_122 {dimension_numbers = #tpu.dot_dimension_numbers<[1], [0], [0], [1], [0, 0, 1, 1], [], []>} : vector<256x16xbf16>, vector<16x32xbf16>, vector<256x32xf32> -> vector<256x32xf32>
    %144 = arith.addf %137, %143 : vector<256x32xf32>
    %c2_123 = arith.constant 2 : index
    %c2_124 = arith.constant 2 : index
    %c0_125 = arith.constant 0 : index
    %145 = vector.load %arg11[%c2_123, %c2_124, %c0_125] : memref<18x18x16xf32, #tpu.memory_space<vmem>>, vector<16x16x16xf32>
    %146 = vector.shape_cast %145 : vector<16x16x16xf32> to vector<256x16xf32>
    %147 = arith.truncf %146 : vector<256x16xf32> to vector<256x16xbf16>
    %c8_126 = arith.constant 8 : index
    %c0_127 = arith.constant 0 : index
    %c0_128 = arith.constant 0 : index
    %148 = vector.load %arg4[%c8_126, %c0_127, %c0_128] : memref<9x16x32xbf16, #tpu.memory_space<vmem>>, vector<1x16x32xbf16>
    %149 = vector.shape_cast %148 : vector<1x16x32xbf16> to vector<16x32xbf16>
    %cst_129 = arith.constant dense<0.000000e+00> : vector<256x32xf32>
    %150 = tpu.matmul %147, %149, %cst_129 {dimension_numbers = #tpu.dot_dimension_numbers<[1], [0], [0], [1], [0, 0, 1, 1], [], []>} : vector<256x16xbf16>, vector<16x32xbf16>, vector<256x32xf32> -> vector<256x32xf32>
    %151 = arith.addf %144, %150 : vector<256x32xf32>
    %c0_130 = arith.constant 0 : index
    %c0_131 = arith.constant 0 : index
    %152 = vector.load %arg5[%c0_130, %c0_131] : memref<1x32xf32, #tpu.memory_space<vmem>>, vector<1x32xf32>
    %153 = vector.broadcast %152 : vector<1x32xf32> to vector<256x32xf32>
    %154 = arith.addf %151, %153 : vector<256x32xf32>
    %cst_132 = arith.constant 0.000000e+00 : f32
    %155 = vector.broadcast %cst_132 : f32 to vector<256x32xf32>
    %156 = arith.maximumf %154, %155 : vector<256x32xf32>
    %cst_133 = arith.constant dense<0.000000e+00> : vector<32xf32>
    %157 = vector.multi_reduction <add>, %156, %cst_133 [0] : vector<256x32xf32> to vector<32xf32>
    %158 = vector.shape_cast %157 : vector<32xf32> to vector<1x32xf32>
    %cst_134 = arith.constant 3.906250e-03 : f32
    %159 = vector.broadcast %cst_134 : f32 to vector<1x32xf32>
    %160 = arith.mulf %158, %159 : vector<1x32xf32>
    %c0_135 = arith.constant 0 : index
    %c0_136 = arith.constant 0 : index
    %c0_137 = arith.constant 0 : index
    %161 = vector.load %arg9[%c0_135, %c0_136, %c0_137] : memref<1x1x32xf32, #tpu.memory_space<vmem>>, vector<1x1x32xf32>
    %162 = vector.shape_cast %161 : vector<1x1x32xf32> to vector<1x32xf32>
    %163 = vector.shape_cast %160 : vector<1x32xf32> to vector<1x1x32xf32>
    tpu.vector_store %arg9[%c0_135, %c0_136, %c0_137], %163 {strides = array<i32>} : memref<1x1x32xf32, #tpu.memory_space<vmem>>, vector<1x1x32xf32>,
    %164 = arith.truncf %160 : vector<1x32xf32> to vector<1x32xbf16>
    %c0_138 = arith.constant 0 : index
    %c0_139 = arith.constant 0 : index
    %165 = vector.load %arg6[%c0_138, %c0_139] : memref<32x5xbf16, #tpu.memory_space<vmem>>, vector<32x5xbf16>
    %cst_140 = arith.constant dense<0.000000e+00> : vector<1x5xf32>
    %166 = tpu.matmul %164, %165, %cst_140 {dimension_numbers = #tpu.dot_dimension_numbers<[1], [0], [0], [1], [0, 0, 1, 1], [], []>} : vector<1x32xbf16>, vector<32x5xbf16>, vector<1x5xf32> -> vector<1x5xf32>
    %c0_141 = arith.constant 0 : index
    %c0_142 = arith.constant 0 : index
    %167 = vector.load %arg7[%c0_141, %c0_142] : memref<1x5xf32, #tpu.memory_space<vmem>>, vector<1x5xf32>
    %168 = arith.addf %166, %167 : vector<1x5xf32>
    %cst_143 = arith.constant dense<0xFF800000> : vector<1xf32>
    %169 = vector.multi_reduction <maximumf>, %168, %cst_143 [1] : vector<1x5xf32> to vector<1xf32>
    %170 = vector.shape_cast %169 : vector<1xf32> to vector<1x1xf32>
    %171 = vector.broadcast %170 : vector<1x1xf32> to vector<1x5xf32>
    %172 = arith.subf %168, %171 : vector<1x5xf32>
    %173 = math.exp %172 : vector<1x5xf32>
    %cst_144 = arith.constant dense<0.000000e+00> : vector<1xf32>
    %174 = vector.multi_reduction <add>, %173, %cst_144 [1] : vector<1x5xf32> to vector<1xf32>
    %175 = vector.shape_cast %174 : vector<1xf32> to vector<1x1xf32>
    %176 = tpu.reciprocal %175 {approx = true} : vector<1x1xf32> -> vector<1x1xf32>
    %177 = vector.broadcast %176 : vector<1x1xf32> to vector<1x5xf32>
    %178 = arith.mulf %173, %177 : vector<1x5xf32>
    %c0_145 = arith.constant 0 : index
    %c0_146 = arith.constant 0 : index
    %c0_147 = arith.constant 0 : index
    %179 = vector.load %arg8[%c0_145, %c0_146, %c0_147] : memref<1x1x5xf32, #tpu.memory_space<vmem>>, vector<1x1x5xf32>
    %180 = vector.shape_cast %179 : vector<1x1x5xf32> to vector<1x5xf32>
    %181 = vector.shape_cast %178 : vector<1x5xf32> to vector<1x1x5xf32>
    tpu.vector_store %arg8[%c0_145, %c0_146, %c0_147], %181 {strides = array<i32>} : memref<1x1x5xf32, #tpu.memory_space<vmem>>, vector<1x1x5xf32>,
    return
  }
  func.func @transform_0(%arg0: i32) -> (i32, i32, i32, i32) {
    %c0_i32 = arith.constant 0 : i32
    %c0_i32_0 = arith.constant 0 : i32
    %c0_i32_1 = arith.constant 0 : i32
    %c0_i32_2 = arith.constant 0 : i32
    return %arg0, %c0_i32, %c0_i32_0, %c0_i32_1 : i32, i32, i32, i32
  }
  func.func @transform_1(%arg0: i32) -> (i32, i32, i32) {
    %c0_i32 = arith.constant 0 : i32
    %c0_i32_0 = arith.constant 0 : i32
    %c0_i32_1 = arith.constant 0 : i32
    %c0_i32_2 = arith.constant 0 : i32
    return %c0_i32, %c0_i32_0, %c0_i32_1 : i32, i32, i32
  }
  func.func @transform_2(%arg0: i32) -> (i32, i32) {
    %c0_i32 = arith.constant 0 : i32
    %c0_i32_0 = arith.constant 0 : i32
    %c0_i32_1 = arith.constant 0 : i32
    return %c0_i32, %c0_i32_0 : i32, i32
  }
  func.func @transform_3(%arg0: i32) -> (i32, i32, i32) {
    %c0_i32 = arith.constant 0 : i32
    %c0_i32_0 = arith.constant 0 : i32
    %c0_i32_1 = arith.constant 0 : i32
    %c0_i32_2 = arith.constant 0 : i32
    return %c0_i32, %c0_i32_0, %c0_i32_1 : i32, i32, i32
  }
  func.func @transform_4(%arg0: i32) -> (i32, i32) {
    %c0_i32 = arith.constant 0 : i32
    %c0_i32_0 = arith.constant 0 : i32
    %c0_i32_1 = arith.constant 0 : i32
    return %c0_i32, %c0_i32_0 : i32, i32
  }
  func.func @transform_5(%arg0: i32) -> (i32, i32) {
    %c0_i32 = arith.constant 0 : i32
    %c0_i32_0 = arith.constant 0 : i32
    %c0_i32_1 = arith.constant 0 : i32
    return %c0_i32, %c0_i32_0 : i32, i32
  }
  func.func @transform_6(%arg0: i32) -> (i32, i32) {
    %c0_i32 = arith.constant 0 : i32
    %c0_i32_0 = arith.constant 0 : i32
    %c0_i32_1 = arith.constant 0 : i32
    return %c0_i32, %c0_i32_0 : i32, i32
  }
  func.func @transform_7(%arg0: i32) -> (i32, i32, i32) {
    %c0_i32 = arith.constant 0 : i32
    %c0_i32_0 = arith.constant 0 : i32
    %c0_i32_1 = arith.constant 0 : i32
    return %arg0, %c0_i32, %c0_i32_0 : i32, i32, i32
  }
  func.func @transform_8(%arg0: i32) -> (i32, i32, i32) {
    %c0_i32 = arith.constant 0 : i32
    %c0_i32_0 = arith.constant 0 : i32
    %c0_i32_1 = arith.constant 0 : i32
    return %arg0, %c0_i32, %c0_i32_0 : i32, i32, i32
  }
}

</mosaic_0001>

<llo_original>
// kernel: pretrained_nn_forward.1
$region0: #{pretrained_nn_forward.1}
  #allocation0 [shape = 'u32[]', space=smem, size = 0x4, offset = 0x4, fixed_abs, tag = 'smem constant byte address 0x4 - core index']
  #allocation1 [shape = 'u32[144,128]{1,0:T(1,128)}', space=vmem, size = 0x12000, scoped, tag = 'internal scratch']
  #allocation2 [shape = 'f32[18,18,1]{2,1,0:T(8,128)}', space=vmem, size = 0x36000, scoped, tag = 'scratch operand']
  #allocation3 [shape = 'f32[18,18,16]{2,1,0:T(8,128)}', space=vmem, size = 0x36000, scoped, tag = 'scratch operand']
  %s0 = inlined_call_operand.vmem [shape: bf16[2,16,16,1], index: 0, kind: input, shape index: {}]
  %s1 = inlined_call_operand.vmem [shape: f32[9,1,16], index: 1, kind: input, shape index: {}]
  %s2 = inlined_call_operand.vmem [shape: f32[1,16], index: 2, kind: input, shape index: {}]
  %s3 = inlined_call_operand.vmem [shape: bf16[9,16,32], index: 3, kind: input, shape index: {}]
  %s4 = inlined_call_operand.vmem [shape: f32[1,32], index: 4, kind: input, shape index: {}]
  %s5 = inlined_call_operand.vmem [shape: bf16[32,5], index: 5, kind: input, shape index: {}]
  %s6 = inlined_call_operand.vmem [shape: f32[1,5], index: 6, kind: input, shape index: {}]
  %s7 = inlined_call_operand.hbm [shape: f32[2,1,5], index: 7, kind: output, shape index: {0}]
  %s8 = inlined_call_operand.hbm [shape: f32[2,1,32], index: 8, kind: output, shape index: {1}]
  %9 = xla_tuple %s7, %s8
  %s10 = sld [smem:[#allocation0]]
  $region69: #{pretrained_nn_forward.1} parent=0
    _
  %s12 = ssub.s32 1, %s10
  %s13 = scalar_select 0, %s12, %s10
  $region1: #{pretrained_nn_forward.1} parent=0
    #allocation4 [shape = 'u8[1024]{0}', space=vmem, size = 0x400, scoped, tag = 'output window, operand 0']
    #allocation5 [shape = 's32[2]{0}', space=sflag, size = 0x8, scoped, tag = 'scoped memory for pretrained_nn_forward.1']
    #allocation6 [shape = 'u8[1024]{0}', space=vmem, size = 0x400, scoped, tag = 'output window, operand 1']
    #allocation7 [shape = 's32[2]{0}', space=sflag, size = 0x8, scoped, tag = 'scoped memory for pretrained_nn_forward.1']
    %14 = vsyncpa [#allocation5], 0
    %s15 = scalar_lea.sflag [#allocation5], 1
    %16 = vsyncpa %s15, 0
    %17 = vsyncpa [#allocation7], 0
    %s18 = scalar_lea.sflag [#allocation7], 1
    %19 = vsyncpa %s18, 0
    loop: start=0, step=1, limit=4
    $region2: #{pretrained_nn_forward.1} parent=1 // loop_pre_header
      _
    $region3: #{pretrained_nn_forward.1} parent=1 // loop_header
      %s21 = sphi 0, %s25
      %p22 = scmp.ge.s32.totalorder %s21, 4
      %s31 = sphi 0, %s33
      %s34 = sphi 0, %s31
      %s35 = sphi 0, %s34
      %s51 = sphi 0, %s35
      %s55 = sphi 0, %s55
      %s57 = sphi 0, %s55
      %s58 = sphi 0, %s57
      %s72 = sphi 0, %s58
      %s76 = sphi 0, %s76
      %s78 = sphi 0, %s76
      %s79 = sphi 0, %s78
      %s93 = sphi 0, %s79
      %s97 = sphi 0, %s97
      %s99 = sphi 0, %s97
      %s100 = sphi 0, %s99
      %s114 = sphi 0, %s100
      %s118 = sphi 0, %s118
      %s120 = sphi 0, %s118
      %s121 = sphi 0, %s120
      %s135 = sphi 0, %s121
      %s139 = sphi 0, %s139
      %s141 = sphi 0, %s139
      %s142 = sphi 0, %s141
      %s156 = sphi 0, %s142
      %s160 = sphi 0, %s160
      %s162 = sphi 0, %s160
      %s163 = sphi 0, %s162
      %s177 = sphi 0, %s163
      %s183 = sphi 0, %s185
      %s186 = sphi 0, %s183
      %s187 = sphi 0, %s186
      %s203 = sphi 0, %s187
      %s209 = sphi 0, %s211
      %s212 = sphi 0, %s209
      %s213 = sphi 0, %s212
      %s229 = sphi 0, %s213
    $region4: #{pretrained_nn_forward.1} parent=1 // loop_header_branch
      %24 = sbr.rel (%p22) target = $region8
    $region5: #{pretrained_nn_forward.1} parent=1 // loop_body
      %s26 = ssub.s32 %s21, 1
      %s27 = ssub.s32 %s21, 2
      %s28 = sadd.s32 %s21, 1
      %s29 = ssub.s32 %s21, %s28
      %p30 = scmp.eq.s32.totalorder %s29, 0
      %s32 = sadd.s32 %s31, 1
      %s33 = scalar_select %p30, %s31, %s32
      %p36 = pneg %p30
      %p37 = scmp.eq.s32.totalorder %s21, 1
      %p38 = por %p36, %p37
      %p39 = scmp.ne.s32.totalorder %s31, %s34
      %p40 = scmp.eq.s32.totalorder %s21, 0
      %p41 = por %p39, %p40
      %p42 = scmp.ne.s32.totalorder %s31, %s34
      %p43 = scmp.eq.s32.totalorder %s26, 1
      %p44 = por %p42, %p43
      %p45 = scmp.ne.s32.totalorder %s34, %s35
      %p46 = scmp.eq.s32.totalorder %s26, 0
      %p47 = por %p45, %p46
      %p48 = scmp.ne.s32.totalorder %s34, %s35
      %p49 = scmp.eq.s32.totalorder %s27, 1
      %p50 = por %p48, %p49
      %p52 = scmp.ne.s32.totalorder %s35, %s51
      %p53 = scmp.eq.s32.totalorder %s27, 0
      %p54 = por %p52, %p53
      %s56 = sadd.s32 %s55, 1
      %p59 = scmp.eq.s32.totalorder %s21, 1
      %p60 = scmp.ne.s32.totalorder %s55, %s57
      %p61 = scmp.eq.s32.totalorder %s21, 0
      %p62 = por %p60, %p61
      %p63 = scmp.ne.s32.totalorder %s55, %s57
      %p64 = scmp.eq.s32.totalorder %s26, 1
      %p65 = por %p63, %p64
      %p66 = scmp.ne.s32.totalorder %s57, %s58
      %p67 = scmp.eq.s32.totalorder %s26, 0
      %p68 = por %p66, %p67
      %p69 = scmp.ne.s32.totalorder %s57, %s58
      %p70 = scmp.eq.s32.totalorder %s27, 1
      %p71 = por %p69, %p70
      %p73 = scmp.ne.s32.totalorder %s58, %s72
      %p74 = scmp.eq.s32.totalorder %s27, 0
      %p75 = por %p73, %p74
      %s77 = sadd.s32 %s76, 1
      %p80 = scmp.eq.s32.totalorder %s21, 1
      %p81 = scmp.ne.s32.totalorder %s76, %s78
      %p82 = scmp.eq.s32.totalorder %s21, 0
      %p83 = por %p81, %p82
      %p84 = scmp.ne.s32.totalorder %s76, %s78
      %p85 = scmp.eq.s32.totalorder %s26, 1
      %p86 = por %p84, %p85
      %p87 = scmp.ne.s32.totalorder %s78, %s79
      %p88 = scmp.eq.s32.totalorder %s26, 0
      %p89 = por %p87, %p88
      %p90 = scmp.ne.s32.totalorder %s78, %s79
      %p91 = scmp.eq.s32.totalorder %s27, 1
      %p92 = por %p90, %p91
      %p94 = scmp.ne.s32.totalorder %s79, %s93
      %p95 = scmp.eq.s32.totalorder %s27, 0
      %p96 = por %p94, %p95
      %s98 = sadd.s32 %s97, 1
      %p101 = scmp.eq.s32.totalorder %s21, 1
      %p102 = scmp.ne.s32.totalorder %s97, %s99
      %p103 = scmp.eq.s32.totalorder %s21, 0
      %p104 = por %p102, %p103
      %p105 = scmp.ne.s32.totalorder %s97, %s99
      %p106 = scmp.eq.s32.totalorder %s26, 1
      %p107 = por %p105, %p106
      %p108 = scmp.ne.s32.totalorder %s99, %s100
      %p109 = scmp.eq.s32.totalorder %s26, 0
      %p110 = por %p108, %p109
      %p111 = scmp.ne.s32.totalorder %s99, %s100
      %p112 = scmp.eq.s32.totalorder %s27, 1
      %p113 = por %p111, %p112
      %p115 = scmp.ne.s32.totalorder %s100, %s114
      %p116 = scmp.eq.s32.totalorder %s27, 0
      %p117 = por %p115, %p116
      %s119 = sadd.s32 %s118, 1
      %p122 = scmp.eq.s32.totalorder %s21, 1
      %p123 = scmp.ne.s32.totalorder %s118, %s120
      %p124 = scmp.eq.s32.totalorder %s21, 0
      %p125 = por %p123, %p124
      %p126 = scmp.ne.s32.totalorder %s118, %s120
      %p127 = scmp.eq.s32.totalorder %s26, 1
      %p128 = por %p126, %p127
      %p129 = scmp.ne.s32.totalorder %s120, %s121
      %p130 = scmp.eq.s32.totalorder %s26, 0
      %p131 = por %p129, %p130
      %p132 = scmp.ne.s32.totalorder %s120, %s121
      %p133 = scmp.eq.s32.totalorder %s27, 1
      %p134 = por %p132, %p133
      %p136 = scmp.ne.s32.totalorder %s121, %s135
      %p137 = scmp.eq.s32.totalorder %s27, 0
      %p138 = por %p136, %p137
      %s140 = sadd.s32 %s139, 1
      %p143 = scmp.eq.s32.totalorder %s21, 1
      %p144 = scmp.ne.s32.totalorder %s139, %s141
      %p145 = scmp.eq.s32.totalorder %s21, 0
      %p146 = por %p144, %p145
      %p147 = scmp.ne.s32.totalorder %s139, %s141
      %p148 = scmp.eq.s32.totalorder %s26, 1
      %p149 = por %p147, %p148
      %p150 = scmp.ne.s32.totalorder %s141, %s142
      %p151 = scmp.eq.s32.totalorder %s26, 0
      %p152 = por %p150, %p151
      %p153 = scmp.ne.s32.totalorder %s141, %s142
      %p154 = scmp.eq.s32.totalorder %s27, 1
      %p155 = por %p153, %p154
      %p157 = scmp.ne.s32.totalorder %s142, %s156
      %p158 = scmp.eq.s32.totalorder %s27, 0
      %p159 = por %p157, %p158
      %s161 = sadd.s32 %s160, 1
      %p164 = scmp.eq.s32.totalorder %s21, 1
      %p165 = scmp.ne.s32.totalorder %s160, %s162
      %p166 = scmp.eq.s32.totalorder %s21, 0
      %p167 = por %p165, %p166
      %p168 = scmp.ne.s32.totalorder %s160, %s162
      %p169 = scmp.eq.s32.totalorder %s26, 1
      %p170 = por %p168, %p169
      %p171 = scmp.ne.s32.totalorder %s162, %s163
      %p172 = scmp.eq.s32.totalorder %s26, 0
      %p173 = por %p171, %p172
      %p174 = scmp.ne.s32.totalorder %s162, %s163
      %p175 = scmp.eq.s32.totalorder %s27, 1
      %p176 = por %p174, %p175
      %p178 = scmp.ne.s32.totalorder %s163, %s177
      %p179 = scmp.eq.s32.totalorder %s27, 0
      %p180 = por %p178, %p179
      %s181 = ssub.s32 %s21, %s28
      %p182 = scmp.eq.s32.totalorder %s181, 0
      %s184 = sadd.s32 %s183, 1
      %s185 = scalar_select %p182, %s183, %s184
      %p188 = pneg %p182
      %p189 = scmp.eq.s32.totalorder %s21, 1
      %p190 = por %p188, %p189
      %p191 = scmp.ne.s32.totalorder %s183, %s186
      %p192 = scmp.eq.s32.totalorder %s21, 0
      %p193 = por %p191, %p192
      %p194 = scmp.ne.s32.totalorder %s183, %s186
      %p195 = scmp.eq.s32.totalorder %s26, 1
      %p196 = por %p194, %p195
      %p197 = scmp.ne.s32.totalorder %s186, %s187
      %p198 = scmp.eq.s32.totalorder %s26, 0
      %p199 = por %p197, %p198
      %p200 = scmp.ne.s32.totalorder %s186, %s187
      %p201 = scmp.eq.s32.totalorder %s27, 1
      %p202 = por %p200, %p201
      %p204 = scmp.ne.s32.totalorder %s187, %s203
      %p205 = scmp.eq.s32.totalorder %s27, 0
      %p206 = por %p204, %p205
      %s207 = ssub.s32 %s21, %s28
      %p208 = scmp.eq.s32.totalorder %s207, 0
      %s210 = sadd.s32 %s209, 1
      %s211 = scalar_select %p208, %s209, %s210
      %p214 = pneg %p208
      %p215 = scmp.eq.s32.totalorder %s21, 1
      %p216 = por %p214, %p215
      %p217 = scmp.ne.s32.totalorder %s209, %s212
      %p218 = scmp.eq.s32.totalorder %s21, 0
      %p219 = por %p217, %p218
      %p220 = scmp.ne.s32.totalorder %s209, %s212
      %p221 = scmp.eq.s32.totalorder %s26, 1
      %p222 = por %p220, %p221
      %p223 = scmp.ne.s32.totalorder %s212, %s213
      %p224 = scmp.eq.s32.totalorder %s26, 0
      %p225 = por %p223, %p224
      %p226 = scmp.ne.s32.totalorder %s212, %s213
      %p227 = scmp.eq.s32.totalorder %s27, 1
      %p228 = por %p226, %p227
      %p230 = scmp.ne.s32.totalorder %s213, %s229
      %p231 = scmp.eq.s32.totalorder %s27, 0
      %p232 = por %p230, %p231
      %p233 = scmp.le.s32.totalorder 1, %s21
      %p234 = scmp.lt.s32.totalorder %s21, 3
      %p235 = pnand %p233, %p234
      %p236 = pneg %p235
      // Predicated region
      $region9: #{pretrained_nn_forward.1} parent=5 // pred_check
        _
      $region10: #{pretrained_nn_forward.1} parent=5 // pred_check_branch
        %238 = sbr.rel (%p235) target = $region12
      $region11: #{pretrained_nn_forward.1} parent=5 // pred_region
        %s239 = ssub.s32 %s21, 1
        // Predicated region
        $region13: #{pretrained_nn_forward.1} parent=11 // pred_check
          %p240 = pneg %p68
        $region14: #{pretrained_nn_forward.1} parent=11 // pred_check_branch
          %242 = sbr.rel (%p240) target = $region16
        $region15: #{pretrained_nn_forward.1} parent=11 // pred_region
          _
        $region16: #{pretrained_nn_forward.1} parent=11 // pred_fallthru
          _
        // Predicated region
        $region17: #{pretrained_nn_forward.1} parent=11 // pred_check
          %p243 = pneg %p89
        $region18: #{pretrained_nn_forward.1} parent=11 // pred_check_branch
          %245 = sbr.rel (%p243) target = $region20
        $region19: #{pretrained_nn_forward.1} parent=11 // pred_region
          _
        $region20: #{pretrained_nn_forward.1} parent=11 // pred_fallthru
          _
        // Predicated region
        $region21: #{pretrained_nn_forward.1} parent=11 // pred_check
          %p246 = pneg %p110
        $region22: #{pretrained_nn_forward.1} parent=11 // pred_check_branch
          %248 = sbr.rel (%p246) target = $region24
        $region23: #{pretrained_nn_forward.1} parent=11 // pred_region
          _
        $region24: #{pretrained_nn_forward.1} parent=11 // pred_fallthru
          _
        // Predicated region
        $region25: #{pretrained_nn_forward.1} parent=11 // pred_check
          %p249 = pneg %p131
        $region26: #{pretrained_nn_forward.1} parent=11 // pred_check_branch
          %251 = sbr.rel (%p249) target = $region28
        $region27: #{pretrained_nn_forward.1} parent=11 // pred_region
          _
        $region28: #{pretrained_nn_forward.1} parent=11 // pred_fallthru
          _
        // Predicated region
        $region29: #{pretrained_nn_forward.1} parent=11 // pred_check
          %p252 = pneg %p152
        $region30: #{pretrained_nn_forward.1} parent=11 // pred_check_branch
          %254 = sbr.rel (%p252) target = $region32
        $region31: #{pretrained_nn_forward.1} parent=11 // pred_region
          _
        $region32: #{pretrained_nn_forward.1} parent=11 // pred_fallthru
          _
        // Predicated region
        $region33: #{pretrained_nn_forward.1} parent=11 // pred_check
          %p255 = pneg %p173
        $region34: #{pretrained_nn_forward.1} parent=11 // pred_check_branch
          %257 = sbr.rel (%p255) target = $region36
        $region35: #{pretrained_nn_forward.1} parent=11 // pred_region
          _
        $region36: #{pretrained_nn_forward.1} parent=11 // pred_fallthru
          _
      $region12: #{pretrained_nn_forward.1} parent=5 // pred_fallthru
        _
      %p258 = scmp.lt.s32.totalorder %s21, 2
      // Predicated region
      $region37: #{pretrained_nn_forward.1} parent=5 // pred_check
        %p259 = pneg %p258
      $region38: #{pretrained_nn_forward.1} parent=5 // pred_check_branch
        %261 = sbr.rel (%p259) target = $region40
      $region39: #{pretrained_nn_forward.1} parent=5 // pred_region
        // Predicated region
        $region41: #{pretrained_nn_forward.1} parent=39 // pred_check
          %p262 = pneg %p41
        $region42: #{pretrained_nn_forward.1} parent=39 // pred_check_branch
          %264 = sbr.rel (%p262) target = $region44
        $region43: #{pretrained_nn_forward.1} parent=39 // pred_region
          %p265 = scmp.lt.s32.totalorder %s21, 1
          %s266 = scalar_select %p265, %s21, 1
          %s267 = smul.addr %s266, 32
          %s268 = smul.addr %s267, 4
          %s269 = scalar_lea.vmem %s0, %s268
        $region44: #{pretrained_nn_forward.1} parent=39 // pred_fallthru
          _
      $region40: #{pretrained_nn_forward.1} parent=5 // pred_fallthru
        _
      %p270 = scmp.le.s32.totalorder 1, %s21
      %p271 = scmp.lt.s32.totalorder %s21, 3
      %p272 = pnand %p270, %p271
      %p273 = pneg %p272
      // Predicated region
      $region45: #{pretrained_nn_forward.1} parent=5 // pred_check
        _
      $region46: #{pretrained_nn_forward.1} parent=5 // pred_check_branch
        %275 = sbr.rel (%p272) target = $region48
      $region47: #{pretrained_nn_forward.1} parent=5 // pred_region
        %s276 = ssub.s32 %s21, 1
        %p277 = scmp.lt.s32.totalorder %s26, 1
        %s278 = scalar_select %p277, %s26, 1
        %s279 = smul.addr %s278, 32
        %s280 = smul.addr %s279, 4
        %s281 = scalar_lea.vmem %s0, %s280
        %p282 = pneg %p47
        %p283 = pneg %p44
        %p284 = pneg %p68
        %p285 = pneg %p65
        %p286 = pneg %p89
        %p287 = pneg %p86
        %p288 = pneg %p110
        %p289 = pneg %p107
        %p290 = pneg %p131
        %p291 = pneg %p128
        %p292 = pneg %p152
        %p293 = pneg %p149
        %p294 = pneg %p173
        %p295 = pneg %p170
        %p296 = pneg %p199
        %p297 = pneg %p196
        %s298 = sand.u32 %s186, 1
        %s299 = scalar_lea.sflag [#allocation5], %s298
        %s300 = sand.u32 %s186, 1
        %s301 = scalar_lea.vmem [#allocation4], %s300
        %p302 = pneg %p225
        %p303 = pneg %p222
        %s304 = sand.u32 %s212, 1
        %s305 = scalar_lea.sflag [#allocation7], %s304
        %s306 = sand.u32 %s212, 1
        %s307 = scalar_lea.vmem [#allocation6], %s306
        %p308 = scmp.lt.s32.totalorder %s26, 1
        %s309 = scalar_select %p308, %s26, 1
        %s310 = smul.addr %s309, 32
        %s311 = smul.addr %s310, 4
        %s312 = scalar_lea.vmem %s0, %s311
        %vm314 = vcmask 7168
        %315 = vst.msk [vmem:[#allocation2] sm:$0xff] %vm314, 0.0
        %316 = vst.msk [vmem:[#allocation2 + $0x8] sm:$0xff] %vm314, 0.0
        %vm317 = vcmask 1024
        %318 = vst.msk [vmem:[#allocation2 + $0x10] sm:$0x3] %vm317, 0.0
        %319 = vst.msk [vmem:[#allocation2 + $0x18] sm:$0xff] %vm314, 0.0
        %320 = vst.msk [vmem:[#allocation2 + $0x20] sm:$0xff] %vm314, 0.0
        %321 = vst.msk [vmem:[#allocation2 + $0x28] sm:$0x3] %vm317, 0.0
        %322 = vst.msk [vmem:[#allocation2 + $0x30] sm:$0xff] %vm314, 0.0
        %323 = vst.msk [vmem:[#allocation2 + $0x38] sm:$0xff] %vm314, 0.0
        %324 = vst.msk [vmem:[#allocation2 + $0x40] sm:$0x3] %vm317, 0.0
        %325 = vst.msk [vmem:[#allocation2 + $0x48] sm:$0xff] %vm314, 0.0
        %326 = vst.msk [vmem:[#allocation2 + $0x50] sm:$0xff] %vm314, 0.0
        %327 = vst.msk [vmem:[#allocation2 + $0x58] sm:$0x3] %vm317, 0.0
        %328 = vst.msk [vmem:[#allocation2 + $0x60] sm:$0xff] %vm314, 0.0
        %329 = vst.msk [vmem:[#allocation2 + $0x68] sm:$0xff] %vm314, 0.0
        %330 = vst.msk [vmem:[#allocation2 + $0x70] sm:$0x3] %vm317, 0.0
        %331 = vst.msk [vmem:[#allocation2 + $0x78] sm:$0xff] %vm314, 0.0
        %332 = vst.msk [vmem:[#allocation2 + $0x80] sm:$0xff] %vm314, 0.0
        %333 = vst.msk [vmem:[#allocation2 + $0x88] sm:$0x3] %vm317, 0.0
        %334 = vst.msk [vmem:[#allocation2 + $0x90] sm:$0xff] %vm314, 0.0
        %335 = vst.msk [vmem:[#allocation2 + $0x98] sm:$0xff] %vm314, 0.0
        %336 = vst.msk [vmem:[#allocation2 + $0xa0] sm:$0x3] %vm317, 0.0
        %337 = vst.msk [vmem:[#allocation2 + $0xa8] sm:$0xff] %vm314, 0.0
        %338 = vst.msk [vmem:[#allocation2 + $0xb0] sm:$0xff] %vm314, 0.0
        %339 = vst.msk [vmem:[#allocation2 + $0xb8] sm:$0x3] %vm317, 0.0
        %340 = vst.msk [vmem:[#allocation2 + $0xc0] sm:$0xff] %vm314, 0.0
        %341 = vst.msk [vmem:[#allocation2 + $0xc8] sm:$0xff] %vm314, 0.0
        %342 = vst.msk [vmem:[#allocation2 + $0xd0] sm:$0x3] %vm317, 0.0
        %343 = vst.msk [vmem:[#allocation2 + $0xd8] sm:$0xff] %vm314, 0.0
        %344 = vst.msk [vmem:[#allocation2 + $0xe0] sm:$0xff] %vm314, 0.0
        %345 = vst.msk [vmem:[#allocation2 + $0xe8] sm:$0x3] %vm317, 0.0
        %346 = vst.msk [vmem:[#allocation2 + $0xf0] sm:$0xff] %vm314, 0.0
        %347 = vst.msk [vmem:[#allocation2 + $0xf8] sm:$0xff] %vm314, 0.0
        %348 = vst.msk [vmem:[#allocation2 + $0x100] sm:$0x3] %vm317, 0.0
        %349 = vst.msk [vmem:[#allocation2 + $0x108] sm:$0xff] %vm314, 0.0
        %350 = vst.msk [vmem:[#allocation2 + $0x110] sm:$0xff] %vm314, 0.0
        %351 = vst.msk [vmem:[#allocation2 + $0x118] sm:$0x3] %vm317, 0.0
        %352 = vst.msk [vmem:[#allocation2 + $0x120] sm:$0xff] %vm314, 0.0
        %353 = vst.msk [vmem:[#allocation2 + $0x128] sm:$0xff] %vm314, 0.0
        %354 = vst.msk [vmem:[#allocation2 + $0x130] sm:$0x3] %vm317, 0.0
        %355 = vst.msk [vmem:[#allocation2 + $0x138] sm:$0xff] %vm314, 0.0
        %356 = vst.msk [vmem:[#allocation2 + $0x140] sm:$0xff] %vm314, 0.0
        %357 = vst.msk [vmem:[#allocation2 + $0x148] sm:$0x3] %vm317, 0.0
        %358 = vst.msk [vmem:[#allocation2 + $0x150] sm:$0xff] %vm314, 0.0
        %359 = vst.msk [vmem:[#allocation2 + $0x158] sm:$0xff] %vm314, 0.0
        %360 = vst.msk [vmem:[#allocation2 + $0x160] sm:$0x3] %vm317, 0.0
        %361 = vst.msk [vmem:[#allocation2 + $0x168] sm:$0xff] %vm314, 0.0
        %362 = vst.msk [vmem:[#allocation2 + $0x170] sm:$0xff] %vm314, 0.0
        %363 = vst.msk [vmem:[#allocation2 + $0x178] sm:$0x3] %vm317, 0.0
        %364 = vst.msk [vmem:[#allocation2 + $0x180] sm:$0xff] %vm314, 0.0
        %365 = vst.msk [vmem:[#allocation2 + $0x188] sm:$0xff] %vm314, 0.0
        %366 = vst.msk [vmem:[#allocation2 + $0x190] sm:$0x3] %vm317, 0.0
        %367 = vst.msk [vmem:[#allocation2 + $0x198] sm:$0xff] %vm314, 0.0
        %368 = vst.msk [vmem:[#allocation2 + $0x1a0] sm:$0xff] %vm314, 0.0
        %369 = vst.msk [vmem:[#allocation2 + $0x1a8] sm:$0x3] %vm317, 0.0
        %v370 = vld [vmem:[%s312] sm:$0xf]
        %v371 = vld [vmem:[%s312 + $0x4] sm:$0xf]
        %v372 = vld [vmem:[%s312 + $0x8] sm:$0xf]
        %v373 = vld [vmem:[%s312 + $0xc] sm:$0xf]
        %v374 = vld [vmem:[%s312 + $0x10] sm:$0xf]
        %v375 = vld [vmem:[%s312 + $0x14] sm:$0xf]
        %v376 = vld [vmem:[%s312 + $0x18] sm:$0xf]
        %v377 = vld [vmem:[%s312 + $0x1c] sm:$0xf]
        %v378 = vld [vmem:[%s312 + $0x20] sm:$0xf]
        %v379 = vld [vmem:[%s312 + $0x24] sm:$0xf]
        %v380 = vld [vmem:[%s312 + $0x28] sm:$0xf]
        %v381 = vld [vmem:[%s312 + $0x2c] sm:$0xf]
        %v382 = vld [vmem:[%s312 + $0x30] sm:$0xf]
        %v383 = vld [vmem:[%s312 + $0x34] sm:$0xf]
        %v384 = vld [vmem:[%s312 + $0x38] sm:$0xf]
        %v385 = vld [vmem:[%s312 + $0x3c] sm:$0xf]
        %v386 = vld [vmem:[%s312 + $0x40] sm:$0xf]
        %v387 = vld [vmem:[%s312 + $0x44] sm:$0xf]
        %v388 = vld [vmem:[%s312 + $0x48] sm:$0xf]
        %v389 = vld [vmem:[%s312 + $0x4c] sm:$0xf]
        %v390 = vld [vmem:[%s312 + $0x50] sm:$0xf]
        %v391 = vld [vmem:[%s312 + $0x54] sm:$0xf]
        %v392 = vld [vmem:[%s312 + $0x58] sm:$0xf]
        %v393 = vld [vmem:[%s312 + $0x5c] sm:$0xf]
        %v394 = vld [vmem:[%s312 + $0x60] sm:$0xf]
        %v395 = vld [vmem:[%s312 + $0x64] sm:$0xf]
        %v396 = vld [vmem:[%s312 + $0x68] sm:$0xf]
        %v397 = vld [vmem:[%s312 + $0x6c] sm:$0xf]
        %v398 = vld [vmem:[%s312 + $0x70] sm:$0xf]
        %v399 = vld [vmem:[%s312 + $0x74] sm:$0xf]
        %v400 = vld [vmem:[%s312 + $0x78] sm:$0xf]
        %v401 = vld [vmem:[%s312 + $0x7c] sm:$0xf]
        %v402 = vunpack.c.l.bf16 %v370
        %v403 = vunpack.c.l.bf16 %v371
        %v404 = vunpack.c.l.bf16 %v372
        %v405 = vunpack.c.l.bf16 %v373
        %v406 = vunpack.c.l.bf16 %v374
        %v407 = vunpack.c.l.bf16 %v375
        %v408 = vunpack.c.l.bf16 %v376
        %v409 = vunpack.c.l.bf16 %v377
        %v410 = vunpack.c.l.bf16 %v378
        %v411 = vunpack.c.l.bf16 %v379
        %v412 = vunpack.c.l.bf16 %v380
        %v413 = vunpack.c.l.bf16 %v381
        %v414 = vunpack.c.l.bf16 %v382
        %v415 = vunpack.c.l.bf16 %v383
        %v416 = vunpack.c.l.bf16 %v384
        %v417 = vunpack.c.l.bf16 %v385
        %v418 = vunpack.c.l.bf16 %v386
        %v419 = vunpack.c.l.bf16 %v387
        %v420 = vunpack.c.l.bf16 %v388
        %v421 = vunpack.c.l.bf16 %v389
        %v422 = vunpack.c.l.bf16 %v390
        %v423 = vunpack.c.l.bf16 %v391
        %v424 = vunpack.c.l.bf16 %v392
        %v425 = vunpack.c.l.bf16 %v393
        %v426 = vunpack.c.l.bf16 %v394
        %v427 = vunpack.c.l.bf16 %v395
        %v428 = vunpack.c.l.bf16 %v396
        %v429 = vunpack.c.l.bf16 %v397
        %v430 = vunpack.c.l.bf16 %v398
        %v431 = vunpack.c.l.bf16 %v399
        %v432 = vunpack.c.l.bf16 %v400
        %v433 = vunpack.c.l.bf16 %v401
        %s434 = scalar_lea.vmem [#allocation2], 24
        %435 = vst.msk [vmem:[%s434 + $0x1] sm:$0xff] %vm314, %v402
        %436 = vst.msk [vmem:[%s434 + $0x9] sm:$0xff] %vm314, %v403
        %437 = vst.msk [vmem:[%s434 + $0x19] sm:$0xff] %vm314, %v404
        %438 = vst.msk [vmem:[%s434 + $0x21] sm:$0xff] %vm314, %v405
        %439 = vst.msk [vmem:[%s434 + $0x31] sm:$0xff] %vm314, %v406
        %440 = vst.msk [vmem:[%s434 + $0x39] sm:$0xff] %vm314, %v407
        %441 = vst.msk [vmem:[%s434 + $0x49] sm:$0xff] %vm314, %v408
        %442 = vst.msk [vmem:[%s434 + $0x51] sm:$0xff] %vm314, %v409
        %443 = vst.msk [vmem:[%s434 + $0x61] sm:$0xff] %vm314, %v410
        %444 = vst.msk [vmem:[%s434 + $0x69] sm:$0xff] %vm314, %v411
        %445 = vst.msk [vmem:[%s434 + $0x79] sm:$0xff] %vm314, %v412
        %446 = vst.msk [vmem:[%s434 + $0x81] sm:$0xff] %vm314, %v413
        %447 = vst.msk [vmem:[%s434 + $0x91] sm:$0xff] %vm314, %v414
        %448 = vst.msk [vmem:[%s434 + $0x99] sm:$0xff] %vm314, %v415
        %449 = vst.msk [vmem:[%s434 + $0xa9] sm:$0xff] %vm314, %v416
        %450 = vst.msk [vmem:[%s434 + $0xb1] sm:$0xff] %vm314, %v417
        %451 = vst.msk [vmem:[%s434 + $0xc1] sm:$0xff] %vm314, %v418
        %452 = vst.msk [vmem:[%s434 + $0xc9] sm:$0xff] %vm314, %v419
        %453 = vst.msk [vmem:[%s434 + $0xd9] sm:$0xff] %vm314, %v420
        %454 = vst.msk [vmem:[%s434 + $0xe1] sm:$0xff] %vm314, %v421
        %455 = vst.msk [vmem:[%s434 + $0xf1] sm:$0xff] %vm314, %v422
        %456 = vst.msk [vmem:[%s434 + $0xf9] sm:$0xff] %vm314, %v423
        %457 = vst.msk [vmem:[%s434 + $0x109] sm:$0xff] %vm314, %v424
        %458 = vst.msk [vmem:[%s434 + $0x111] sm:$0xff] %vm314, %v425
        %459 = vst.msk [vmem:[%s434 + $0x121] sm:$0xff] %vm314, %v426
        %460 = vst.msk [vmem:[%s434 + $0x129] sm:$0xff] %vm314, %v427
        %461 = vst.msk [vmem:[%s434 + $0x139] sm:$0xff] %vm314, %v428
        %462 = vst.msk [vmem:[%s434 + $0x141] sm:$0xff] %vm314, %v429
        %463 = vst.msk [vmem:[%s434 + $0x151] sm:$0xff] %vm314, %v430
        %464 = vst.msk [vmem:[%s434 + $0x159] sm:$0xff] %vm314, %v431
        %465 = vst.msk [vmem:[%s434 + $0x169] sm:$0xff] %vm314, %v432
        %466 = vst.msk [vmem:[%s434 + $0x171] sm:$0xff] %vm314, %v433
        %v467 = vld [vmem:[#allocation2] sm:$0xff]
        %v468 = vld [vmem:[#allocation2 + $0x8] sm:$0xff]
        %v469 = vld [vmem:[#allocation2 + $0x18] sm:$0xff]
        %v470 = vld [vmem:[#allocation2 + $0x20] sm:$0xff]
        %v471 = vld [vmem:[#allocation2 + $0x30] sm:$0xff]
        %v472 = vld [vmem:[#allocation2 + $0x38] sm:$0xff]
        %v473 = vld [vmem:[#allocation2 + $0x48] sm:$0xff]
        %v474 = vld [vmem:[#allocation2 + $0x50] sm:$0xff]
        %v475 = vld [vmem:[#allocation2 + $0x60] sm:$0xff]
        %v476 = vld [vmem:[#allocation2 + $0x68] sm:$0xff]
        %v477 = vld [vmem:[#allocation2 + $0x78] sm:$0xff]
        %v478 = vld [vmem:[#allocation2 + $0x80] sm:$0xff]
        %v479 = vld [vmem:[#allocation2 + $0x90] sm:$0xff]
        %v480 = vld [vmem:[#allocation2 + $0x98] sm:$0xff]
        %v481 = vld [vmem:[#allocation2 + $0xa8] sm:$0xff]
        %v482 = vld [vmem:[#allocation2 + $0xb0] sm:$0xff]
        %v483 = vld [vmem:[#allocation2 + $0xc0] sm:$0xff]
        %v484 = vld [vmem:[#allocation2 + $0xc8] sm:$0xff]
        %v485 = vld [vmem:[#allocation2 + $0xd8] sm:$0xff]
        %v486 = vld [vmem:[#allocation2 + $0xe0] sm:$0xff]
        %v487 = vld [vmem:[#allocation2 + $0xf0] sm:$0xff]
        %v488 = vld [vmem:[#allocation2 + $0xf8] sm:$0xff]
        %v489 = vld [vmem:[#allocation2 + $0x108] sm:$0xff]
        %v490 = vld [vmem:[#allocation2 + $0x110] sm:$0xff]
        %v491 = vld [vmem:[#allocation2 + $0x120] sm:$0xff]
        %v492 = vld [vmem:[#allocation2 + $0x128] sm:$0xff]
        %v493 = vld [vmem:[#allocation2 + $0x138] sm:$0xff]
        %v494 = vld [vmem:[#allocation2 + $0x140] sm:$0xff]
        %v495 = vld [vmem:[#allocation2 + $0x150] sm:$0xff]
        %v496 = vld [vmem:[#allocation2 + $0x158] sm:$0xff]
        %v497 = vld [vmem:[#allocation2 + $0x168] sm:$0xff]
        %v498 = vld [vmem:[#allocation2 + $0x170] sm:$0xff]
        %v499 = vld [vmem:[%s1] sm:$0x1]
        %501 = vset.pattern.permute.xlu0 0
        %502 = vperm.xlu0 %501, %v467
        %v503 = vpop.permute.xlu0 %502
        %506 = vset.pattern.permute.xlu0 0
        %507 = vperm.xlu0 %506, %v468
        %v508 = vpop.permute.xlu0 %507
        %511 = vset.pattern.permute.xlu0 0
        %512 = vperm.xlu0 %511, %v469
        %v513 = vpop.permute.xlu0 %512
        %516 = vset.pattern.permute.xlu0 0
        %517 = vperm.xlu0 %516, %v470
        %v518 = vpop.permute.xlu0 %517
        %521 = vset.pattern.permute.xlu0 0
        %522 = vperm.xlu0 %521, %v471
        %v523 = vpop.permute.xlu0 %522
        %526 = vset.pattern.permute.xlu0 0
        %527 = vperm.xlu0 %526, %v472
        %v528 = vpop.permute.xlu0 %527
        %531 = vset.pattern.permute.xlu0 0
        %532 = vperm.xlu0 %531, %v473
        %v533 = vpop.permute.xlu0 %532
        %536 = vset.pattern.permute.xlu0 0
        %537 = vperm.xlu0 %536, %v474
        %v538 = vpop.permute.xlu0 %537
        %541 = vset.pattern.permute.xlu0 0
        %542 = vperm.xlu0 %541, %v475
        %v543 = vpop.permute.xlu0 %542
        %546 = vset.pattern.permute.xlu0 0
        %547 = vperm.xlu0 %546, %v476
        %v548 = vpop.permute.xlu0 %547
        %551 = vset.pattern.permute.xlu0 0
        %552 = vperm.xlu0 %551, %v477
        %v553 = vpop.permute.xlu0 %552
        %556 = vset.pattern.permute.xlu0 0
        %557 = vperm.xlu0 %556, %v478
        %v558 = vpop.permute.xlu0 %557
        %561 = vset.pattern.permute.xlu0 0
        %562 = vperm.xlu0 %561, %v479
        %v563 = vpop.permute.xlu0 %562
        %566 = vset.pattern.permute.xlu0 0
        %567 = vperm.xlu0 %566, %v480
        %v568 = vpop.permute.xlu0 %567
        %571 = vset.pattern.permute.xlu0 0
        %572 = vperm.xlu0 %571, %v481
        %v573 = vpop.permute.xlu0 %572
        %576 = vset.pattern.permute.xlu0 0
        %577 = vperm.xlu0 %576, %v482
        %v578 = vpop.permute.xlu0 %577
        %581 = vset.pattern.permute.xlu0 0
        %582 = vperm.xlu0 %581, %v483
        %v583 = vpop.permute.xlu0 %582
        %586 = vset.pattern.permute.xlu0 0
        %587 = vperm.xlu0 %586, %v484
        %v588 = vpop.permute.xlu0 %587
        %591 = vset.pattern.permute.xlu0 0
        %592 = vperm.xlu0 %591, %v485
        %v593 = vpop.permute.xlu0 %592
        %596 = vset.pattern.permute.xlu0 0
        %597 = vperm.xlu0 %596, %v486
        %v598 = vpop.permute.xlu0 %597
        %601 = vset.pattern.permute.xlu0 0
        %602 = vperm.xlu0 %601, %v487
        %v603 = vpop.permute.xlu0 %602
        %606 = vset.pattern.permute.xlu0 0
        %607 = vperm.xlu0 %606, %v488
        %v608 = vpop.permute.xlu0 %607
        %611 = vset.pattern.permute.xlu0 0
        %612 = vperm.xlu0 %611, %v489
        %v613 = vpop.permute.xlu0 %612
        %616 = vset.pattern.permute.xlu0 0
        %617 = vperm.xlu0 %616, %v490
        %v618 = vpop.permute.xlu0 %617
        %621 = vset.pattern.permute.xlu0 0
        %622 = vperm.xlu0 %621, %v491
        %v623 = vpop.permute.xlu0 %622
        %626 = vset.pattern.permute.xlu0 0
        %627 = vperm.xlu0 %626, %v492
        %v628 = vpop.permute.xlu0 %627
        %631 = vset.pattern.permute.xlu0 0
        %632 = vperm.xlu0 %631, %v493
        %v633 = vpop.permute.xlu0 %632
        %636 = vset.pattern.permute.xlu0 0
        %637 = vperm.xlu0 %636, %v494
        %v638 = vpop.permute.xlu0 %637
        %641 = vset.pattern.permute.xlu0 0
        %642 = vperm.xlu0 %641, %v495
        %v643 = vpop.permute.xlu0 %642
        %646 = vset.pattern.permute.xlu0 0
        %647 = vperm.xlu0 %646, %v496
        %v648 = vpop.permute.xlu0 %647
        %651 = vset.pattern.permute.xlu0 0
        %652 = vperm.xlu0 %651, %v497
        %v653 = vpop.permute.xlu0 %652
        %656 = vset.pattern.permute.xlu0 0
        %657 = vperm.xlu0 %656, %v498
        %v658 = vpop.permute.xlu0 %657
        %v661 = vlaneseq
        %v662 = vshrl.u32 %v661, 7
        %v663 = vsub.s32 0, %v662
        %v664 = vrot.slane %v499, %v663
        %v666 = vmul.f32 %v503, %v664
        %v667 = vmul.f32 %v508, %v664
        %v668 = vmul.f32 %v513, %v664
        %v669 = vmul.f32 %v518, %v664
        %v670 = vmul.f32 %v523, %v664
        %v671 = vmul.f32 %v528, %v664
        %v672 = vmul.f32 %v533, %v664
        %v673 = vmul.f32 %v538, %v664
        %v674 = vmul.f32 %v543, %v664
        %v675 = vmul.f32 %v548, %v664
        %v676 = vmul.f32 %v553, %v664
        %v677 = vmul.f32 %v558, %v664
        %v678 = vmul.f32 %v563, %v664
        %v679 = vmul.f32 %v568, %v664
        %v680 = vmul.f32 %v573, %v664
        %v681 = vmul.f32 %v578, %v664
        %v682 = vmul.f32 %v583, %v664
        %v683 = vmul.f32 %v588, %v664
        %v684 = vmul.f32 %v593, %v664
        %v685 = vmul.f32 %v598, %v664
        %v686 = vmul.f32 %v603, %v664
        %v687 = vmul.f32 %v608, %v664
        %v688 = vmul.f32 %v613, %v664
        %v689 = vmul.f32 %v618, %v664
        %v690 = vmul.f32 %v623, %v664
        %v691 = vmul.f32 %v628, %v664
        %v692 = vmul.f32 %v633, %v664
        %v693 = vmul.f32 %v638, %v664
        %v694 = vmul.f32 %v643, %v664
        %v695 = vmul.f32 %v648, %v664
        %v696 = vmul.f32 %v653, %v664
        %v697 = vmul.f32 %v658, %v664
        %v698 = vadd.f32 %v666, 0.0
        %v699 = vadd.f32 %v667, 0.0
        %v700 = vadd.f32 %v668, 0.0
        %v701 = vadd.f32 %v669, 0.0
        %v702 = vadd.f32 %v670, 0.0
        %v703 = vadd.f32 %v671, 0.0
        %v704 = vadd.f32 %v672, 0.0
        %v705 = vadd.f32 %v673, 0.0
        %v706 = vadd.f32 %v674, 0.0
        %v707 = vadd.f32 %v675, 0.0
        %v708 = vadd.f32 %v676, 0.0
        %v709 = vadd.f32 %v677, 0.0
        %v710 = vadd.f32 %v678, 0.0
        %v711 = vadd.f32 %v679, 0.0
        %v712 = vadd.f32 %v680, 0.0
        %v713 = vadd.f32 %v681, 0.0
        %v714 = vadd.f32 %v682, 0.0
        %v715 = vadd.f32 %v683, 0.0
        %v716 = vadd.f32 %v684, 0.0
        %v717 = vadd.f32 %v685, 0.0
        %v718 = vadd.f32 %v686, 0.0
        %v719 = vadd.f32 %v687, 0.0
        %v720 = vadd.f32 %v688, 0.0
        %v721 = vadd.f32 %v689, 0.0
        %v722 = vadd.f32 %v690, 0.0
        %v723 = vadd.f32 %v691, 0.0
        %v724 = vadd.f32 %v692, 0.0
        %v725 = vadd.f32 %v693, 0.0
        %v726 = vadd.f32 %v694, 0.0
        %v727 = vadd.f32 %v695, 0.0
        %v728 = vadd.f32 %v696, 0.0
        %v729 = vadd.f32 %v697, 0.0
        %v730 = vld [vmem:[#allocation2 + $0x1] sm:$0xff]
        %v731 = vld [vmem:[#allocation2 + $0x9] sm:$0xff]
        %v732 = vld [vmem:[#allocation2 + $0x19] sm:$0xff]
        %v733 = vld [vmem:[#allocation2 + $0x21] sm:$0xff]
        %v734 = vld [vmem:[#allocation2 + $0x31] sm:$0xff]
        %v735 = vld [vmem:[#allocation2 + $0x39] sm:$0xff]
        %v736 = vld [vmem:[#allocation2 + $0x49] sm:$0xff]
        %v737 = vld [vmem:[#allocation2 + $0x51] sm:$0xff]
        %v738 = vld [vmem:[#allocation2 + $0x61] sm:$0xff]
        %v739 = vld [vmem:[#allocation2 + $0x69] sm:$0xff]
        %v740 = vld [vmem:[#allocation2 + $0x79] sm:$0xff]
        %v741 = vld [vmem:[#allocation2 + $0x81] sm:$0xff]
        %v742 = vld [vmem:[#allocation2 + $0x91] sm:$0xff]
        %v743 = vld [vmem:[#allocation2 + $0x99] sm:$0xff]
        %v744 = vld [vmem:[#allocation2 + $0xa9] sm:$0xff]
        %v745 = vld [vmem:[#allocation2 + $0xb1] sm:$0xff]
        %v746 = vld [vmem:[#allocation2 + $0xc1] sm:$0xff]
        %v747 = vld [vmem:[#allocation2 + $0xc9] sm:$0xff]
        %v748 = vld [vmem:[#allocation2 + $0xd9] sm:$0xff]
        %v749 = vld [vmem:[#allocation2 + $0xe1] sm:$0xff]
        %v750 = vld [vmem:[#allocation2 + $0xf1] sm:$0xff]
        %v751 = vld [vmem:[#allocation2 + $0xf9] sm:$0xff]
        %v752 = vld [vmem:[#allocation2 + $0x109] sm:$0xff]
        %v753 = vld [vmem:[#allocation2 + $0x111] sm:$0xff]
        %v754 = vld [vmem:[#allocation2 + $0x121] sm:$0xff]
        %v755 = vld [vmem:[#allocation2 + $0x129] sm:$0xff]
        %v756 = vld [vmem:[#allocation2 + $0x139] sm:$0xff]
        %v757 = vld [vmem:[#allocation2 + $0x141] sm:$0xff]
        %v758 = vld [vmem:[#allocation2 + $0x151] sm:$0xff]
        %v759 = vld [vmem:[#allocation2 + $0x159] sm:$0xff]
        %v760 = vld [vmem:[#allocation2 + $0x169] sm:$0xff]
        %v761 = vld [vmem:[#allocation2 + $0x171] sm:$0xff]
        %s762 = scalar_lea.vmem %s1, 1
        %v763 = vld [vmem:[%s762] sm:$0x1]
        %765 = vset.pattern.permute.xlu0 0
        %766 = vperm.xlu0 %765, %v730
        %v767 = vpop.permute.xlu0 %766
        %770 = vset.pattern.permute.xlu0 0
        %771 = vperm.xlu0 %770, %v731
        %v772 = vpop.permute.xlu0 %771
        %775 = vset.pattern.permute.xlu0 0
        %776 = vperm.xlu0 %775, %v732
        %v777 = vpop.permute.xlu0 %776
        %780 = vset.pattern.permute.xlu0 0
        %781 = vperm.xlu0 %780, %v733
        %v782 = vpop.permute.xlu0 %781
        %785 = vset.pattern.permute.xlu0 0
        %786 = vperm.xlu0 %785, %v734
        %v787 = vpop.permute.xlu0 %786
        %790 = vset.pattern.permute.xlu0 0
        %791 = vperm.xlu0 %790, %v735
        %v792 = vpop.permute.xlu0 %791
        %795 = vset.pattern.permute.xlu0 0
        %796 = vperm.xlu0 %795, %v736
        %v797 = vpop.permute.xlu0 %796
        %800 = vset.pattern.permute.xlu0 0
        %801 = vperm.xlu0 %800, %v737
        %v802 = vpop.permute.xlu0 %801
        %805 = vset.pattern.permute.xlu0 0
        %806 = vperm.xlu0 %805, %v738
        %v807 = vpop.permute.xlu0 %806
        %810 = vset.pattern.permute.xlu0 0
        %811 = vperm.xlu0 %810, %v739
        %v812 = vpop.permute.xlu0 %811
        %815 = vset.pattern.permute.xlu0 0
        %816 = vperm.xlu0 %815, %v740
        %v817 = vpop.permute.xlu0 %816
        %820 = vset.pattern.permute.xlu0 0
        %821 = vperm.xlu0 %820, %v741
        %v822 = vpop.permute.xlu0 %821
        %825 = vset.pattern.permute.xlu0 0
        %826 = vperm.xlu0 %825, %v742
        %v827 = vpop.permute.xlu0 %826
        %830 = vset.pattern.permute.xlu0 0
        %831 = vperm.xlu0 %830, %v743
        %v832 = vpop.permute.xlu0 %831
        %835 = vset.pattern.permute.xlu0 0
        %836 = vperm.xlu0 %835, %v744
        %v837 = vpop.permute.xlu0 %836
        %840 = vset.pattern.permute.xlu0 0
        %841 = vperm.xlu0 %840, %v745
        %v842 = vpop.permute.xlu0 %841
        %845 = vset.pattern.permute.xlu0 0
        %846 = vperm.xlu0 %845, %v746
        %v847 = vpop.permute.xlu0 %846
        %850 = vset.pattern.permute.xlu0 0
        %851 = vperm.xlu0 %850, %v747
        %v852 = vpop.permute.xlu0 %851
        %855 = vset.pattern.permute.xlu0 0
        %856 = vperm.xlu0 %855, %v748
        %v857 = vpop.permute.xlu0 %856
        %860 = vset.pattern.permute.xlu0 0
        %861 = vperm.xlu0 %860, %v749
        %v862 = vpop.permute.xlu0 %861
        %865 = vset.pattern.permute.xlu0 0
        %866 = vperm.xlu0 %865, %v750
        %v867 = vpop.permute.xlu0 %866
        %870 = vset.pattern.permute.xlu0 0
        %871 = vperm.xlu0 %870, %v751
        %v872 = vpop.permute.xlu0 %871
        %875 = vset.pattern.permute.xlu0 0
        %876 = vperm.xlu0 %875, %v752
        %v877 = vpop.permute.xlu0 %876
        %880 = vset.pattern.permute.xlu0 0
        %881 = vperm.xlu0 %880, %v753
        %v882 = vpop.permute.xlu0 %881
        %885 = vset.pattern.permute.xlu0 0
        %886 = vperm.xlu0 %885, %v754
        %v887 = vpop.permute.xlu0 %886
        %890 = vset.pattern.permute.xlu0 0
        %891 = vperm.xlu0 %890, %v755
        %v892 = vpop.permute.xlu0 %891
        %895 = vset.pattern.permute.xlu0 0
        %896 = vperm.xlu0 %895, %v756
        %v897 = vpop.permute.xlu0 %896
        %900 = vset.pattern.permute.xlu0 0
        %901 = vperm.xlu0 %900, %v757
        %v902 = vpop.permute.xlu0 %901
        %905 = vset.pattern.permute.xlu0 0
        %906 = vperm.xlu0 %905, %v758
        %v907 = vpop.permute.xlu0 %906
        %910 = vset.pattern.permute.xlu0 0
        %911 = vperm.xlu0 %910, %v759
        %v912 = vpop.permute.xlu0 %911
        %915 = vset.pattern.permute.xlu0 0
        %916 = vperm.xlu0 %915, %v760
        %v917 = vpop.permute.xlu0 %916
        %920 = vset.pattern.permute.xlu0 0
        %921 = vperm.xlu0 %920, %v761
        %v922 = vpop.permute.xlu0 %921
        %v925 = vlaneseq
        %v926 = vshrl.u32 %v925, 7
        %v927 = vsub.s32 0, %v926
        %v928 = vrot.slane %v763, %v927
        %v930 = vmul.f32 %v767, %v928
        %v931 = vmul.f32 %v772, %v928
        %v932 = vmul.f32 %v777, %v928
        %v933 = vmul.f32 %v782, %v928
        %v934 = vmul.f32 %v787, %v928
        %v935 = vmul.f32 %v792, %v928
        %v936 = vmul.f32 %v797, %v928
        %v937 = vmul.f32 %v802, %v928
        %v938 = vmul.f32 %v807, %v928
        %v939 = vmul.f32 %v812, %v928
        %v940 = vmul.f32 %v817, %v928
        %v941 = vmul.f32 %v822, %v928
        %v942 = vmul.f32 %v827, %v928
        %v943 = vmul.f32 %v832, %v928
        %v944 = vmul.f32 %v837, %v928
        %v945 = vmul.f32 %v842, %v928
        %v946 = vmul.f32 %v847, %v928
        %v947 = vmul.f32 %v852, %v928
        %v948 = vmul.f32 %v857, %v928
        %v949 = vmul.f32 %v862, %v928
        %v950 = vmul.f32 %v867, %v928
        %v951 = vmul.f32 %v872, %v928
        %v952 = vmul.f32 %v877, %v928
        %v953 = vmul.f32 %v882, %v928
        %v954 = vmul.f32 %v887, %v928
        %v955 = vmul.f32 %v892, %v928
        %v956 = vmul.f32 %v897, %v928
        %v957 = vmul.f32 %v902, %v928
        %v958 = vmul.f32 %v907, %v928
        %v959 = vmul.f32 %v912, %v928
        %v960 = vmul.f32 %v917, %v928
        %v961 = vmul.f32 %v922, %v928
        %v962 = vadd.f32 %v698, %v930
        %v963 = vadd.f32 %v699, %v931
        %v964 = vadd.f32 %v700, %v932
        %v965 = vadd.f32 %v701, %v933
        %v966 = vadd.f32 %v702, %v934
        %v967 = vadd.f32 %v703, %v935
        %v968 = vadd.f32 %v704, %v936
        %v969 = vadd.f32 %v705, %v937
        %v970 = vadd.f32 %v706, %v938
        %v971 = vadd.f32 %v707, %v939
        %v972 = vadd.f32 %v708, %v940
        %v973 = vadd.f32 %v709, %v941
        %v974 = vadd.f32 %v710, %v942
        %v975 = vadd.f32 %v711, %v943
        %v976 = vadd.f32 %v712, %v944
        %v977 = vadd.f32 %v713, %v945
        %v978 = vadd.f32 %v714, %v946
        %v979 = vadd.f32 %v715, %v947
        %v980 = vadd.f32 %v716, %v948
        %v981 = vadd.f32 %v717, %v949
        %v982 = vadd.f32 %v718, %v950
        %v983 = vadd.f32 %v719, %v951
        %v984 = vadd.f32 %v720, %v952
        %v985 = vadd.f32 %v721, %v953
        %v986 = vadd.f32 %v722, %v954
        %v987 = vadd.f32 %v723, %v955
        %v988 = vadd.f32 %v724, %v956
        %v989 = vadd.f32 %v725, %v957
        %v990 = vadd.f32 %v726, %v958
        %v991 = vadd.f32 %v727, %v959
        %v992 = vadd.f32 %v728, %v960
        %v993 = vadd.f32 %v729, %v961
        %v994 = vld [vmem:[#allocation2 + $0x2] sm:$0xff]
        %v995 = vld [vmem:[#allocation2 + $0xa] sm:$0xff]
        %v996 = vld [vmem:[#allocation2 + $0x1a] sm:$0xff]
        %v997 = vld [vmem:[#allocation2 + $0x22] sm:$0xff]
        %v998 = vld [vmem:[#allocation2 + $0x32] sm:$0xff]
        %v999 = vld [vmem:[#allocation2 + $0x3a] sm:$0xff]
        %v1000 = vld [vmem:[#allocation2 + $0x4a] sm:$0xff]
        %v1001 = vld [vmem:[#allocation2 + $0x52] sm:$0xff]
        %v1002 = vld [vmem:[#allocation2 + $0x62] sm:$0xff]
        %v1003 = vld [vmem:[#allocation2 + $0x6a] sm:$0xff]
        %v1004 = vld [vmem:[#allocation2 + $0x7a] sm:$0xff]
        %v1005 = vld [vmem:[#allocation2 + $0x82] sm:$0xff]
        %v1006 = vld [vmem:[#allocation2 + $0x92] sm:$0xff]
        %v1007 = vld [vmem:[#allocation2 + $0x9a] sm:$0xff]
        %v1008 = vld [vmem:[#allocation2 + $0xaa] sm:$0xff]
        %v1009 = vld [vmem:[#allocation2 + $0xb2] sm:$0xff]
        %v1010 = vld [vmem:[#allocation2 + $0xc2] sm:$0xff]
        %v1011 = vld [vmem:[#allocation2 + $0xca] sm:$0xff]
        %v1012 = vld [vmem:[#allocation2 + $0xda] sm:$0xff]
        %v1013 = vld [vmem:[#allocation2 + $0xe2] sm:$0xff]
        %v1014 = vld [vmem:[#allocation2 + $0xf2] sm:$0xff]
        %v1015 = vld [vmem:[#allocation2 + $0xfa] sm:$0xff]
        %v1016 = vld [vmem:[#allocation2 + $0x10a] sm:$0xff]
        %v1017 = vld [vmem:[#allocation2 + $0x112] sm:$0xff]
        %v1018 = vld [vmem:[#allocation2 + $0x122] sm:$0xff]
        %v1019 = vld [vmem:[#allocation2 + $0x12a] sm:$0xff]
        %v1020 = vld [vmem:[#allocation2 + $0x13a] sm:$0xff]
        %v1021 = vld [vmem:[#allocation2 + $0x142] sm:$0xff]
        %v1022 = vld [vmem:[#allocation2 + $0x152] sm:$0xff]
        %v1023 = vld [vmem:[#allocation2 + $0x15a] sm:$0xff]
        %v1024 = vld [vmem:[#allocation2 + $0x16a] sm:$0xff]
        %v1025 = vld [vmem:[#allocation2 + $0x172] sm:$0xff]
        %s1026 = scalar_lea.vmem %s1, 2
        %v1027 = vld [vmem:[%s1026] sm:$0x1]
        %1029 = vset.pattern.permute.xlu0 0
        %1030 = vperm.xlu0 %1029, %v994
        %v1031 = vpop.permute.xlu0 %1030
        %1034 = vset.pattern.permute.xlu0 0
        %1035 = vperm.xlu0 %1034, %v995
        %v1036 = vpop.permute.xlu0 %1035
        %1039 = vset.pattern.permute.xlu0 0
        %1040 = vperm.xlu0 %1039, %v996
        %v1041 = vpop.permute.xlu0 %1040
        %1044 = vset.pattern.permute.xlu0 0
        %1045 = vperm.xlu0 %1044, %v997
        %v1046 = vpop.permute.xlu0 %1045
        %1049 = vset.pattern.permute.xlu0 0
        %1050 = vperm.xlu0 %1049, %v998
        %v1051 = vpop.permute.xlu0 %1050
        %1054 = vset.pattern.permute.xlu0 0
        %1055 = vperm.xlu0 %1054, %v999
        %v1056 = vpop.permute.xlu0 %1055
        %1059 = vset.pattern.permute.xlu0 0
        %1060 = vperm.xlu0 %1059, %v1000
        %v1061 = vpop.permute.xlu0 %1060
        %1064 = vset.pattern.permute.xlu0 0
        %1065 = vperm.xlu0 %1064, %v1001
        %v1066 = vpop.permute.xlu0 %1065
        %1069 = vset.pattern.permute.xlu0 0
        %1070 = vperm.xlu0 %1069, %v1002
        %v1071 = vpop.permute.xlu0 %1070
        %1074 = vset.pattern.permute.xlu0 0
        %1075 = vperm.xlu0 %1074, %v1003
        %v1076 = vpop.permute.xlu0 %1075
        %1079 = vset.pattern.permute.xlu0 0
        %1080 = vperm.xlu0 %1079, %v1004
        %v1081 = vpop.permute.xlu0 %1080
        %1084 = vset.pattern.permute.xlu0 0
        %1085 = vperm.xlu0 %1084, %v1005
        %v1086 = vpop.permute.xlu0 %1085
        %1089 = vset.pattern.permute.xlu0 0
        %1090 = vperm.xlu0 %1089, %v1006
        %v1091 = vpop.permute.xlu0 %1090
        %1094 = vset.pattern.permute.xlu0 0
        %1095 = vperm.xlu0 %1094, %v1007
        %v1096 = vpop.permute.xlu0 %1095
        %1099 = vset.pattern.permute.xlu0 0
        %1100 = vperm.xlu0 %1099, %v1008
        %v1101 = vpop.permute.xlu0 %1100
        %1104 = vset.pattern.permute.xlu0 0
        %1105 = vperm.xlu0 %1104, %v1009
        %v1106 = vpop.permute.xlu0 %1105
        %1109 = vset.pattern.permute.xlu0 0
        %1110 = vperm.xlu0 %1109, %v1010
        %v1111 = vpop.permute.xlu0 %1110
        %1114 = vset.pattern.permute.xlu0 0
        %1115 = vperm.xlu0 %1114, %v1011
        %v1116 = vpop.permute.xlu0 %1115
        %1119 = vset.pattern.permute.xlu0 0
        %1120 = vperm.xlu0 %1119, %v1012
        %v1121 = vpop.permute.xlu0 %1120
        %1124 = vset.pattern.permute.xlu0 0
        %1125 = vperm.xlu0 %1124, %v1013
        %v1126 = vpop.permute.xlu0 %1125
        %1129 = vset.pattern.permute.xlu0 0
        %1130 = vperm.xlu0 %1129, %v1014
        %v1131 = vpop.permute.xlu0 %1130
        %1134 = vset.pattern.permute.xlu0 0
        %1135 = vperm.xlu0 %1134, %v1015
        %v1136 = vpop.permute.xlu0 %1135
        %1139 = vset.pattern.permute.xlu0 0
        %1140 = vperm.xlu0 %1139, %v1016
        %v1141 = vpop.permute.xlu0 %1140
        %1144 = vset.pattern.permute.xlu0 0
        %1145 = vperm.xlu0 %1144, %v1017
        %v1146 = vpop.permute.xlu0 %1145
        %1149 = vset.pattern.permute.xlu0 0
        %1150 = vperm.xlu0 %1149, %v1018
        %v1151 = vpop.permute.xlu0 %1150
        %1154 = vset.pattern.permute.xlu0 0
        %1155 = vperm.xlu0 %1154, %v1019
        %v1156 = vpop.permute.xlu0 %1155
        %1159 = vset.pattern.permute.xlu0 0
        %1160 = vperm.xlu0 %1159, %v1020
        %v1161 = vpop.permute.xlu0 %1160
        %1164 = vset.pattern.permute.xlu0 0
        %1165 = vperm.xlu0 %1164, %v1021
        %v1166 = vpop.permute.xlu0 %1165
        %1169 = vset.pattern.permute.xlu0 0
        %1170 = vperm.xlu0 %1169, %v1022
        %v1171 = vpop.permute.xlu0 %1170
        %1174 = vset.pattern.permute.xlu0 0
        %1175 = vperm.xlu0 %1174, %v1023
        %v1176 = vpop.permute.xlu0 %1175
        %1179 = vset.pattern.permute.xlu0 0
        %1180 = vperm.xlu0 %1179, %v1024
        %v1181 = vpop.permute.xlu0 %1180
        %1184 = vset.pattern.permute.xlu0 0
        %1185 = vperm.xlu0 %1184, %v1025
        %v1186 = vpop.permute.xlu0 %1185
        %v1189 = vlaneseq
        %v1190 = vshrl.u32 %v1189, 7
        %v1191 = vsub.s32 0, %v1190
        %v1192 = vrot.slane %v1027, %v1191
        %v1194 = vmul.f32 %v1031, %v1192
        %v1195 = vmul.f32 %v1036, %v1192
        %v1196 = vmul.f32 %v1041, %v1192
        %v1197 = vmul.f32 %v1046, %v1192
        %v1198 = vmul.f32 %v1051, %v1192
        %v1199 = vmul.f32 %v1056, %v1192
        %v1200 = vmul.f32 %v1061, %v1192
        %v1201 = vmul.f32 %v1066, %v1192
        %v1202 = vmul.f32 %v1071, %v1192
        %v1203 = vmul.f32 %v1076, %v1192
        %v1204 = vmul.f32 %v1081, %v1192
        %v1205 = vmul.f32 %v1086, %v1192
        %v1206 = vmul.f32 %v1091, %v1192
        %v1207 = vmul.f32 %v1096, %v1192
        %v1208 = vmul.f32 %v1101, %v1192
        %v1209 = vmul.f32 %v1106, %v1192
        %v1210 = vmul.f32 %v1111, %v1192
        %v1211 = vmul.f32 %v1116, %v1192
        %v1212 = vmul.f32 %v1121, %v1192
        %v1213 = vmul.f32 %v1126, %v1192
        %v1214 = vmul.f32 %v1131, %v1192
        %v1215 = vmul.f32 %v1136, %v1192
        %v1216 = vmul.f32 %v1141, %v1192
        %v1217 = vmul.f32 %v1146, %v1192
        %v1218 = vmul.f32 %v1151, %v1192
        %v1219 = vmul.f32 %v1156, %v1192
        %v1220 = vmul.f32 %v1161, %v1192
        %v1221 = vmul.f32 %v1166, %v1192
        %v1222 = vmul.f32 %v1171, %v1192
        %v1223 = vmul.f32 %v1176, %v1192
        %v1224 = vmul.f32 %v1181, %v1192
        %v1225 = vmul.f32 %v1186, %v1192
        %v1226 = vadd.f32 %v962, %v1194
        %v1227 = vadd.f32 %v963, %v1195
        %v1228 = vadd.f32 %v964, %v1196
        %v1229 = vadd.f32 %v965, %v1197
        %v1230 = vadd.f32 %v966, %v1198
        %v1231 = vadd.f32 %v967, %v1199
        %v1232 = vadd.f32 %v968, %v1200
        %v1233 = vadd.f32 %v969, %v1201
        %v1234 = vadd.f32 %v970, %v1202
        %v1235 = vadd.f32 %v971, %v1203
        %v1236 = vadd.f32 %v972, %v1204
        %v1237 = vadd.f32 %v973, %v1205
        %v1238 = vadd.f32 %v974, %v1206
        %v1239 = vadd.f32 %v975, %v1207
        %v1240 = vadd.f32 %v976, %v1208
        %v1241 = vadd.f32 %v977, %v1209
        %v1242 = vadd.f32 %v978, %v1210
        %v1243 = vadd.f32 %v979, %v1211
        %v1244 = vadd.f32 %v980, %v1212
        %v1245 = vadd.f32 %v981, %v1213
        %v1246 = vadd.f32 %v982, %v1214
        %v1247 = vadd.f32 %v983, %v1215
        %v1248 = vadd.f32 %v984, %v1216
        %v1249 = vadd.f32 %v985, %v1217
        %v1250 = vadd.f32 %v986, %v1218
        %v1251 = vadd.f32 %v987, %v1219
        %v1252 = vadd.f32 %v988, %v1220
        %v1253 = vadd.f32 %v989, %v1221
        %v1254 = vadd.f32 %v990, %v1222
        %v1255 = vadd.f32 %v991, %v1223
        %v1256 = vadd.f32 %v992, %v1224
        %v1257 = vadd.f32 %v993, %v1225
        %v1258 = vld [vmem:[%s434] sm:$0xff]
        %v1259 = vld [vmem:[%s434 + $0x8] sm:$0xff]
        %v1260 = vld [vmem:[%s434 + $0x18] sm:$0xff]
        %v1261 = vld [vmem:[%s434 + $0x20] sm:$0xff]
        %v1262 = vld [vmem:[%s434 + $0x30] sm:$0xff]
        %v1263 = vld [vmem:[%s434 + $0x38] sm:$0xff]
        %v1264 = vld [vmem:[%s434 + $0x48] sm:$0xff]
        %v1265 = vld [vmem:[%s434 + $0x50] sm:$0xff]
        %v1266 = vld [vmem:[%s434 + $0x60] sm:$0xff]
        %v1267 = vld [vmem:[%s434 + $0x68] sm:$0xff]
        %v1268 = vld [vmem:[%s434 + $0x78] sm:$0xff]
        %v1269 = vld [vmem:[%s434 + $0x80] sm:$0xff]
        %v1270 = vld [vmem:[%s434 + $0x90] sm:$0xff]
        %v1271 = vld [vmem:[%s434 + $0x98] sm:$0xff]
        %v1272 = vld [vmem:[%s434 + $0xa8] sm:$0xff]
        %v1273 = vld [vmem:[%s434 + $0xb0] sm:$0xff]
        %v1274 = vld [vmem:[%s434 + $0xc0] sm:$0xff]
        %v1275 = vld [vmem:[%s434 + $0xc8] sm:$0xff]
        %v1276 = vld [vmem:[%s434 + $0xd8] sm:$0xff]
        %v1277 = vld [vmem:[%s434 + $0xe0] sm:$0xff]
        %v1278 = vld [vmem:[%s434 + $0xf0] sm:$0xff]
        %v1279 = vld [vmem:[%s434 + $0xf8] sm:$0xff]
        %v1280 = vld [vmem:[%s434 + $0x108] sm:$0xff]
        %v1281 = vld [vmem:[%s434 + $0x110] sm:$0xff]
        %v1282 = vld [vmem:[%s434 + $0x120] sm:$0xff]
        %v1283 = vld [vmem:[%s434 + $0x128] sm:$0xff]
        %v1284 = vld [vmem:[%s434 + $0x138] sm:$0xff]
        %v1285 = vld [vmem:[%s434 + $0x140] sm:$0xff]
        %v1286 = vld [vmem:[%s434 + $0x150] sm:$0xff]
        %v1287 = vld [vmem:[%s434 + $0x158] sm:$0xff]
        %v1288 = vld [vmem:[%s434 + $0x168] sm:$0xff]
        %v1289 = vld [vmem:[%s434 + $0x170] sm:$0xff]
        %s1290 = scalar_lea.vmem %s1, 3
        %v1291 = vld [vmem:[%s1290] sm:$0x1]
        %1293 = vset.pattern.permute.xlu0 0
        %1294 = vperm.xlu0 %1293, %v1258
        %v1295 = vpop.permute.xlu0 %1294
        %1298 = vset.pattern.permute.xlu0 0
        %1299 = vperm.xlu0 %1298, %v1259
        %v1300 = vpop.permute.xlu0 %1299
        %1303 = vset.pattern.permute.xlu0 0
        %1304 = vperm.xlu0 %1303, %v1260
        %v1305 = vpop.permute.xlu0 %1304
        %1308 = vset.pattern.permute.xlu0 0
        %1309 = vperm.xlu0 %1308, %v1261
        %v1310 = vpop.permute.xlu0 %1309
        %1313 = vset.pattern.permute.xlu0 0
        %1314 = vperm.xlu0 %1313, %v1262
        %v1315 = vpop.permute.xlu0 %1314
        %1318 = vset.pattern.permute.xlu0 0
        %1319 = vperm.xlu0 %1318, %v1263
        %v1320 = vpop.permute.xlu0 %1319
        %1323 = vset.pattern.permute.xlu0 0
        %1324 = vperm.xlu0 %1323, %v1264
        %v1325 = vpop.permute.xlu0 %1324
        %1328 = vset.pattern.permute.xlu0 0
        %1329 = vperm.xlu0 %1328, %v1265
        %v1330 = vpop.permute.xlu0 %1329
        %1333 = vset.pattern.permute.xlu0 0
        %1334 = vperm.xlu0 %1333, %v1266
        %v1335 = vpop.permute.xlu0 %1334
        %1338 = vset.pattern.permute.xlu0 0
        %1339 = vperm.xlu0 %1338, %v1267
        %v1340 = vpop.permute.xlu0 %1339
        %1343 = vset.pattern.permute.xlu0 0
        %1344 = vperm.xlu0 %1343, %v1268
        %v1345 = vpop.permute.xlu0 %1344
        %1348 = vset.pattern.permute.xlu0 0
        %1349 = vperm.xlu0 %1348, %v1269
        %v1350 = vpop.permute.xlu0 %1349
        %1353 = vset.pattern.permute.xlu0 0
        %1354 = vperm.xlu0 %1353, %v1270
        %v1355 = vpop.permute.xlu0 %1354
        %1358 = vset.pattern.permute.xlu0 0
        %1359 = vperm.xlu0 %1358, %v1271
        %v1360 = vpop.permute.xlu0 %1359
        %1363 = vset.pattern.permute.xlu0 0
        %1364 = vperm.xlu0 %1363, %v1272
        %v1365 = vpop.permute.xlu0 %1364
        %1368 = vset.pattern.permute.xlu0 0
        %1369 = vperm.xlu0 %1368, %v1273
        %v1370 = vpop.permute.xlu0 %1369
        %1373 = vset.pattern.permute.xlu0 0
        %1374 = vperm.xlu0 %1373, %v1274
        %v1375 = vpop.permute.xlu0 %1374
        %1378 = vset.pattern.permute.xlu0 0
        %1379 = vperm.xlu0 %1378, %v1275
        %v1380 = vpop.permute.xlu0 %1379
        %1383 = vset.pattern.permute.xlu0 0
        %1384 = vperm.xlu0 %1383, %v1276
        %v1385 = vpop.permute.xlu0 %1384
        %1388 = vset.pattern.permute.xlu0 0
        %1389 = vperm.xlu0 %1388, %v1277
        %v1390 = vpop.permute.xlu0 %1389
        %1393 = vset.pattern.permute.xlu0 0
        %1394 = vperm.xlu0 %1393, %v1278
        %v1395 = vpop.permute.xlu0 %1394
        %1398 = vset.pattern.permute.xlu0 0
        %1399 = vperm.xlu0 %1398, %v1279
        %v1400 = vpop.permute.xlu0 %1399
        %1403 = vset.pattern.permute.xlu0 0
        %1404 = vperm.xlu0 %1403, %v1280
        %v1405 = vpop.permute.xlu0 %1404
        %1408 = vset.pattern.permute.xlu0 0
        %1409 = vperm.xlu0 %1408, %v1281
        %v1410 = vpop.permute.xlu0 %1409
        %1413 = vset.pattern.permute.xlu0 0
        %1414 = vperm.xlu0 %1413, %v1282
        %v1415 = vpop.permute.xlu0 %1414
        %1418 = vset.pattern.permute.xlu0 0
        %1419 = vperm.xlu0 %1418, %v1283
        %v1420 = vpop.permute.xlu0 %1419
        %1423 = vset.pattern.permute.xlu0 0
        %1424 = vperm.xlu0 %1423, %v1284
        %v1425 = vpop.permute.xlu0 %1424
        %1428 = vset.pattern.permute.xlu0 0
        %1429 = vperm.xlu0 %1428, %v1285
        %v1430 = vpop.permute.xlu0 %1429
        %1433 = vset.pattern.permute.xlu0 0
        %1434 = vperm.xlu0 %1433, %v1286
        %v1435 = vpop.permute.xlu0 %1434
        %1438 = vset.pattern.permute.xlu0 0
        %1439 = vperm.xlu0 %1438, %v1287
        %v1440 = vpop.permute.xlu0 %1439
        %1443 = vset.pattern.permute.xlu0 0
        %1444 = vperm.xlu0 %1443, %v1288
        %v1445 = vpop.permute.xlu0 %1444
        %1448 = vset.pattern.permute.xlu0 0
        %1449 = vperm.xlu0 %1448, %v1289
        %v1450 = vpop.permute.xlu0 %1449
        %v1453 = vlaneseq
        %v1454 = vshrl.u32 %v1453, 7
        %v1455 = vsub.s32 0, %v1454
        %v1456 = vrot.slane %v1291, %v1455
        %v1458 = vmul.f32 %v1295, %v1456
        %v1459 = vmul.f32 %v1300, %v1456
        %v1460 = vmul.f32 %v1305, %v1456
        %v1461 = vmul.f32 %v1310, %v1456
        %v1462 = vmul.f32 %v1315, %v1456
        %v1463 = vmul.f32 %v1320, %v1456
        %v1464 = vmul.f32 %v1325, %v1456
        %v1465 = vmul.f32 %v1330, %v1456
        %v1466 = vmul.f32 %v1335, %v1456
        %v1467 = vmul.f32 %v1340, %v1456
        %v1468 = vmul.f32 %v1345, %v1456
        %v1469 = vmul.f32 %v1350, %v1456
        %v1470 = vmul.f32 %v1355, %v1456
        %v1471 = vmul.f32 %v1360, %v1456
        %v1472 = vmul.f32 %v1365, %v1456
        %v1473 = vmul.f32 %v1370, %v1456
        %v1474 = vmul.f32 %v1375, %v1456
        %v1475 = vmul.f32 %v1380, %v1456
        %v1476 = vmul.f32 %v1385, %v1456
        %v1477 = vmul.f32 %v1390, %v1456
        %v1478 = vmul.f32 %v1395, %v1456
        %v1479 = vmul.f32 %v1400, %v1456
        %v1480 = vmul.f32 %v1405, %v1456
        %v1481 = vmul.f32 %v1410, %v1456
        %v1482 = vmul.f32 %v1415, %v1456
        %v1483 = vmul.f32 %v1420, %v1456
        %v1484 = vmul.f32 %v1425, %v1456
        %v1485 = vmul.f32 %v1430, %v1456
        %v1486 = vmul.f32 %v1435, %v1456
        %v1487 = vmul.f32 %v1440, %v1456
        %v1488 = vmul.f32 %v1445, %v1456
        %v1489 = vmul.f32 %v1450, %v1456
        %v1490 = vadd.f32 %v1226, %v1458
        %v1491 = vadd.f32 %v1227, %v1459
        %v1492 = vadd.f32 %v1228, %v1460
        %v1493 = vadd.f32 %v1229, %v1461
        %v1494 = vadd.f32 %v1230, %v1462
        %v1495 = vadd.f32 %v1231, %v1463
        %v1496 = vadd.f32 %v1232, %v1464
        %v1497 = vadd.f32 %v1233, %v1465
        %v1498 = vadd.f32 %v1234, %v1466
        %v1499 = vadd.f32 %v1235, %v1467
        %v1500 = vadd.f32 %v1236, %v1468
        %v1501 = vadd.f32 %v1237, %v1469
        %v1502 = vadd.f32 %v1238, %v1470
        %v1503 = vadd.f32 %v1239, %v1471
        %v1504 = vadd.f32 %v1240, %v1472
        %v1505 = vadd.f32 %v1241, %v1473
        %v1506 = vadd.f32 %v1242, %v1474
        %v1507 = vadd.f32 %v1243, %v1475
        %v1508 = vadd.f32 %v1244, %v1476
        %v1509 = vadd.f32 %v1245, %v1477
        %v1510 = vadd.f32 %v1246, %v1478
        %v1511 = vadd.f32 %v1247, %v1479
        %v1512 = vadd.f32 %v1248, %v1480
        %v1513 = vadd.f32 %v1249, %v1481
        %v1514 = vadd.f32 %v1250, %v1482
        %v1515 = vadd.f32 %v1251, %v1483
        %v1516 = vadd.f32 %v1252, %v1484
        %v1517 = vadd.f32 %v1253, %v1485
        %v1518 = vadd.f32 %v1254, %v1486
        %v1519 = vadd.f32 %v1255, %v1487
        %v1520 = vadd.f32 %v1256, %v1488
        %v1521 = vadd.f32 %v1257, %v1489
        %v1522 = vld [vmem:[%s434 + $0x1] sm:$0xff]
        %v1523 = vld [vmem:[%s434 + $0x9] sm:$0xff]
        %v1524 = vld [vmem:[%s434 + $0x19] sm:$0xff]
        %v1525 = vld [vmem:[%s434 + $0x21] sm:$0xff]
        %v1526 = vld [vmem:[%s434 + $0x31] sm:$0xff]
        %v1527 = vld [vmem:[%s434 + $0x39] sm:$0xff]
        %v1528 = vld [vmem:[%s434 + $0x49] sm:$0xff]
        %v1529 = vld [vmem:[%s434 + $0x51] sm:$0xff]
        %v1530 = vld [vmem:[%s434 + $0x61] sm:$0xff]
        %v1531 = vld [vmem:[%s434 + $0x69] sm:$0xff]
        %v1532 = vld [vmem:[%s434 + $0x79] sm:$0xff]
        %v1533 = vld [vmem:[%s434 + $0x81] sm:$0xff]
        %v1534 = vld [vmem:[%s434 + $0x91] sm:$0xff]
        %v1535 = vld [vmem:[%s434 + $0x99] sm:$0xff]
        %v1536 = vld [vmem:[%s434 + $0xa9] sm:$0xff]
        %v1537 = vld [vmem:[%s434 + $0xb1] sm:$0xff]
        %v1538 = vld [vmem:[%s434 + $0xc1] sm:$0xff]
        %v1539 = vld [vmem:[%s434 + $0xc9] sm:$0xff]
        %v1540 = vld [vmem:[%s434 + $0xd9] sm:$0xff]
        %v1541 = vld [vmem:[%s434 + $0xe1] sm:$0xff]
        %v1542 = vld [vmem:[%s434 + $0xf1] sm:$0xff]
        %v1543 = vld [vmem:[%s434 + $0xf9] sm:$0xff]
        %v1544 = vld [vmem:[%s434 + $0x109] sm:$0xff]
        %v1545 = vld [vmem:[%s434 + $0x111] sm:$0xff]
        %v1546 = vld [vmem:[%s434 + $0x121] sm:$0xff]
        %v1547 = vld [vmem:[%s434 + $0x129] sm:$0xff]
        %v1548 = vld [vmem:[%s434 + $0x139] sm:$0xff]
        %v1549 = vld [vmem:[%s434 + $0x141] sm:$0xff]
        %v1550 = vld [vmem:[%s434 + $0x151] sm:$0xff]
        %v1551 = vld [vmem:[%s434 + $0x159] sm:$0xff]
        %v1552 = vld [vmem:[%s434 + $0x169] sm:$0xff]
        %v1553 = vld [vmem:[%s434 + $0x171] sm:$0xff]
        %s1554 = scalar_lea.vmem %s1, 4
        %v1555 = vld [vmem:[%s1554] sm:$0x1]
        %1557 = vset.pattern.permute.xlu0 0
        %1558 = vperm.xlu0 %1557, %v1522
        %v1559 = vpop.permute.xlu0 %1558
        %1562 = vset.pattern.permute.xlu0 0
        %1563 = vperm.xlu0 %1562, %v1523
        %v1564 = vpop.permute.xlu0 %1563
        %1567 = vset.pattern.permute.xlu0 0
        %1568 = vperm.xlu0 %1567, %v1524
        %v1569 = vpop.permute.xlu0 %1568
        %1572 = vset.pattern.permute.xlu0 0
        %1573 = vperm.xlu0 %1572, %v1525
        %v1574 = vpop.permute.xlu0 %1573
        %1577 = vset.pattern.permute.xlu0 0
        %1578 = vperm.xlu0 %1577, %v1526
        %v1579 = vpop.permute.xlu0 %1578
        %1582 = vset.pattern.permute.xlu0 0
        %1583 = vperm.xlu0 %1582, %v1527
        %v1584 = vpop.permute.xlu0 %1583
        %1587 = vset.pattern.permute.xlu0 0
        %1588 = vperm.xlu0 %1587, %v1528
        %v1589 = vpop.permute.xlu0 %1588
        %1592 = vset.pattern.permute.xlu0 0
        %1593 = vperm.xlu0 %1592, %v1529
        %v1594 = vpop.permute.xlu0 %1593
        %1597 = vset.pattern.permute.xlu0 0
        %1598 = vperm.xlu0 %1597, %v1530
        %v1599 = vpop.permute.xlu0 %1598
        %1602 = vset.pattern.permute.xlu0 0
        %1603 = vperm.xlu0 %1602, %v1531
        %v1604 = vpop.permute.xlu0 %1603
        %1607 = vset.pattern.permute.xlu0 0
        %1608 = vperm.xlu0 %1607, %v1532
        %v1609 = vpop.permute.xlu0 %1608
        %1612 = vset.pattern.permute.xlu0 0
        %1613 = vperm.xlu0 %1612, %v1533
        %v1614 = vpop.permute.xlu0 %1613
        %1617 = vset.pattern.permute.xlu0 0
        %1618 = vperm.xlu0 %1617, %v1534
        %v1619 = vpop.permute.xlu0 %1618
        %1622 = vset.pattern.permute.xlu0 0
        %1623 = vperm.xlu0 %1622, %v1535
        %v1624 = vpop.permute.xlu0 %1623
        %1627 = vset.pattern.permute.xlu0 0
        %1628 = vperm.xlu0 %1627, %v1536
        %v1629 = vpop.permute.xlu0 %1628
        %1632 = vset.pattern.permute.xlu0 0
        %1633 = vperm.xlu0 %1632, %v1537
        %v1634 = vpop.permute.xlu0 %1633
        %1637 = vset.pattern.permute.xlu0 0
        %1638 = vperm.xlu0 %1637, %v1538
        %v1639 = vpop.permute.xlu0 %1638
        %1642 = vset.pattern.permute.xlu0 0
        %1643 = vperm.xlu0 %1642, %v1539
        %v1644 = vpop.permute.xlu0 %1643
        %1647 = vset.pattern.permute.xlu0 0
        %1648 = vperm.xlu0 %1647, %v1540
        %v1649 = vpop.permute.xlu0 %1648
        %1652 = vset.pattern.permute.xlu0 0
        %1653 = vperm.xlu0 %1652, %v1541
        %v1654 = vpop.permute.xlu0 %1653
        %1657 = vset.pattern.permute.xlu0 0
        %1658 = vperm.xlu0 %1657, %v1542
        %v1659 = vpop.permute.xlu0 %1658
        %1662 = vset.pattern.permute.xlu0 0
        %1663 = vperm.xlu0 %1662, %v1543
        %v1664 = vpop.permute.xlu0 %1663
        %1667 = vset.pattern.permute.xlu0 0
        %1668 = vperm.xlu0 %1667, %v1544
        %v1669 = vpop.permute.xlu0 %1668
        %1672 = vset.pattern.permute.xlu0 0
        %1673 = vperm.xlu0 %1672, %v1545
        %v1674 = vpop.permute.xlu0 %1673
        %1677 = vset.pattern.permute.xlu0 0
        %1678 = vperm.xlu0 %1677, %v1546
        %v1679 = vpop.permute.xlu0 %1678
        %1682 = vset.pattern.permute.xlu0 0
        %1683 = vperm.xlu0 %1682, %v1547
        %v1684 = vpop.permute.xlu0 %1683
        %1687 = vset.pattern.permute.xlu0 0
        %1688 = vperm.xlu0 %1687, %v1548
        %v1689 = vpop.permute.xlu0 %1688
        %1692 = vset.pattern.permute.xlu0 0
        %1693 = vperm.xlu0 %1692, %v1549
        %v1694 = vpop.permute.xlu0 %1693
        %1697 = vset.pattern.permute.xlu0 0
        %1698 = vperm.xlu0 %1697, %v1550
        %v1699 = vpop.permute.xlu0 %1698
        %1702 = vset.pattern.permute.xlu0 0
        %1703 = vperm.xlu0 %1702, %v1551
        %v1704 = vpop.permute.xlu0 %1703
        %1707 = vset.pattern.permute.xlu0 0
        %1708 = vperm.xlu0 %1707, %v1552
        %v1709 = vpop.permute.xlu0 %1708
        %1712 = vset.pattern.permute.xlu0 0
        %1713 = vperm.xlu0 %1712, %v1553
        %v1714 = vpop.permute.xlu0 %1713
        %v1717 = vlaneseq
        %v1718 = vshrl.u32 %v1717, 7
        %v1719 = vsub.s32 0, %v1718
        %v1720 = vrot.slane %v1555, %v1719
        %v1722 = vmul.f32 %v1559, %v1720
        %v1723 = vmul.f32 %v1564, %v1720
        %v1724 = vmul.f32 %v1569, %v1720
        %v1725 = vmul.f32 %v1574, %v1720
        %v1726 = vmul.f32 %v1579, %v1720
        %v1727 = vmul.f32 %v1584, %v1720
        %v1728 = vmul.f32 %v1589, %v1720
        %v1729 = vmul.f32 %v1594, %v1720
        %v1730 = vmul.f32 %v1599, %v1720
        %v1731 = vmul.f32 %v1604, %v1720
        %v1732 = vmul.f32 %v1609, %v1720
        %v1733 = vmul.f32 %v1614, %v1720
        %v1734 = vmul.f32 %v1619, %v1720
        %v1735 = vmul.f32 %v1624, %v1720
        %v1736 = vmul.f32 %v1629, %v1720
        %v1737 = vmul.f32 %v1634, %v1720
        %v1738 = vmul.f32 %v1639, %v1720
        %v1739 = vmul.f32 %v1644, %v1720
        %v1740 = vmul.f32 %v1649, %v1720
        %v1741 = vmul.f32 %v1654, %v1720
        %v1742 = vmul.f32 %v1659, %v1720
        %v1743 = vmul.f32 %v1664, %v1720
        %v1744 = vmul.f32 %v1669, %v1720
        %v1745 = vmul.f32 %v1674, %v1720
        %v1746 = vmul.f32 %v1679, %v1720
        %v1747 = vmul.f32 %v1684, %v1720
        %v1748 = vmul.f32 %v1689, %v1720
        %v1749 = vmul.f32 %v1694, %v1720
        %v1750 = vmul.f32 %v1699, %v1720
        %v1751 = vmul.f32 %v1704, %v1720
        %v1752 = vmul.f32 %v1709, %v1720
        %v1753 = vmul.f32 %v1714, %v1720
        %v1754 = vadd.f32 %v1490, %v1722
        %v1755 = vadd.f32 %v1491, %v1723
        %v1756 = vadd.f32 %v1492, %v1724
        %v1757 = vadd.f32 %v1493, %v1725
        %v1758 = vadd.f32 %v1494, %v1726
        %v1759 = vadd.f32 %v1495, %v1727
        %v1760 = vadd.f32 %v1496, %v1728
        %v1761 = vadd.f32 %v1497, %v1729
        %v1762 = vadd.f32 %v1498, %v1730
        %v1763 = vadd.f32 %v1499, %v1731
        %v1764 = vadd.f32 %v1500, %v1732
        %v1765 = vadd.f32 %v1501, %v1733
        %v1766 = vadd.f32 %v1502, %v1734
        %v1767 = vadd.f32 %v1503, %v1735
        %v1768 = vadd.f32 %v1504, %v1736
        %v1769 = vadd.f32 %v1505, %v1737
        %v1770 = vadd.f32 %v1506, %v1738
        %v1771 = vadd.f32 %v1507, %v1739
        %v1772 = vadd.f32 %v1508, %v1740
        %v1773 = vadd.f32 %v1509, %v1741
        %v1774 = vadd.f32 %v1510, %v1742
        %v1775 = vadd.f32 %v1511, %v1743
        %v1776 = vadd.f32 %v1512, %v1744
        %v1777 = vadd.f32 %v1513, %v1745
        %v1778 = vadd.f32 %v1514, %v1746
        %v1779 = vadd.f32 %v1515, %v1747
        %v1780 = vadd.f32 %v1516, %v1748
        %v1781 = vadd.f32 %v1517, %v1749
        %v1782 = vadd.f32 %v1518, %v1750
        %v1783 = vadd.f32 %v1519, %v1751
        %v1784 = vadd.f32 %v1520, %v1752
        %v1785 = vadd.f32 %v1521, %v1753
        %v1786 = vld [vmem:[%s434 + $0x2] sm:$0xff]
        %v1787 = vld [vmem:[%s434 + $0xa] sm:$0xff]
        %v1788 = vld [vmem:[%s434 + $0x1a] sm:$0xff]
        %v1789 = vld [vmem:[%s434 + $0x22] sm:$0xff]
        %v1790 = vld [vmem:[%s434 + $0x32] sm:$0xff]
        %v1791 = vld [vmem:[%s434 + $0x3a] sm:$0xff]
        %v1792 = vld [vmem:[%s434 + $0x4a] sm:$0xff]
        %v1793 = vld [vmem:[%s434 + $0x52] sm:$0xff]
        %v1794 = vld [vmem:[%s434 + $0x62] sm:$0xff]
        %v1795 = vld [vmem:[%s434 + $0x6a] sm:$0xff]
        %v1796 = vld [vmem:[%s434 + $0x7a] sm:$0xff]
        %v1797 = vld [vmem:[%s434 + $0x82] sm:$0xff]
        %v1798 = vld [vmem:[%s434 + $0x92] sm:$0xff]
        %v1799 = vld [vmem:[%s434 + $0x9a] sm:$0xff]
        %v1800 = vld [vmem:[%s434 + $0xaa] sm:$0xff]
        %v1801 = vld [vmem:[%s434 + $0xb2] sm:$0xff]
        %v1802 = vld [vmem:[%s434 + $0xc2] sm:$0xff]
        %v1803 = vld [vmem:[%s434 + $0xca] sm:$0xff]
        %v1804 = vld [vmem:[%s434 + $0xda] sm:$0xff]
        %v1805 = vld [vmem:[%s434 + $0xe2] sm:$0xff]
        %v1806 = vld [vmem:[%s434 + $0xf2] sm:$0xff]
        %v1807 = vld [vmem:[%s434 + $0xfa] sm:$0xff]
        %v1808 = vld [vmem:[%s434 + $0x10a] sm:$0xff]
        %v1809 = vld [vmem:[%s434 + $0x112] sm:$0xff]
        %v1810 = vld [vmem:[%s434 + $0x122] sm:$0xff]
        %v1811 = vld [vmem:[%s434 + $0x12a] sm:$0xff]
        %v1812 = vld [vmem:[%s434 + $0x13a] sm:$0xff]
        %v1813 = vld [vmem:[%s434 + $0x142] sm:$0xff]
        %v1814 = vld [vmem:[%s434 + $0x152] sm:$0xff]
        %v1815 = vld [vmem:[%s434 + $0x15a] sm:$0xff]
        %v1816 = vld [vmem:[%s434 + $0x16a] sm:$0xff]
        %v1817 = vld [vmem:[%s434 + $0x172] sm:$0xff]
        %s1818 = scalar_lea.vmem %s1, 5
        %v1819 = vld [vmem:[%s1818] sm:$0x1]
        %1821 = vset.pattern.permute.xlu0 0
        %1822 = vperm.xlu0 %1821, %v1786
        %v1823 = vpop.permute.xlu0 %1822
        %1826 = vset.pattern.permute.xlu0 0
        %1827 = vperm.xlu0 %1826, %v1787
        %v1828 = vpop.permute.xlu0 %1827
        %1831 = vset.pattern.permute.xlu0 0
        %1832 = vperm.xlu0 %1831, %v1788
        %v1833 = vpop.permute.xlu0 %1832
        %1836 = vset.pattern.permute.xlu0 0
        %1837 = vperm.xlu0 %1836, %v1789
        %v1838 = vpop.permute.xlu0 %1837
        %1841 = vset.pattern.permute.xlu0 0
        %1842 = vperm.xlu0 %1841, %v1790
        %v1843 = vpop.permute.xlu0 %1842
        %1846 = vset.pattern.permute.xlu0 0
        %1847 = vperm.xlu0 %1846, %v1791
        %v1848 = vpop.permute.xlu0 %1847
        %1851 = vset.pattern.permute.xlu0 0
        %1852 = vperm.xlu0 %1851, %v1792
        %v1853 = vpop.permute.xlu0 %1852
        %1856 = vset.pattern.permute.xlu0 0
        %1857 = vperm.xlu0 %1856, %v1793
        %v1858 = vpop.permute.xlu0 %1857
        %1861 = vset.pattern.permute.xlu0 0
        %1862 = vperm.xlu0 %1861, %v1794
        %v1863 = vpop.permute.xlu0 %1862
        %1866 = vset.pattern.permute.xlu0 0
        %1867 = vperm.xlu0 %1866, %v1795
        %v1868 = vpop.permute.xlu0 %1867
        %1871 = vset.pattern.permute.xlu0 0
        %1872 = vperm.xlu0 %1871, %v1796
        %v1873 = vpop.permute.xlu0 %1872
        %1876 = vset.pattern.permute.xlu0 0
        %1877 = vperm.xlu0 %1876, %v1797
        %v1878 = vpop.permute.xlu0 %1877
        %1881 = vset.pattern.permute.xlu0 0
        %1882 = vperm.xlu0 %1881, %v1798
        %v1883 = vpop.permute.xlu0 %1882
        %1886 = vset.pattern.permute.xlu0 0
        %1887 = vperm.xlu0 %1886, %v1799
        %v1888 = vpop.permute.xlu0 %1887
        %1891 = vset.pattern.permute.xlu0 0
        %1892 = vperm.xlu0 %1891, %v1800
        %v1893 = vpop.permute.xlu0 %1892
        %1896 = vset.pattern.permute.xlu0 0
        %1897 = vperm.xlu0 %1896, %v1801
        %v1898 = vpop.permute.xlu0 %1897
        %1901 = vset.pattern.permute.xlu0 0
        %1902 = vperm.xlu0 %1901, %v1802
        %v1903 = vpop.permute.xlu0 %1902
        %1906 = vset.pattern.permute.xlu0 0
        %1907 = vperm.xlu0 %1906, %v1803
        %v1908 = vpop.permute.xlu0 %1907
        %1911 = vset.pattern.permute.xlu0 0
        %1912 = vperm.xlu0 %1911, %v1804
        %v1913 = vpop.permute.xlu0 %1912
        %1916 = vset.pattern.permute.xlu0 0
        %1917 = vperm.xlu0 %1916, %v1805
        %v1918 = vpop.permute.xlu0 %1917
        %1921 = vset.pattern.permute.xlu0 0
        %1922 = vperm.xlu0 %1921, %v1806
        %v1923 = vpop.permute.xlu0 %1922
        %1926 = vset.pattern.permute.xlu0 0
        %1927 = vperm.xlu0 %1926, %v1807
        %v1928 = vpop.permute.xlu0 %1927
        %1931 = vset.pattern.permute.xlu0 0
        %1932 = vperm.xlu0 %1931, %v1808
        %v1933 = vpop.permute.xlu0 %1932
        %1936 = vset.pattern.permute.xlu0 0
        %1937 = vperm.xlu0 %1936, %v1809
        %v1938 = vpop.permute.xlu0 %1937
        %1941 = vset.pattern.permute.xlu0 0
        %1942 = vperm.xlu0 %1941, %v1810
        %v1943 = vpop.permute.xlu0 %1942
        %1946 = vset.pattern.permute.xlu0 0
        %1947 = vperm.xlu0 %1946, %v1811
        %v1948 = vpop.permute.xlu0 %1947
        %1951 = vset.pattern.permute.xlu0 0
        %1952 = vperm.xlu0 %1951, %v1812
        %v1953 = vpop.permute.xlu0 %1952
        %1956 = vset.pattern.permute.xlu0 0
        %1957 = vperm.xlu0 %1956, %v1813
        %v1958 = vpop.permute.xlu0 %1957
        %1961 = vset.pattern.permute.xlu0 0
        %1962 = vperm.xlu0 %1961, %v1814
        %v1963 = vpop.permute.xlu0 %1962
        %1966 = vset.pattern.permute.xlu0 0
        %1967 = vperm.xlu0 %1966, %v1815
        %v1968 = vpop.permute.xlu0 %1967
        %1971 = vset.pattern.permute.xlu0 0
        %1972 = vperm.xlu0 %1971, %v1816
        %v1973 = vpop.permute.xlu0 %1972
        %1976 = vset.pattern.permute.xlu0 0
        %1977 = vperm.xlu0 %1976, %v1817
        %v1978 = vpop.permute.xlu0 %1977
        %v1981 = vlaneseq
        %v1982 = vshrl.u32 %v1981, 7
        %v1983 = vsub.s32 0, %v1982
        %v1984 = vrot.slane %v1819, %v1983
        %v1986 = vmul.f32 %v1823, %v1984
        %v1987 = vmul.f32 %v1828, %v1984
        %v1988 = vmul.f32 %v1833, %v1984
        %v1989 = vmul.f32 %v1838, %v1984
        %v1990 = vmul.f32 %v1843, %v1984
        %v1991 = vmul.f32 %v1848, %v1984
        %v1992 = vmul.f32 %v1853, %v1984
        %v1993 = vmul.f32 %v1858, %v1984
        %v1994 = vmul.f32 %v1863, %v1984
        %v1995 = vmul.f32 %v1868, %v1984
        %v1996 = vmul.f32 %v1873, %v1984
        %v1997 = vmul.f32 %v1878, %v1984
        %v1998 = vmul.f32 %v1883, %v1984
        %v1999 = vmul.f32 %v1888, %v1984
        %v2000 = vmul.f32 %v1893, %v1984
        %v2001 = vmul.f32 %v1898, %v1984
        %v2002 = vmul.f32 %v1903, %v1984
        %v2003 = vmul.f32 %v1908, %v1984
        %v2004 = vmul.f32 %v1913, %v1984
        %v2005 = vmul.f32 %v1918, %v1984
        %v2006 = vmul.f32 %v1923, %v1984
        %v2007 = vmul.f32 %v1928, %v1984
        %v2008 = vmul.f32 %v1933, %v1984
        %v2009 = vmul.f32 %v1938, %v1984
        %v2010 = vmul.f32 %v1943, %v1984
        %v2011 = vmul.f32 %v1948, %v1984
        %v2012 = vmul.f32 %v1953, %v1984
        %v2013 = vmul.f32 %v1958, %v1984
        %v2014 = vmul.f32 %v1963, %v1984
        %v2015 = vmul.f32 %v1968, %v1984
        %v2016 = vmul.f32 %v1973, %v1984
        %v2017 = vmul.f32 %v1978, %v1984
        %v2018 = vadd.f32 %v1754, %v1986
        %v2019 = vadd.f32 %v1755, %v1987
        %v2020 = vadd.f32 %v1756, %v1988
        %v2021 = vadd.f32 %v1757, %v1989
        %v2022 = vadd.f32 %v1758, %v1990
        %v2023 = vadd.f32 %v1759, %v1991
        %v2024 = vadd.f32 %v1760, %v1992
        %v2025 = vadd.f32 %v1761, %v1993
        %v2026 = vadd.f32 %v1762, %v1994
        %v2027 = vadd.f32 %v1763, %v1995
        %v2028 = vadd.f32 %v1764, %v1996
        %v2029 = vadd.f32 %v1765, %v1997
        %v2030 = vadd.f32 %v1766, %v1998
        %v2031 = vadd.f32 %v1767, %v1999
        %v2032 = vadd.f32 %v1768, %v2000
        %v2033 = vadd.f32 %v1769, %v2001
        %v2034 = vadd.f32 %v1770, %v2002
        %v2035 = vadd.f32 %v1771, %v2003
        %v2036 = vadd.f32 %v1772, %v2004
        %v2037 = vadd.f32 %v1773, %v2005
        %v2038 = vadd.f32 %v1774, %v2006
        %v2039 = vadd.f32 %v1775, %v2007
        %v2040 = vadd.f32 %v1776, %v2008
        %v2041 = vadd.f32 %v1777, %v2009
        %v2042 = vadd.f32 %v1778, %v2010
        %v2043 = vadd.f32 %v1779, %v2011
        %v2044 = vadd.f32 %v1780, %v2012
        %v2045 = vadd.f32 %v1781, %v2013
        %v2046 = vadd.f32 %v1782, %v2014
        %v2047 = vadd.f32 %v1783, %v2015
        %v2048 = vadd.f32 %v1784, %v2016
        %v2049 = vadd.f32 %v1785, %v2017
        %s2050 = scalar_lea.vmem [#allocation2], 48
        %v2051 = vld [vmem:[%s2050] sm:$0xff]
        %v2052 = vld [vmem:[%s2050 + $0x8] sm:$0xff]
        %v2053 = vld [vmem:[%s2050 + $0x18] sm:$0xff]
        %v2054 = vld [vmem:[%s2050 + $0x20] sm:$0xff]
        %v2055 = vld [vmem:[%s2050 + $0x30] sm:$0xff]
        %v2056 = vld [vmem:[%s2050 + $0x38] sm:$0xff]
        %v2057 = vld [vmem:[%s2050 + $0x48] sm:$0xff]
        %v2058 = vld [vmem:[%s2050 + $0x50] sm:$0xff]
        %v2059 = vld [vmem:[%s2050 + $0x60] sm:$0xff]
        %v2060 = vld [vmem:[%s2050 + $0x68] sm:$0xff]
        %v2061 = vld [vmem:[%s2050 + $0x78] sm:$0xff]
        %v2062 = vld [vmem:[%s2050 + $0x80] sm:$0xff]
        %v2063 = vld [vmem:[%s2050 + $0x90] sm:$0xff]
        %v2064 = vld [vmem:[%s2050 + $0x98] sm:$0xff]
        %v2065 = vld [vmem:[%s2050 + $0xa8] sm:$0xff]
        %v2066 = vld [vmem:[%s2050 + $0xb0] sm:$0xff]
        %v2067 = vld [vmem:[%s2050 + $0xc0] sm:$0xff]
        %v2068 = vld [vmem:[%s2050 + $0xc8] sm:$0xff]
        %v2069 = vld [vmem:[%s2050 + $0xd8] sm:$0xff]
        %v2070 = vld [vmem:[%s2050 + $0xe0] sm:$0xff]
        %v2071 = vld [vmem:[%s2050 + $0xf0] sm:$0xff]
        %v2072 = vld [vmem:[%s2050 + $0xf8] sm:$0xff]
        %v2073 = vld [vmem:[%s2050 + $0x108] sm:$0xff]
        %v2074 = vld [vmem:[%s2050 + $0x110] sm:$0xff]
        %v2075 = vld [vmem:[%s2050 + $0x120] sm:$0xff]
        %v2076 = vld [vmem:[%s2050 + $0x128] sm:$0xff]
        %v2077 = vld [vmem:[%s2050 + $0x138] sm:$0xff]
        %v2078 = vld [vmem:[%s2050 + $0x140] sm:$0xff]
        %v2079 = vld [vmem:[%s2050 + $0x150] sm:$0xff]
        %v2080 = vld [vmem:[%s2050 + $0x158] sm:$0xff]
        %v2081 = vld [vmem:[%s2050 + $0x168] sm:$0xff]
        %v2082 = vld [vmem:[%s2050 + $0x170] sm:$0xff]
        %s2083 = scalar_lea.vmem %s1, 6
        %v2084 = vld [vmem:[%s2083] sm:$0x1]
        %2086 = vset.pattern.permute.xlu0 0
        %2087 = vperm.xlu0 %2086, %v2051
        %v2088 = vpop.permute.xlu0 %2087
        %2091 = vset.pattern.permute.xlu0 0
        %2092 = vperm.xlu0 %2091, %v2052
        %v2093 = vpop.permute.xlu0 %2092
        %2096 = vset.pattern.permute.xlu0 0
        %2097 = vperm.xlu0 %2096, %v2053
        %v2098 = vpop.permute.xlu0 %2097
        %2101 = vset.pattern.permute.xlu0 0
        %2102 = vperm.xlu0 %2101, %v2054
        %v2103 = vpop.permute.xlu0 %2102
        %2106 = vset.pattern.permute.xlu0 0
        %2107 = vperm.xlu0 %2106, %v2055
        %v2108 = vpop.permute.xlu0 %2107
        %2111 = vset.pattern.permute.xlu0 0
        %2112 = vperm.xlu0 %2111, %v2056
        %v2113 = vpop.permute.xlu0 %2112
        %2116 = vset.pattern.permute.xlu0 0
        %2117 = vperm.xlu0 %2116, %v2057
        %v2118 = vpop.permute.xlu0 %2117
        %2121 = vset.pattern.permute.xlu0 0
        %2122 = vperm.xlu0 %2121, %v2058
        %v2123 = vpop.permute.xlu0 %2122
        %2126 = vset.pattern.permute.xlu0 0
        %2127 = vperm.xlu0 %2126, %v2059
        %v2128 = vpop.permute.xlu0 %2127
        %2131 = vset.pattern.permute.xlu0 0
        %2132 = vperm.xlu0 %2131, %v2060
        %v2133 = vpop.permute.xlu0 %2132
        %2136 = vset.pattern.permute.xlu0 0
        %2137 = vperm.xlu0 %2136, %v2061
        %v2138 = vpop.permute.xlu0 %2137
        %2141 = vset.pattern.permute.xlu0 0
        %2142 = vperm.xlu0 %2141, %v2062
        %v2143 = vpop.permute.xlu0 %2142
        %2146 = vset.pattern.permute.xlu0 0
        %2147 = vperm.xlu0 %2146, %v2063
        %v2148 = vpop.permute.xlu0 %2147
        %2151 = vset.pattern.permute.xlu0 0
        %2152 = vperm.xlu0 %2151, %v2064
        %v2153 = vpop.permute.xlu0 %2152
        %2156 = vset.pattern.permute.xlu0 0
        %2157 = vperm.xlu0 %2156, %v2065
        %v2158 = vpop.permute.xlu0 %2157
        %2161 = vset.pattern.permute.xlu0 0
        %2162 = vperm.xlu0 %2161, %v2066
        %v2163 = vpop.permute.xlu0 %2162
        %2166 = vset.pattern.permute.xlu0 0
        %2167 = vperm.xlu0 %2166, %v2067
        %v2168 = vpop.permute.xlu0 %2167
        %2171 = vset.pattern.permute.xlu0 0
        %2172 = vperm.xlu0 %2171, %v2068
        %v2173 = vpop.permute.xlu0 %2172
        %2176 = vset.pattern.permute.xlu0 0
        %2177 = vperm.xlu0 %2176, %v2069
        %v2178 = vpop.permute.xlu0 %2177
        %2181 = vset.pattern.permute.xlu0 0
        %2182 = vperm.xlu0 %2181, %v2070
        %v2183 = vpop.permute.xlu0 %2182
        %2186 = vset.pattern.permute.xlu0 0
        %2187 = vperm.xlu0 %2186, %v2071
        %v2188 = vpop.permute.xlu0 %2187
        %2191 = vset.pattern.permute.xlu0 0
        %2192 = vperm.xlu0 %2191, %v2072
        %v2193 = vpop.permute.xlu0 %2192
        %2196 = vset.pattern.permute.xlu0 0
        %2197 = vperm.xlu0 %2196, %v2073
        %v2198 = vpop.permute.xlu0 %2197
        %2201 = vset.pattern.permute.xlu0 0
        %2202 = vperm.xlu0 %2201, %v2074
        %v2203 = vpop.permute.xlu0 %2202
        %2206 = vset.pattern.permute.xlu0 0
        %2207 = vperm.xlu0 %2206, %v2075
        %v2208 = vpop.permute.xlu0 %2207
        %2211 = vset.pattern.permute.xlu0 0
        %2212 = vperm.xlu0 %2211, %v2076
        %v2213 = vpop.permute.xlu0 %2212
        %2216 = vset.pattern.permute.xlu0 0
        %2217 = vperm.xlu0 %2216, %v2077
        %v2218 = vpop.permute.xlu0 %2217
        %2221 = vset.pattern.permute.xlu0 0
        %2222 = vperm.xlu0 %2221, %v2078
        %v2223 = vpop.permute.xlu0 %2222
        %2226 = vset.pattern.permute.xlu0 0
        %2227 = vperm.xlu0 %2226, %v2079
        %v2228 = vpop.permute.xlu0 %2227
        %2231 = vset.pattern.permute.xlu0 0
        %2232 = vperm.xlu0 %2231, %v2080
        %v2233 = vpop.permute.xlu0 %2232
        %2236 = vset.pattern.permute.xlu0 0
        %2237 = vperm.xlu0 %2236, %v2081
        %v2238 = vpop.permute.xlu0 %2237
        %2241 = vset.pattern.permute.xlu0 0
        %2242 = vperm.xlu0 %2241, %v2082
        %v2243 = vpop.permute.xlu0 %2242
        %v2246 = vlaneseq
        %v2247 = vshrl.u32 %v2246, 7
        %v2248 = vsub.s32 0, %v2247
        %v2249 = vrot.slane %v2084, %v2248
        %v2251 = vmul.f32 %v2088, %v2249
        %v2252 = vmul.f32 %v2093, %v2249
        %v2253 = vmul.f32 %v2098, %v2249
        %v2254 = vmul.f32 %v2103, %v2249
        %v2255 = vmul.f32 %v2108, %v2249
        %v2256 = vmul.f32 %v2113, %v2249
        %v2257 = vmul.f32 %v2118, %v2249
        %v2258 = vmul.f32 %v2123, %v2249
        %v2259 = vmul.f32 %v2128, %v2249
        %v2260 = vmul.f32 %v2133, %v2249
        %v2261 = vmul.f32 %v2138, %v2249
        %v2262 = vmul.f32 %v2143, %v2249
        %v2263 = vmul.f32 %v2148, %v2249
        %v2264 = vmul.f32 %v2153, %v2249
        %v2265 = vmul.f32 %v2158, %v2249
        %v2266 = vmul.f32 %v2163, %v2249
        %v2267 = vmul.f32 %v2168, %v2249
        %v2268 = vmul.f32 %v2173, %v2249
        %v2269 = vmul.f32 %v2178, %v2249
        %v2270 = vmul.f32 %v2183, %v2249
        %v2271 = vmul.f32 %v2188, %v2249
        %v2272 = vmul.f32 %v2193, %v2249
        %v2273 = vmul.f32 %v2198, %v2249
        %v2274 = vmul.f32 %v2203, %v2249
        %v2275 = vmul.f32 %v2208, %v2249
        %v2276 = vmul.f32 %v2213, %v2249
        %v2277 = vmul.f32 %v2218, %v2249
        %v2278 = vmul.f32 %v2223, %v2249
        %v2279 = vmul.f32 %v2228, %v2249
        %v2280 = vmul.f32 %v2233, %v2249
        %v2281 = vmul.f32 %v2238, %v2249
        %v2282 = vmul.f32 %v2243, %v2249
        %v2283 = vadd.f32 %v2018, %v2251
        %v2284 = vadd.f32 %v2019, %v2252
        %v2285 = vadd.f32 %v2020, %v2253
        %v2286 = vadd.f32 %v2021, %v2254
        %v2287 = vadd.f32 %v2022, %v2255
        %v2288 = vadd.f32 %v2023, %v2256
        %v2289 = vadd.f32 %v2024, %v2257
        %v2290 = vadd.f32 %v2025, %v2258
        %v2291 = vadd.f32 %v2026, %v2259
        %v2292 = vadd.f32 %v2027, %v2260
        %v2293 = vadd.f32 %v2028, %v2261
        %v2294 = vadd.f32 %v2029, %v2262
        %v2295 = vadd.f32 %v2030, %v2263
        %v2296 = vadd.f32 %v2031, %v2264
        %v2297 = vadd.f32 %v2032, %v2265
        %v2298 = vadd.f32 %v2033, %v2266
        %v2299 = vadd.f32 %v2034, %v2267
        %v2300 = vadd.f32 %v2035, %v2268
        %v2301 = vadd.f32 %v2036, %v2269
        %v2302 = vadd.f32 %v2037, %v2270
        %v2303 = vadd.f32 %v2038, %v2271
        %v2304 = vadd.f32 %v2039, %v2272
        %v2305 = vadd.f32 %v2040, %v2273
        %v2306 = vadd.f32 %v2041, %v2274
        %v2307 = vadd.f32 %v2042, %v2275
        %v2308 = vadd.f32 %v2043, %v2276
        %v2309 = vadd.f32 %v2044, %v2277
        %v2310 = vadd.f32 %v2045, %v2278
        %v2311 = vadd.f32 %v2046, %v2279
        %v2312 = vadd.f32 %v2047, %v2280
        %v2313 = vadd.f32 %v2048, %v2281
        %v2314 = vadd.f32 %v2049, %v2282
        %v2315 = vld [vmem:[%s2050 + $0x1] sm:$0xff]
        %v2316 = vld [vmem:[%s2050 + $0x9] sm:$0xff]
        %v2317 = vld [vmem:[%s2050 + $0x19] sm:$0xff]
        %v2318 = vld [vmem:[%s2050 + $0x21] sm:$0xff]
        %v2319 = vld [vmem:[%s2050 + $0x31] sm:$0xff]
        %v2320 = vld [vmem:[%s2050 + $0x39] sm:$0xff]
        %v2321 = vld [vmem:[%s2050 + $0x49] sm:$0xff]
        %v2322 = vld [vmem:[%s2050 + $0x51] sm:$0xff]
        %v2323 = vld [vmem:[%s2050 + $0x61] sm:$0xff]
        %v2324 = vld [vmem:[%s2050 + $0x69] sm:$0xff]
        %v2325 = vld [vmem:[%s2050 + $0x79] sm:$0xff]
        %v2326 = vld [vmem:[%s2050 + $0x81] sm:$0xff]
        %v2327 = vld [vmem:[%s2050 + $0x91] sm:$0xff]
        %v2328 = vld [vmem:[%s2050 + $0x99] sm:$0xff]
        %v2329 = vld [vmem:[%s2050 + $0xa9] sm:$0xff]
        %v2330 = vld [vmem:[%s2050 + $0xb1] sm:$0xff]
        %v2331 = vld [vmem:[%s2050 + $0xc1] sm:$0xff]
        %v2332 = vld [vmem:[%s2050 + $0xc9] sm:$0xff]
        %v2333 = vld [vmem:[%s2050 + $0xd9] sm:$0xff]
        %v2334 = vld [vmem:[%s2050 + $0xe1] sm:$0xff]
        %v2335 = vld [vmem:[%s2050 + $0xf1] sm:$0xff]
        %v2336 = vld [vmem:[%s2050 + $0xf9] sm:$0xff]
        %v2337 = vld [vmem:[%s2050 + $0x109] sm:$0xff]
        %v2338 = vld [vmem:[%s2050 + $0x111] sm:$0xff]
        %v2339 = vld [vmem:[%s2050 + $0x121] sm:$0xff]
        %v2340 = vld [vmem:[%s2050 + $0x129] sm:$0xff]
        %v2341 = vld [vmem:[%s2050 + $0x139] sm:$0xff]
        %v2342 = vld [vmem:[%s2050 + $0x141] sm:$0xff]
        %v2343 = vld [vmem:[%s2050 + $0x151] sm:$0xff]
        %v2344 = vld [vmem:[%s2050 + $0x159] sm:$0xff]
        %v2345 = vld [vmem:[%s2050 + $0x169] sm:$0xff]
        %v2346 = vld [vmem:[%s2050 + $0x171] sm:$0xff]
        %s2347 = scalar_lea.vmem %s1, 7
        %v2348 = vld [vmem:[%s2347] sm:$0x1]
        %2350 = vset.pattern.permute.xlu0 0
        %2351 = vperm.xlu0 %2350, %v2315
        %v2352 = vpop.permute.xlu0 %2351
        %2355 = vset.pattern.permute.xlu0 0
        %2356 = vperm.xlu0 %2355, %v2316
        %v2357 = vpop.permute.xlu0 %2356
        %2360 = vset.pattern.permute.xlu0 0
        %2361 = vperm.xlu0 %2360, %v2317
        %v2362 = vpop.permute.xlu0 %2361
        %2365 = vset.pattern.permute.xlu0 0
        %2366 = vperm.xlu0 %2365, %v2318
        %v2367 = vpop.permute.xlu0 %2366
        %2370 = vset.pattern.permute.xlu0 0
        %2371 = vperm.xlu0 %2370, %v2319
        %v2372 = vpop.permute.xlu0 %2371
        %2375 = vset.pattern.permute.xlu0 0
        %2376 = vperm.xlu0 %2375, %v2320
        %v2377 = vpop.permute.xlu0 %2376
        %2380 = vset.pattern.permute.xlu0 0
        %2381 = vperm.xlu0 %2380, %v2321
        %v2382 = vpop.permute.xlu0 %2381
        %2385 = vset.pattern.permute.xlu0 0
        %2386 = vperm.xlu0 %2385, %v2322
        %v2387 = vpop.permute.xlu0 %2386
        %2390 = vset.pattern.permute.xlu0 0
        %2391 = vperm.xlu0 %2390, %v2323
        %v2392 = vpop.permute.xlu0 %2391
        %2395 = vset.pattern.permute.xlu0 0
        %2396 = vperm.xlu0 %2395, %v2324
        %v2397 = vpop.permute.xlu0 %2396
        %2400 = vset.pattern.permute.xlu0 0
        %2401 = vperm.xlu0 %2400, %v2325
        %v2402 = vpop.permute.xlu0 %2401
        %2405 = vset.pattern.permute.xlu0 0
        %2406 = vperm.xlu0 %2405, %v2326
        %v2407 = vpop.permute.xlu0 %2406
        %2410 = vset.pattern.permute.xlu0 0
        %2411 = vperm.xlu0 %2410, %v2327
        %v2412 = vpop.permute.xlu0 %2411
        %2415 = vset.pattern.permute.xlu0 0
        %2416 = vperm.xlu0 %2415, %v2328
        %v2417 = vpop.permute.xlu0 %2416
        %2420 = vset.pattern.permute.xlu0 0
        %2421 = vperm.xlu0 %2420, %v2329
        %v2422 = vpop.permute.xlu0 %2421
        %2425 = vset.pattern.permute.xlu0 0
        %2426 = vperm.xlu0 %2425, %v2330
        %v2427 = vpop.permute.xlu0 %2426
        %2430 = vset.pattern.permute.xlu0 0
        %2431 = vperm.xlu0 %2430, %v2331
        %v2432 = vpop.permute.xlu0 %2431
        %2435 = vset.pattern.permute.xlu0 0
        %2436 = vperm.xlu0 %2435, %v2332
        %v2437 = vpop.permute.xlu0 %2436
        %2440 = vset.pattern.permute.xlu0 0
        %2441 = vperm.xlu0 %2440, %v2333
        %v2442 = vpop.permute.xlu0 %2441
        %2445 = vset.pattern.permute.xlu0 0
        %2446 = vperm.xlu0 %2445, %v2334
        %v2447 = vpop.permute.xlu0 %2446
        %2450 = vset.pattern.permute.xlu0 0
        %2451 = vperm.xlu0 %2450, %v2335
        %v2452 = vpop.permute.xlu0 %2451
        %2455 = vset.pattern.permute.xlu0 0
        %2456 = vperm.xlu0 %2455, %v2336
        %v2457 = vpop.permute.xlu0 %2456
        %2460 = vset.pattern.permute.xlu0 0
        %2461 = vperm.xlu0 %2460, %v2337
        %v2462 = vpop.permute.xlu0 %2461
        %2465 = vset.pattern.permute.xlu0 0
        %2466 = vperm.xlu0 %2465, %v2338
        %v2467 = vpop.permute.xlu0 %2466
        %2470 = vset.pattern.permute.xlu0 0
        %2471 = vperm.xlu0 %2470, %v2339
        %v2472 = vpop.permute.xlu0 %2471
        %2475 = vset.pattern.permute.xlu0 0
        %2476 = vperm.xlu0 %2475, %v2340
        %v2477 = vpop.permute.xlu0 %2476
        %2480 = vset.pattern.permute.xlu0 0
        %2481 = vperm.xlu0 %2480, %v2341
        %v2482 = vpop.permute.xlu0 %2481
        %2485 = vset.pattern.permute.xlu0 0
        %2486 = vperm.xlu0 %2485, %v2342
        %v2487 = vpop.permute.xlu0 %2486
        %2490 = vset.pattern.permute.xlu0 0
        %2491 = vperm.xlu0 %2490, %v2343
        %v2492 = vpop.permute.xlu0 %2491
        %2495 = vset.pattern.permute.xlu0 0
        %2496 = vperm.xlu0 %2495, %v2344
        %v2497 = vpop.permute.xlu0 %2496
        %2500 = vset.pattern.permute.xlu0 0
        %2501 = vperm.xlu0 %2500, %v2345
        %v2502 = vpop.permute.xlu0 %2501
        %2505 = vset.pattern.permute.xlu0 0
        %2506 = vperm.xlu0 %2505, %v2346
        %v2507 = vpop.permute.xlu0 %2506
        %v2510 = vlaneseq
        %v2511 = vshrl.u32 %v2510, 7
        %v2512 = vsub.s32 0, %v2511
        %v2513 = vrot.slane %v2348, %v2512
        %v2515 = vmul.f32 %v2352, %v2513
        %v2516 = vmul.f32 %v2357, %v2513
        %v2517 = vmul.f32 %v2362, %v2513
        %v2518 = vmul.f32 %v2367, %v2513
        %v2519 = vmul.f32 %v2372, %v2513
        %v2520 = vmul.f32 %v2377, %v2513
        %v2521 = vmul.f32 %v2382, %v2513
        %v2522 = vmul.f32 %v2387, %v2513
        %v2523 = vmul.f32 %v2392, %v2513
        %v2524 = vmul.f32 %v2397, %v2513
        %v2525 = vmul.f32 %v2402, %v2513
        %v2526 = vmul.f32 %v2407, %v2513
        %v2527 = vmul.f32 %v2412, %v2513
        %v2528 = vmul.f32 %v2417, %v2513
        %v2529 = vmul.f32 %v2422, %v2513
        %v2530 = vmul.f32 %v2427, %v2513
        %v2531 = vmul.f32 %v2432, %v2513
        %v2532 = vmul.f32 %v2437, %v2513
        %v2533 = vmul.f32 %v2442, %v2513
        %v2534 = vmul.f32 %v2447, %v2513
        %v2535 = vmul.f32 %v2452, %v2513
        %v2536 = vmul.f32 %v2457, %v2513
        %v2537 = vmul.f32 %v2462, %v2513
        %v2538 = vmul.f32 %v2467, %v2513
        %v2539 = vmul.f32 %v2472, %v2513
        %v2540 = vmul.f32 %v2477, %v2513
        %v2541 = vmul.f32 %v2482, %v2513
        %v2542 = vmul.f32 %v2487, %v2513
        %v2543 = vmul.f32 %v2492, %v2513
        %v2544 = vmul.f32 %v2497, %v2513
        %v2545 = vmul.f32 %v2502, %v2513
        %v2546 = vmul.f32 %v2507, %v2513
        %v2547 = vadd.f32 %v2283, %v2515
        %v2548 = vadd.f32 %v2284, %v2516
        %v2549 = vadd.f32 %v2285, %v2517
        %v2550 = vadd.f32 %v2286, %v2518
        %v2551 = vadd.f32 %v2287, %v2519
        %v2552 = vadd.f32 %v2288, %v2520
        %v2553 = vadd.f32 %v2289, %v2521
        %v2554 = vadd.f32 %v2290, %v2522
        %v2555 = vadd.f32 %v2291, %v2523
        %v2556 = vadd.f32 %v2292, %v2524
        %v2557 = vadd.f32 %v2293, %v2525
        %v2558 = vadd.f32 %v2294, %v2526
        %v2559 = vadd.f32 %v2295, %v2527
        %v2560 = vadd.f32 %v2296, %v2528
        %v2561 = vadd.f32 %v2297, %v2529
        %v2562 = vadd.f32 %v2298, %v2530
        %v2563 = vadd.f32 %v2299, %v2531
        %v2564 = vadd.f32 %v2300, %v2532
        %v2565 = vadd.f32 %v2301, %v2533
        %v2566 = vadd.f32 %v2302, %v2534
        %v2567 = vadd.f32 %v2303, %v2535
        %v2568 = vadd.f32 %v2304, %v2536
        %v2569 = vadd.f32 %v2305, %v2537
        %v2570 = vadd.f32 %v2306, %v2538
        %v2571 = vadd.f32 %v2307, %v2539
        %v2572 = vadd.f32 %v2308, %v2540
        %v2573 = vadd.f32 %v2309, %v2541
        %v2574 = vadd.f32 %v2310, %v2542
        %v2575 = vadd.f32 %v2311, %v2543
        %v2576 = vadd.f32 %v2312, %v2544
        %v2577 = vadd.f32 %v2313, %v2545
        %v2578 = vadd.f32 %v2314, %v2546
        %v2579 = vld [vmem:[%s2050 + $0x2] sm:$0xff]
        %v2580 = vld [vmem:[%s2050 + $0xa] sm:$0xff]
        %v2581 = vld [vmem:[%s2050 + $0x1a] sm:$0xff]
        %v2582 = vld [vmem:[%s2050 + $0x22] sm:$0xff]
        %v2583 = vld [vmem:[%s2050 + $0x32] sm:$0xff]
        %v2584 = vld [vmem:[%s2050 + $0x3a] sm:$0xff]
        %v2585 = vld [vmem:[%s2050 + $0x4a] sm:$0xff]
        %v2586 = vld [vmem:[%s2050 + $0x52] sm:$0xff]
        %v2587 = vld [vmem:[%s2050 + $0x62] sm:$0xff]
        %v2588 = vld [vmem:[%s2050 + $0x6a] sm:$0xff]
        %v2589 = vld [vmem:[%s2050 + $0x7a] sm:$0xff]
        %v2590 = vld [vmem:[%s2050 + $0x82] sm:$0xff]
        %v2591 = vld [vmem:[%s2050 + $0x92] sm:$0xff]
        %v2592 = vld [vmem:[%s2050 + $0x9a] sm:$0xff]
        %v2593 = vld [vmem:[%s2050 + $0xaa] sm:$0xff]
        %v2594 = vld [vmem:[%s2050 + $0xb2] sm:$0xff]
        %v2595 = vld [vmem:[%s2050 + $0xc2] sm:$0xff]
        %v2596 = vld [vmem:[%s2050 + $0xca] sm:$0xff]
        %v2597 = vld [vmem:[%s2050 + $0xda] sm:$0xff]
        %v2598 = vld [vmem:[%s2050 + $0xe2] sm:$0xff]
        %v2599 = vld [vmem:[%s2050 + $0xf2] sm:$0xff]
        %v2600 = vld [vmem:[%s2050 + $0xfa] sm:$0xff]
        %v2601 = vld [vmem:[%s2050 + $0x10a] sm:$0xff]
        %v2602 = vld [vmem:[%s2050 + $0x112] sm:$0xff]
        %v2603 = vld [vmem:[%s2050 + $0x122] sm:$0xff]
        %v2604 = vld [vmem:[%s2050 + $0x12a] sm:$0xff]
        %v2605 = vld [vmem:[%s2050 + $0x13a] sm:$0xff]
        %v2606 = vld [vmem:[%s2050 + $0x142] sm:$0xff]
        %v2607 = vld [vmem:[%s2050 + $0x152] sm:$0xff]
        %v2608 = vld [vmem:[%s2050 + $0x15a] sm:$0xff]
        %v2609 = vld [vmem:[%s2050 + $0x16a] sm:$0xff]
        %v2610 = vld [vmem:[%s2050 + $0x172] sm:$0xff]
        %s2611 = scalar_lea.vmem %s1, 8
        %v2612 = vld [vmem:[%s2611] sm:$0x1]
        %2614 = vset.pattern.permute.xlu0 0
        %2615 = vperm.xlu0 %2614, %v2579
        %v2616 = vpop.permute.xlu0 %2615
        %2619 = vset.pattern.permute.xlu0 0
        %2620 = vperm.xlu0 %2619, %v2580
        %v2621 = vpop.permute.xlu0 %2620
        %2624 = vset.pattern.permute.xlu0 0
        %2625 = vperm.xlu0 %2624, %v2581
        %v2626 = vpop.permute.xlu0 %2625
        %2629 = vset.pattern.permute.xlu0 0
        %2630 = vperm.xlu0 %2629, %v2582
        %v2631 = vpop.permute.xlu0 %2630
        %2634 = vset.pattern.permute.xlu0 0
        %2635 = vperm.xlu0 %2634, %v2583
        %v2636 = vpop.permute.xlu0 %2635
        %2639 = vset.pattern.permute.xlu0 0
        %2640 = vperm.xlu0 %2639, %v2584
        %v2641 = vpop.permute.xlu0 %2640
        %2644 = vset.pattern.permute.xlu0 0
        %2645 = vperm.xlu0 %2644, %v2585
        %v2646 = vpop.permute.xlu0 %2645
        %2649 = vset.pattern.permute.xlu0 0
        %2650 = vperm.xlu0 %2649, %v2586
        %v2651 = vpop.permute.xlu0 %2650
        %2654 = vset.pattern.permute.xlu0 0
        %2655 = vperm.xlu0 %2654, %v2587
        %v2656 = vpop.permute.xlu0 %2655
        %2659 = vset.pattern.permute.xlu0 0
        %2660 = vperm.xlu0 %2659, %v2588
        %v2661 = vpop.permute.xlu0 %2660
        %2664 = vset.pattern.permute.xlu0 0
        %2665 = vperm.xlu0 %2664, %v2589
        %v2666 = vpop.permute.xlu0 %2665
        %2669 = vset.pattern.permute.xlu0 0
        %2670 = vperm.xlu0 %2669, %v2590
        %v2671 = vpop.permute.xlu0 %2670
        %2674 = vset.pattern.permute.xlu0 0
        %2675 = vperm.xlu0 %2674, %v2591
        %v2676 = vpop.permute.xlu0 %2675
        %2679 = vset.pattern.permute.xlu0 0
        %2680 = vperm.xlu0 %2679, %v2592
        %v2681 = vpop.permute.xlu0 %2680
        %2684 = vset.pattern.permute.xlu0 0
        %2685 = vperm.xlu0 %2684, %v2593
        %v2686 = vpop.permute.xlu0 %2685
        %2689 = vset.pattern.permute.xlu0 0
        %2690 = vperm.xlu0 %2689, %v2594
        %v2691 = vpop.permute.xlu0 %2690
        %2694 = vset.pattern.permute.xlu0 0
        %2695 = vperm.xlu0 %2694, %v2595
        %v2696 = vpop.permute.xlu0 %2695
        %2699 = vset.pattern.permute.xlu0 0
        %2700 = vperm.xlu0 %2699, %v2596
        %v2701 = vpop.permute.xlu0 %2700
        %2704 = vset.pattern.permute.xlu0 0
        %2705 = vperm.xlu0 %2704, %v2597
        %v2706 = vpop.permute.xlu0 %2705
        %2709 = vset.pattern.permute.xlu0 0
        %2710 = vperm.xlu0 %2709, %v2598
        %v2711 = vpop.permute.xlu0 %2710
        %2714 = vset.pattern.permute.xlu0 0
        %2715 = vperm.xlu0 %2714, %v2599
        %v2716 = vpop.permute.xlu0 %2715
        %2719 = vset.pattern.permute.xlu0 0
        %2720 = vperm.xlu0 %2719, %v2600
        %v2721 = vpop.permute.xlu0 %2720
        %2724 = vset.pattern.permute.xlu0 0
        %2725 = vperm.xlu0 %2724, %v2601
        %v2726 = vpop.permute.xlu0 %2725
        %2729 = vset.pattern.permute.xlu0 0
        %2730 = vperm.xlu0 %2729, %v2602
        %v2731 = vpop.permute.xlu0 %2730
        %2734 = vset.pattern.permute.xlu0 0
        %2735 = vperm.xlu0 %2734, %v2603
        %v2736 = vpop.permute.xlu0 %2735
        %2739 = vset.pattern.permute.xlu0 0
        %2740 = vperm.xlu0 %2739, %v2604
        %v2741 = vpop.permute.xlu0 %2740
        %2744 = vset.pattern.permute.xlu0 0
        %2745 = vperm.xlu0 %2744, %v2605
        %v2746 = vpop.permute.xlu0 %2745
        %2749 = vset.pattern.permute.xlu0 0
        %2750 = vperm.xlu0 %2749, %v2606
        %v2751 = vpop.permute.xlu0 %2750
        %2754 = vset.pattern.permute.xlu0 0
        %2755 = vperm.xlu0 %2754, %v2607
        %v2756 = vpop.permute.xlu0 %2755
        %2759 = vset.pattern.permute.xlu0 0
        %2760 = vperm.xlu0 %2759, %v2608
        %v2761 = vpop.permute.xlu0 %2760
        %2764 = vset.pattern.permute.xlu0 0
        %2765 = vperm.xlu0 %2764, %v2609
        %v2766 = vpop.permute.xlu0 %2765
        %2769 = vset.pattern.permute.xlu0 0
        %2770 = vperm.xlu0 %2769, %v2610
        %v2771 = vpop.permute.xlu0 %2770
        %v2774 = vlaneseq
        %v2775 = vshrl.u32 %v2774, 7
        %v2776 = vsub.s32 0, %v2775
        %v2777 = vrot.slane %v2612, %v2776
        %v2779 = vmul.f32 %v2616, %v2777
        %v2780 = vmul.f32 %v2621, %v2777
        %v2781 = vmul.f32 %v2626, %v2777
        %v2782 = vmul.f32 %v2631, %v2777
        %v2783 = vmul.f32 %v2636, %v2777
        %v2784 = vmul.f32 %v2641, %v2777
        %v2785 = vmul.f32 %v2646, %v2777
        %v2786 = vmul.f32 %v2651, %v2777
        %v2787 = vmul.f32 %v2656, %v2777
        %v2788 = vmul.f32 %v2661, %v2777
        %v2789 = vmul.f32 %v2666, %v2777
        %v2790 = vmul.f32 %v2671, %v2777
        %v2791 = vmul.f32 %v2676, %v2777
        %v2792 = vmul.f32 %v2681, %v2777
        %v2793 = vmul.f32 %v2686, %v2777
        %v2794 = vmul.f32 %v2691, %v2777
        %v2795 = vmul.f32 %v2696, %v2777
        %v2796 = vmul.f32 %v2701, %v2777
        %v2797 = vmul.f32 %v2706, %v2777
        %v2798 = vmul.f32 %v2711, %v2777
        %v2799 = vmul.f32 %v2716, %v2777
        %v2800 = vmul.f32 %v2721, %v2777
        %v2801 = vmul.f32 %v2726, %v2777
        %v2802 = vmul.f32 %v2731, %v2777
        %v2803 = vmul.f32 %v2736, %v2777
        %v2804 = vmul.f32 %v2741, %v2777
        %v2805 = vmul.f32 %v2746, %v2777
        %v2806 = vmul.f32 %v2751, %v2777
        %v2807 = vmul.f32 %v2756, %v2777
        %v2808 = vmul.f32 %v2761, %v2777
        %v2809 = vmul.f32 %v2766, %v2777
        %v2810 = vmul.f32 %v2771, %v2777
        %v2811 = vadd.f32 %v2547, %v2779
        %v2812 = vadd.f32 %v2548, %v2780
        %v2813 = vadd.f32 %v2549, %v2781
        %v2814 = vadd.f32 %v2550, %v2782
        %v2815 = vadd.f32 %v2551, %v2783
        %v2816 = vadd.f32 %v2552, %v2784
        %v2817 = vadd.f32 %v2553, %v2785
        %v2818 = vadd.f32 %v2554, %v2786
        %v2819 = vadd.f32 %v2555, %v2787
        %v2820 = vadd.f32 %v2556, %v2788
        %v2821 = vadd.f32 %v2557, %v2789
        %v2822 = vadd.f32 %v2558, %v2790
        %v2823 = vadd.f32 %v2559, %v2791
        %v2824 = vadd.f32 %v2560, %v2792
        %v2825 = vadd.f32 %v2561, %v2793
        %v2826 = vadd.f32 %v2562, %v2794
        %v2827 = vadd.f32 %v2563, %v2795
        %v2828 = vadd.f32 %v2564, %v2796
        %v2829 = vadd.f32 %v2565, %v2797
        %v2830 = vadd.f32 %v2566, %v2798
        %v2831 = vadd.f32 %v2567, %v2799
        %v2832 = vadd.f32 %v2568, %v2800
        %v2833 = vadd.f32 %v2569, %v2801
        %v2834 = vadd.f32 %v2570, %v2802
        %v2835 = vadd.f32 %v2571, %v2803
        %v2836 = vadd.f32 %v2572, %v2804
        %v2837 = vadd.f32 %v2573, %v2805
        %v2838 = vadd.f32 %v2574, %v2806
        %v2839 = vadd.f32 %v2575, %v2807
        %v2840 = vadd.f32 %v2576, %v2808
        %v2841 = vadd.f32 %v2577, %v2809
        %v2842 = vadd.f32 %v2578, %v2810
        %v2843 = vld [vmem:[%s2] sm:$0x1]
        %v2845 = vlaneseq
        %v2846 = vshrl.u32 %v2845, 7
        %v2847 = vsub.s32 0, %v2846
        %v2848 = vrot.slane %v2843, %v2847
        %v2850 = vadd.f32 %v2811, %v2848
        %v2851 = vadd.f32 %v2812, %v2848
        %v2852 = vadd.f32 %v2813, %v2848
        %v2853 = vadd.f32 %v2814, %v2848
        %v2854 = vadd.f32 %v2815, %v2848
        %v2855 = vadd.f32 %v2816, %v2848
        %v2856 = vadd.f32 %v2817, %v2848
        %v2857 = vadd.f32 %v2818, %v2848
        %v2858 = vadd.f32 %v2819, %v2848
        %v2859 = vadd.f32 %v2820, %v2848
        %v2860 = vadd.f32 %v2821, %v2848
        %v2861 = vadd.f32 %v2822, %v2848
        %v2862 = vadd.f32 %v2823, %v2848
        %v2863 = vadd.f32 %v2824, %v2848
        %v2864 = vadd.f32 %v2825, %v2848
        %v2865 = vadd.f32 %v2826, %v2848
        %v2866 = vadd.f32 %v2827, %v2848
        %v2867 = vadd.f32 %v2828, %v2848
        %v2868 = vadd.f32 %v2829, %v2848
        %v2869 = vadd.f32 %v2830, %v2848
        %v2870 = vadd.f32 %v2831, %v2848
        %v2871 = vadd.f32 %v2832, %v2848
        %v2872 = vadd.f32 %v2833, %v2848
        %v2873 = vadd.f32 %v2834, %v2848
        %v2874 = vadd.f32 %v2835, %v2848
        %v2875 = vadd.f32 %v2836, %v2848
        %v2876 = vadd.f32 %v2837, %v2848
        %v2877 = vadd.f32 %v2838, %v2848
        %v2878 = vadd.f32 %v2839, %v2848
        %v2879 = vadd.f32 %v2840, %v2848
        %v2880 = vadd.f32 %v2841, %v2848
        %v2881 = vadd.f32 %v2842, %v2848
        %v2882 = vmax.f32 %v2850, 0.0
        %v2883 = vmax.f32 %v2851, 0.0
        %v2884 = vmax.f32 %v2852, 0.0
        %v2885 = vmax.f32 %v2853, 0.0
        %v2886 = vmax.f32 %v2854, 0.0
        %v2887 = vmax.f32 %v2855, 0.0
        %v2888 = vmax.f32 %v2856, 0.0
        %v2889 = vmax.f32 %v2857, 0.0
        %v2890 = vmax.f32 %v2858, 0.0
        %v2891 = vmax.f32 %v2859, 0.0
        %v2892 = vmax.f32 %v2860, 0.0
        %v2893 = vmax.f32 %v2861, 0.0
        %v2894 = vmax.f32 %v2862, 0.0
        %v2895 = vmax.f32 %v2863, 0.0
        %v2896 = vmax.f32 %v2864, 0.0
        %v2897 = vmax.f32 %v2865, 0.0
        %v2898 = vmax.f32 %v2866, 0.0
        %v2899 = vmax.f32 %v2867, 0.0
        %v2900 = vmax.f32 %v2868, 0.0
        %v2901 = vmax.f32 %v2869, 0.0
        %v2902 = vmax.f32 %v2870, 0.0
        %v2903 = vmax.f32 %v2871, 0.0
        %v2904 = vmax.f32 %v2872, 0.0
        %v2905 = vmax.f32 %v2873, 0.0
        %v2906 = vmax.f32 %v2874, 0.0
        %v2907 = vmax.f32 %v2875, 0.0
        %v2908 = vmax.f32 %v2876, 0.0
        %v2909 = vmax.f32 %v2877, 0.0
        %v2910 = vmax.f32 %v2878, 0.0
        %v2911 = vmax.f32 %v2879, 0.0
        %v2912 = vmax.f32 %v2880, 0.0
        %v2913 = vmax.f32 %v2881, 0.0
        %vm2914 = vcmask 130048
        %2915 = vst.msk [vmem:[#allocation3] sm:$0xff] %vm2914, 0.0
        %2916 = vst.msk [vmem:[#allocation3 + $0x8] sm:$0xff] %vm2914, 0.0
        %vm2917 = vcmask 123904
        %2918 = vst.msk [vmem:[#allocation3 + $0x10] sm:$0x3] %vm2917, 0.0
        %2919 = vst.msk [vmem:[#allocation3 + $0x18] sm:$0xff] %vm2914, 0.0
        %2920 = vst.msk [vmem:[#allocation3 + $0x20] sm:$0xff] %vm2914, 0.0
        %2921 = vst.msk [vmem:[#allocation3 + $0x28] sm:$0x3] %vm2917, 0.0
        %2922 = vst.msk [vmem:[#allocation3 + $0x30] sm:$0xff] %vm2914, 0.0
        %2923 = vst.msk [vmem:[#allocation3 + $0x38] sm:$0xff] %vm2914, 0.0
        %2924 = vst.msk [vmem:[#allocation3 + $0x40] sm:$0x3] %vm2917, 0.0
        %2925 = vst.msk [vmem:[#allocation3 + $0x48] sm:$0xff] %vm2914, 0.0
        %2926 = vst.msk [vmem:[#allocation3 + $0x50] sm:$0xff] %vm2914, 0.0
        %2927 = vst.msk [vmem:[#allocation3 + $0x58] sm:$0x3] %vm2917, 0.0
        %2928 = vst.msk [vmem:[#allocation3 + $0x60] sm:$0xff] %vm2914, 0.0
        %2929 = vst.msk [vmem:[#allocation3 + $0x68] sm:$0xff] %vm2914, 0.0
        %2930 = vst.msk [vmem:[#allocation3 + $0x70] sm:$0x3] %vm2917, 0.0
        %2931 = vst.msk [vmem:[#allocation3 + $0x78] sm:$0xff] %vm2914, 0.0
        %2932 = vst.msk [vmem:[#allocation3 + $0x80] sm:$0xff] %vm2914, 0.0
        %2933 = vst.msk [vmem:[#allocation3 + $0x88] sm:$0x3] %vm2917, 0.0
        %2934 = vst.msk [vmem:[#allocation3 + $0x90] sm:$0xff] %vm2914, 0.0
        %2935 = vst.msk [vmem:[#allocation3 + $0x98] sm:$0xff] %vm2914, 0.0
        %2936 = vst.msk [vmem:[#allocation3 + $0xa0] sm:$0x3] %vm2917, 0.0
        %2937 = vst.msk [vmem:[#allocation3 + $0xa8] sm:$0xff] %vm2914, 0.0
        %2938 = vst.msk [vmem:[#allocation3 + $0xb0] sm:$0xff] %vm2914, 0.0
        %2939 = vst.msk [vmem:[#allocation3 + $0xb8] sm:$0x3] %vm2917, 0.0
        %2940 = vst.msk [vmem:[#allocation3 + $0xc0] sm:$0xff] %vm2914, 0.0
        %2941 = vst.msk [vmem:[#allocation3 + $0xc8] sm:$0xff] %vm2914, 0.0
        %2942 = vst.msk [vmem:[#allocation3 + $0xd0] sm:$0x3] %vm2917, 0.0
        %2943 = vst.msk [vmem:[#allocation3 + $0xd8] sm:$0xff] %vm2914, 0.0
        %2944 = vst.msk [vmem:[#allocation3 + $0xe0] sm:$0xff] %vm2914, 0.0
        %2945 = vst.msk [vmem:[#allocation3 + $0xe8] sm:$0x3] %vm2917, 0.0
        %2946 = vst.msk [vmem:[#allocation3 + $0xf0] sm:$0xff] %vm2914, 0.0
        %2947 = vst.msk [vmem:[#allocation3 + $0xf8] sm:$0xff] %vm2914, 0.0
        %2948 = vst.msk [vmem:[#allocation3 + $0x100] sm:$0x3] %vm2917, 0.0
        %2949 = vst.msk [vmem:[#allocation3 + $0x108] sm:$0xff] %vm2914, 0.0
        %2950 = vst.msk [vmem:[#allocation3 + $0x110] sm:$0xff] %vm2914, 0.0
        %2951 = vst.msk [vmem:[#allocation3 + $0x118] sm:$0x3] %vm2917, 0.0
        %2952 = vst.msk [vmem:[#allocation3 + $0x120] sm:$0xff] %vm2914, 0.0
        %2953 = vst.msk [vmem:[#allocation3 + $0x128] sm:$0xff] %vm2914, 0.0
        %2954 = vst.msk [vmem:[#allocation3 + $0x130] sm:$0x3] %vm2917, 0.0
        %2955 = vst.msk [vmem:[#allocation3 + $0x138] sm:$0xff] %vm2914, 0.0
        %2956 = vst.msk [vmem:[#allocation3 + $0x140] sm:$0xff] %vm2914, 0.0
        %2957 = vst.msk [vmem:[#allocation3 + $0x148] sm:$0x3] %vm2917, 0.0
        %2958 = vst.msk [vmem:[#allocation3 + $0x150] sm:$0xff] %vm2914, 0.0
        %2959 = vst.msk [vmem:[#allocation3 + $0x158] sm:$0xff] %vm2914, 0.0
        %2960 = vst.msk [vmem:[#allocation3 + $0x160] sm:$0x3] %vm2917, 0.0
        %2961 = vst.msk [vmem:[#allocation3 + $0x168] sm:$0xff] %vm2914, 0.0
        %2962 = vst.msk [vmem:[#allocation3 + $0x170] sm:$0xff] %vm2914, 0.0
        %2963 = vst.msk [vmem:[#allocation3 + $0x178] sm:$0x3] %vm2917, 0.0
        %2964 = vst.msk [vmem:[#allocation3 + $0x180] sm:$0xff] %vm2914, 0.0
        %2965 = vst.msk [vmem:[#allocation3 + $0x188] sm:$0xff] %vm2914, 0.0
        %2966 = vst.msk [vmem:[#allocation3 + $0x190] sm:$0x3] %vm2917, 0.0
        %2967 = vst.msk [vmem:[#allocation3 + $0x198] sm:$0xff] %vm2914, 0.0
        %2968 = vst.msk [vmem:[#allocation3 + $0x1a0] sm:$0xff] %vm2914, 0.0
        %2969 = vst.msk [vmem:[#allocation3 + $0x1a8] sm:$0x3] %vm2917, 0.0
        %s2970 = scalar_lea.vmem [#allocation3], 24
        %2971 = vst.msk [vmem:[%s2970 + $0x1] sm:$0xff] %vm2914, %v2882
        %2972 = vst.msk [vmem:[%s2970 + $0x9] sm:$0xff] %vm2914, %v2883
        %2973 = vst.msk [vmem:[%s2970 + $0x19] sm:$0xff] %vm2914, %v2884
        %2974 = vst.msk [vmem:[%s2970 + $0x21] sm:$0xff] %vm2914, %v2885
        %2975 = vst.msk [vmem:[%s2970 + $0x31] sm:$0xff] %vm2914, %v2886
        %2976 = vst.msk [vmem:[%s2970 + $0x39] sm:$0xff] %vm2914, %v2887
        %2977 = vst.msk [vmem:[%s2970 + $0x49] sm:$0xff] %vm2914, %v2888
        %2978 = vst.msk [vmem:[%s2970 + $0x51] sm:$0xff] %vm2914, %v2889
        %2979 = vst.msk [vmem:[%s2970 + $0x61] sm:$0xff] %vm2914, %v2890
        %2980 = vst.msk [vmem:[%s2970 + $0x69] sm:$0xff] %vm2914, %v2891
        %2981 = vst.msk [vmem:[%s2970 + $0x79] sm:$0xff] %vm2914, %v2892
        %2982 = vst.msk [vmem:[%s2970 + $0x81] sm:$0xff] %vm2914, %v2893
        %2983 = vst.msk [vmem:[%s2970 + $0x91] sm:$0xff] %vm2914, %v2894
        %2984 = vst.msk [vmem:[%s2970 + $0x99] sm:$0xff] %vm2914, %v2895
        %2985 = vst.msk [vmem:[%s2970 + $0xa9] sm:$0xff] %vm2914, %v2896
        %2986 = vst.msk [vmem:[%s2970 + $0xb1] sm:$0xff] %vm2914, %v2897
        %2987 = vst.msk [vmem:[%s2970 + $0xc1] sm:$0xff] %vm2914, %v2898
        %2988 = vst.msk [vmem:[%s2970 + $0xc9] sm:$0xff] %vm2914, %v2899
        %2989 = vst.msk [vmem:[%s2970 + $0xd9] sm:$0xff] %vm2914, %v2900
        %2990 = vst.msk [vmem:[%s2970 + $0xe1] sm:$0xff] %vm2914, %v2901
        %2991 = vst.msk [vmem:[%s2970 + $0xf1] sm:$0xff] %vm2914, %v2902
        %2992 = vst.msk [vmem:[%s2970 + $0xf9] sm:$0xff] %vm2914, %v2903
        %2993 = vst.msk [vmem:[%s2970 + $0x109] sm:$0xff] %vm2914, %v2904
        %2994 = vst.msk [vmem:[%s2970 + $0x111] sm:$0xff] %vm2914, %v2905
        %2995 = vst.msk [vmem:[%s2970 + $0x121] sm:$0xff] %vm2914, %v2906
        %2996 = vst.msk [vmem:[%s2970 + $0x129] sm:$0xff] %vm2914, %v2907
        %2997 = vst.msk [vmem:[%s2970 + $0x139] sm:$0xff] %vm2914, %v2908
        %2998 = vst.msk [vmem:[%s2970 + $0x141] sm:$0xff] %vm2914, %v2909
        %2999 = vst.msk [vmem:[%s2970 + $0x151] sm:$0xff] %vm2914, %v2910
        %3000 = vst.msk [vmem:[%s2970 + $0x159] sm:$0xff] %vm2914, %v2911
        %3001 = vst.msk [vmem:[%s2970 + $0x169] sm:$0xff] %vm2914, %v2912
        %3002 = vst.msk [vmem:[%s2970 + $0x171] sm:$0xff] %vm2914, %v2913
        %v3003 = vld [vmem:[#allocation3] sm:$0xff]
        %v3004 = vld [vmem:[#allocation3 + $0x8] sm:$0xff]
        %v3005 = vld [vmem:[#allocation3 + $0x18] sm:$0xff]
        %v3006 = vld [vmem:[#allocation3 + $0x20] sm:$0xff]
        %v3007 = vld [vmem:[#allocation3 + $0x30] sm:$0xff]
        %v3008 = vld [vmem:[#allocation3 + $0x38] sm:$0xff]
        %v3009 = vld [vmem:[#allocation3 + $0x48] sm:$0xff]
        %v3010 = vld [vmem:[#allocation3 + $0x50] sm:$0xff]
        %v3011 = vld [vmem:[#allocation3 + $0x60] sm:$0xff]
        %v3012 = vld [vmem:[#allocation3 + $0x68] sm:$0xff]
        %v3013 = vld [vmem:[#allocation3 + $0x78] sm:$0xff]
        %v3014 = vld [vmem:[#allocation3 + $0x80] sm:$0xff]
        %v3015 = vld [vmem:[#allocation3 + $0x90] sm:$0xff]
        %v3016 = vld [vmem:[#allocation3 + $0x98] sm:$0xff]
        %v3017 = vld [vmem:[#allocation3 + $0xa8] sm:$0xff]
        %v3018 = vld [vmem:[#allocation3 + $0xb0] sm:$0xff]
        %v3019 = vld [vmem:[#allocation3 + $0xc0] sm:$0xff]
        %v3020 = vld [vmem:[#allocation3 + $0xc8] sm:$0xff]
        %v3021 = vld [vmem:[#allocation3 + $0xd8] sm:$0xff]
        %v3022 = vld [vmem:[#allocation3 + $0xe0] sm:$0xff]
        %v3023 = vld [vmem:[#allocation3 + $0xf0] sm:$0xff]
        %v3024 = vld [vmem:[#allocation3 + $0xf8] sm:$0xff]
        %v3025 = vld [vmem:[#allocation3 + $0x108] sm:$0xff]
        %v3026 = vld [vmem:[#allocation3 + $0x110] sm:$0xff]
        %v3027 = vld [vmem:[#allocation3 + $0x120] sm:$0xff]
        %v3028 = vld [vmem:[#allocation3 + $0x128] sm:$0xff]
        %v3029 = vld [vmem:[#allocation3 + $0x138] sm:$0xff]
        %v3030 = vld [vmem:[#allocation3 + $0x140] sm:$0xff]
        %v3031 = vld [vmem:[#allocation3 + $0x150] sm:$0xff]
        %v3032 = vld [vmem:[#allocation3 + $0x158] sm:$0xff]
        %v3033 = vld [vmem:[#allocation3 + $0x168] sm:$0xff]
        %v3034 = vld [vmem:[#allocation3 + $0x170] sm:$0xff]
        %v3035 = vpack.c.bf16 %v3004, %v3003
        %v3036 = vpack.c.bf16 %v3006, %v3005
        %v3037 = vpack.c.bf16 %v3008, %v3007
        %v3038 = vpack.c.bf16 %v3010, %v3009
        %v3039 = vpack.c.bf16 %v3012, %v3011
        %v3040 = vpack.c.bf16 %v3014, %v3013
        %v3041 = vpack.c.bf16 %v3016, %v3015
        %v3042 = vpack.c.bf16 %v3018, %v3017
        %v3043 = vpack.c.bf16 %v3020, %v3019
        %v3044 = vpack.c.bf16 %v3022, %v3021
        %v3045 = vpack.c.bf16 %v3024, %v3023
        %v3046 = vpack.c.bf16 %v3026, %v3025
        %v3047 = vpack.c.bf16 %v3028, %v3027
        %v3048 = vpack.c.bf16 %v3030, %v3029
        %v3049 = vpack.c.bf16 %v3032, %v3031
        %v3050 = vpack.c.bf16 %v3034, %v3033
        %v3051 = vld [vmem:[%s3] sm:$0xf]
        %v3052 = vld [vmem:[%s3 + $0x4] sm:$0xf]
        %v3053 = vld [vmem:[#allocation3 + $0x1] sm:$0xff]
        %v3054 = vld [vmem:[#allocation3 + $0x9] sm:$0xff]
        %v3055 = vld [vmem:[#allocation3 + $0x19] sm:$0xff]
        %v3056 = vld [vmem:[#allocation3 + $0x21] sm:$0xff]
        %v3057 = vld [vmem:[#allocation3 + $0x31] sm:$0xff]
        %v3058 = vld [vmem:[#allocation3 + $0x39] sm:$0xff]
        %v3059 = vld [vmem:[#allocation3 + $0x49] sm:$0xff]
        %v3060 = vld [vmem:[#allocation3 + $0x51] sm:$0xff]
        %v3061 = vld [vmem:[#allocation3 + $0x61] sm:$0xff]
        %v3062 = vld [vmem:[#allocation3 + $0x69] sm:$0xff]
        %v3063 = vld [vmem:[#allocation3 + $0x79] sm:$0xff]
        %v3064 = vld [vmem:[#allocation3 + $0x81] sm:$0xff]
        %v3065 = vld [vmem:[#allocation3 + $0x91] sm:$0xff]
        %v3066 = vld [vmem:[#allocation3 + $0x99] sm:$0xff]
        %v3067 = vld [vmem:[#allocation3 + $0xa9] sm:$0xff]
        %v3068 = vld [vmem:[#allocation3 + $0xb1] sm:$0xff]
        %v3069 = vld [vmem:[#allocation3 + $0xc1] sm:$0xff]
        %v3070 = vld [vmem:[#allocation3 + $0xc9] sm:$0xff]
        %v3071 = vld [vmem:[#allocation3 + $0xd9] sm:$0xff]
        %v3072 = vld [vmem:[#allocation3 + $0xe1] sm:$0xff]
        %v3073 = vld [vmem:[#allocation3 + $0xf1] sm:$0xff]
        %v3074 = vld [vmem:[#allocation3 + $0xf9] sm:$0xff]
        %v3075 = vld [vmem:[#allocation3 + $0x109] sm:$0xff]
        %v3076 = vld [vmem:[#allocation3 + $0x111] sm:$0xff]
        %v3077 = vld [vmem:[#allocation3 + $0x121] sm:$0xff]
        %v3078 = vld [vmem:[#allocation3 + $0x129] sm:$0xff]
        %v3079 = vld [vmem:[#allocation3 + $0x139] sm:$0xff]
        %v3080 = vld [vmem:[#allocation3 + $0x141] sm:$0xff]
        %v3081 = vld [vmem:[#allocation3 + $0x151] sm:$0xff]
        %v3082 = vld [vmem:[#allocation3 + $0x159] sm:$0xff]
        %v3083 = vld [vmem:[#allocation3 + $0x169] sm:$0xff]
        %v3084 = vld [vmem:[#allocation3 + $0x171] sm:$0xff]
        %v3085 = vpack.c.bf16 %v3054, %v3053
        %v3086 = vpack.c.bf16 %v3056, %v3055
        %v3087 = vpack.c.bf16 %v3058, %v3057
        %v3088 = vpack.c.bf16 %v3060, %v3059
        %v3089 = vpack.c.bf16 %v3062, %v3061
        %v3090 = vpack.c.bf16 %v3064, %v3063
        %v3091 = vpack.c.bf16 %v3066, %v3065
        %v3092 = vpack.c.bf16 %v3068, %v3067
        %v3093 = vpack.c.bf16 %v3070, %v3069
        %v3094 = vpack.c.bf16 %v3072, %v3071
        %v3095 = vpack.c.bf16 %v3074, %v3073
        %v3096 = vpack.c.bf16 %v3076, %v3075
        %v3097 = vpack.c.bf16 %v3078, %v3077
        %v3098 = vpack.c.bf16 %v3080, %v3079
        %v3099 = vpack.c.bf16 %v3082, %v3081
        %v3100 = vpack.c.bf16 %v3084, %v3083
        %s3101 = scalar_lea.vmem %s3, 8
        %v3102 = vld [vmem:[%s3101] sm:$0xf]
        %v3103 = vld [vmem:[%s3101 + $0x4] sm:$0xf]
        %v3106 = vunpack.c.l.b16 %v3102
        %v3107 = vunpack.c.l.b16 %v3103
        %v3108 = vpack.c.b16 %v3107, %v3106
        %v3111 = vsel %vm2914, %v3085, 0
        %v3114 = vsel %vm2914, %v3086, 0
        %v3117 = vsel %vm2914, %v3087, 0
        %v3120 = vsel %vm2914, %v3088, 0
        %v3123 = vsel %vm2914, %v3089, 0
        %v3126 = vsel %vm2914, %v3090, 0
        %v3129 = vsel %vm2914, %v3091, 0
        %v3132 = vsel %vm2914, %v3092, 0
        %v3135 = vsel %vm2914, %v3093, 0
        %v3138 = vsel %vm2914, %v3094, 0
        %v3141 = vsel %vm2914, %v3095, 0
        %v3144 = vsel %vm2914, %v3096, 0
        %v3147 = vsel %vm2914, %v3097, 0
        %v3150 = vsel %vm2914, %v3098, 0
        %v3153 = vsel %vm2914, %v3099, 0
        %v3156 = vsel %vm2914, %v3100, 0
        %3158 = vmatprep.subr.bf16.mxu0 0
        %3159 = vmatpush1.bf16.msra.mxu0 %v3108
        %3160 = vmatprep.subr.bf16.mxu0 0
        %3161 = vmatpush1.bf16.msra.mxu0 0
        %3162 = vmatprep.subr.bf16.mxu0 0
        %3163 = vmatpush1.bf16.msra.mxu0 0
        %3164 = vmatprep.subr.bf16.mxu0 0
        %3165 = vmatpush1.bf16.msra.mxu0 0
        %3166 = vmatprep.subr.bf16.mxu0 0
        %3167 = vmatpush1.bf16.msra.mxu0 0
        %3168 = vmatprep.subr.bf16.mxu0 0
        %3169 = vmatpush1.bf16.msra.mxu0 0
        %3170 = vmatprep.subr.bf16.mxu0 0
        %3171 = vmatpush1.bf16.msra.mxu0 0
        %3172 = vmatprep.subr.bf16.mxu0 0
        %3173 = vmatpush1.bf16.msra.mxu0 0
        %3174 = vmatprep.subr.bf16.mxu0 0
        %3175 = vmatpush1.bf16.msra.mxu0 0
        %3176 = vmatprep.subr.bf16.mxu0 0
        %3177 = vmatpush1.bf16.msra.mxu0 0
        %3178 = vmatprep.subr.bf16.mxu0 0
        %3179 = vmatpush1.bf16.msra.mxu0 0
        %3180 = vmatprep.subr.bf16.mxu0 0
        %3181 = vmatpush1.bf16.msra.mxu0 0
        %3182 = vmatprep.subr.bf16.mxu0 0
        %3183 = vmatpush1.bf16.msra.mxu0 0
        %3184 = vmatprep.subr.bf16.mxu0 0
        %3185 = vmatpush1.bf16.msra.mxu0 0
        %3186 = vmatprep.subr.bf16.mxu0 0
        %3187 = vmatpush1.bf16.msra.mxu0 0
        %3188 = vmatprep.subr.bf16.mxu0 0
        %3189 = vmatpush1.bf16.msra.mxu0 0
        %3190 = vmatprep.mubr.bf16.mxu0 0
        %3191 = vmatmul.mubr.bf16.gmra.mrb[0].mxu0 %v3111
        %v3192 = vpop.f32.mrb[0].mxu0
        %v3193 = vadd.f32 0.0, %v3192
        %v3194 = vpop.f32.mrb[0].mxu0
        %v3195 = vpop.f32.mrb[0].mxu0
        %v3196 = vadd.f32 0.0, %v3195
        %v3197 = vpop.f32.mrb[0].mxu0
        %3198 = vmatprep.mubr.bf16.mxu0 0
        %3199 = vmatmul.mubr.bf16.gmra.mrb[0].mxu0 %v3114
        %v3200 = vpop.f32.mrb[0].mxu0
        %v3201 = vadd.f32 0.0, %v3200
        %v3202 = vpop.f32.mrb[0].mxu0
        %v3203 = vpop.f32.mrb[0].mxu0
        %v3204 = vadd.f32 0.0, %v3203
        %v3205 = vpop.f32.mrb[0].mxu0
        %3206 = vmatprep.mubr.bf16.mxu0 0
        %3207 = vmatmul.mubr.bf16.gmra.mrb[0].mxu0 %v3117
        %v3208 = vpop.f32.mrb[0].mxu0
        %v3209 = vadd.f32 0.0, %v3208
        %v3210 = vpop.f32.mrb[0].mxu0
        %v3211 = vpop.f32.mrb[0].mxu0
        %v3212 = vadd.f32 0.0, %v3211
        %v3213 = vpop.f32.mrb[0].mxu0
        %3214 = vmatprep.mubr.bf16.mxu0 0
        %3215 = vmatmul.mubr.bf16.gmra.mrb[0].mxu0 %v3120
        %v3216 = vpop.f32.mrb[0].mxu0
        %v3217 = vadd.f32 0.0, %v3216
        %v3218 = vpop.f32.mrb[0].mxu0
        %v3219 = vpop.f32.mrb[0].mxu0
        %v3220 = vadd.f32 0.0, %v3219
        %v3221 = vpop.f32.mrb[0].mxu0
        %3222 = vmatprep.mubr.bf16.mxu0 0
        %3223 = vmatmul.mubr.bf16.gmra.mrb[0].mxu0 %v3123
        %v3224 = vpop.f32.mrb[0].mxu0
        %v3225 = vadd.f32 0.0, %v3224
        %v3226 = vpop.f32.mrb[0].mxu0
        %v3227 = vpop.f32.mrb[0].mxu0
        %v3228 = vadd.f32 0.0, %v3227
        %v3229 = vpop.f32.mrb[0].mxu0
        %3230 = vmatprep.mubr.bf16.mxu0 0
        %3231 = vmatmul.mubr.bf16.gmra.mrb[0].mxu0 %v3126
        %v3232 = vpop.f32.mrb[0].mxu0
        %v3233 = vadd.f32 0.0, %v3232
        %v3234 = vpop.f32.mrb[0].mxu0
        %v3235 = vpop.f32.mrb[0].mxu0
        %v3236 = vadd.f32 0.0, %v3235
        %v3237 = vpop.f32.mrb[0].mxu0
        %3238 = vmatprep.mubr.bf16.mxu0 0
        %3239 = vmatmul.mubr.bf16.gmra.mrb[0].mxu0 %v3129
        %v3240 = vpop.f32.mrb[0].mxu0
        %v3241 = vadd.f32 0.0, %v3240
        %v3242 = vpop.f32.mrb[0].mxu0
        %v3243 = vpop.f32.mrb[0].mxu0
        %v3244 = vadd.f32 0.0, %v3243
        %v3245 = vpop.f32.mrb[0].mxu0
        %3246 = vmatprep.mubr.bf16.mxu0 0
        %3247 = vmatmul.mubr.bf16.gmra.mrb[0].mxu0 %v3132
        %v3248 = vpop.f32.mrb[0].mxu0
        %v3249 = vadd.f32 0.0, %v3248
        %v3250 = vpop.f32.mrb[0].mxu0
        %v3251 = vpop.f32.mrb[0].mxu0
        %v3252 = vadd.f32 0.0, %v3251
        %v3253 = vpop.f32.mrb[0].mxu0
        %3254 = vmatprep.mubr.bf16.mxu0 0
        %3255 = vmatmul.mubr.bf16.gmra.mrb[0].mxu0 %v3135
        %v3256 = vpop.f32.mrb[0].mxu0
        %v3257 = vadd.f32 0.0, %v3256
        %v3258 = vpop.f32.mrb[0].mxu0
        %v3259 = vpop.f32.mrb[0].mxu0
        %v3260 = vadd.f32 0.0, %v3259
        %v3261 = vpop.f32.mrb[0].mxu0
        %3262 = vmatprep.mubr.bf16.mxu0 0
        %3263 = vmatmul.mubr.bf16.gmra.mrb[0].mxu0 %v3138
        %v3264 = vpop.f32.mrb[0].mxu0
        %v3265 = vadd.f32 0.0, %v3264
        %v3266 = vpop.f32.mrb[0].mxu0
        %v3267 = vpop.f32.mrb[0].mxu0
        %v3268 = vadd.f32 0.0, %v3267
        %v3269 = vpop.f32.mrb[0].mxu0
        %3270 = vmatprep.mubr.bf16.mxu0 0
        %3271 = vmatmul.mubr.bf16.gmra.mrb[0].mxu0 %v3141
        %v3272 = vpop.f32.mrb[0].mxu0
        %v3273 = vadd.f32 0.0, %v3272
        %v3274 = vpop.f32.mrb[0].mxu0
        %v3275 = vpop.f32.mrb[0].mxu0
        %v3276 = vadd.f32 0.0, %v3275
        %v3277 = vpop.f32.mrb[0].mxu0
        %3278 = vmatprep.mubr.bf16.mxu0 0
        %3279 = vmatmul.mubr.bf16.gmra.mrb[0].mxu0 %v3144
        %v3280 = vpop.f32.mrb[0].mxu0
        %v3281 = vadd.f32 0.0, %v3280
        %v3282 = vpop.f32.mrb[0].mxu0
        %v3283 = vpop.f32.mrb[0].mxu0
        %v3284 = vadd.f32 0.0, %v3283
        %v3285 = vpop.f32.mrb[0].mxu0
        %3286 = vmatprep.mubr.bf16.mxu0 0
        %3287 = vmatmul.mubr.bf16.gmra.mrb[0].mxu0 %v3147
        %v3288 = vpop.f32.mrb[0].mxu0
        %v3289 = vadd.f32 0.0, %v3288
        %v3290 = vpop.f32.mrb[0].mxu0
        %v3291 = vpop.f32.mrb[0].mxu0
        %v3292 = vadd.f32 0.0, %v3291
        %v3293 = vpop.f32.mrb[0].mxu0
        %3294 = vmatprep.mubr.bf16.mxu0 0
        %3295 = vmatmul.mubr.bf16.gmra.mrb[0].mxu0 %v3150
        %v3296 = vpop.f32.mrb[0].mxu0
        %v3297 = vadd.f32 0.0, %v3296
        %v3298 = vpop.f32.mrb[0].mxu0
        %v3299 = vpop.f32.mrb[0].mxu0
        %v3300 = vadd.f32 0.0, %v3299
        %v3301 = vpop.f32.mrb[0].mxu0
        %3302 = vmatprep.mubr.bf16.mxu0 0
        %3303 = vmatmul.mubr.bf16.gmra.mrb[0].mxu0 %v3153
        %v3304 = vpop.f32.mrb[0].mxu0
        %v3305 = vadd.f32 0.0, %v3304
        %v3306 = vpop.f32.mrb[0].mxu0
        %v3307 = vpop.f32.mrb[0].mxu0
        %v3308 = vadd.f32 0.0, %v3307
        %v3309 = vpop.f32.mrb[0].mxu0
        %3310 = vmatprep.mubr.bf16.mxu0 0
        %3311 = vmatmul.mubr.bf16.gmra.mrb[0].mxu0 %v3156
        %v3312 = vpop.f32.mrb[0].mxu0
        %v3313 = vadd.f32 0.0, %v3312
        %v3314 = vpop.f32.mrb[0].mxu0
        %v3315 = vpop.f32.mrb[0].mxu0
        %v3316 = vadd.f32 0.0, %v3315
        %v3317 = vpop.f32.mrb[0].mxu0
        %3318 = vdwg.mxu0
        %v3321 = vunpack.c.l.b16 %v3051
        %v3322 = vunpack.c.l.b16 %v3052
        %v3323 = vpack.c.b16 %v3322, %v3321
        %v3326 = vsel %vm2914, %v3035, 0
        %v3329 = vsel %vm2914, %v3036, 0
        %v3332 = vsel %vm2914, %v3037, 0
        %v3335 = vsel %vm2914, %v3038, 0
        %v3338 = vsel %vm2914, %v3039, 0
        %v3341 = vsel %vm2914, %v3040, 0
        %v3344 = vsel %vm2914, %v3041, 0
        %v3347 = vsel %vm2914, %v3042, 0
        %v3350 = vsel %vm2914, %v3043, 0
        %v3353 = vsel %vm2914, %v3044, 0
        %v3356 = vsel %vm2914, %v3045, 0
        %v3359 = vsel %vm2914, %v3046, 0
        %v3362 = vsel %vm2914, %v3047, 0
        %v3365 = vsel %vm2914, %v3048, 0
        %v3368 = vsel %vm2914, %v3049, 0
        %v3371 = vsel %vm2914, %v3050, 0
        %3373 = vmatprep.subr.bf16.mxu0 0
        %3374 = vmatpush1.bf16.msra.mxu0 %v3323
        %3375 = vmatprep.subr.bf16.mxu0 0
        %3376 = vmatpush1.bf16.msra.mxu0 0
        %3377 = vmatprep.subr.bf16.mxu0 0
        %3378 = vmatpush1.bf16.msra.mxu0 0
        %3379 = vmatprep.subr.bf16.mxu0 0
        %3380 = vmatpush1.bf16.msra.mxu0 0
        %3381 = vmatprep.subr.bf16.mxu0 0
        %3382 = vmatpush1.bf16.msra.mxu0 0
        %3383 = vmatprep.subr.bf16.mxu0 0
        %3384 = vmatpush1.bf16.msra.mxu0 0
        %3385 = vmatprep.subr.bf16.mxu0 0
        %3386 = vmatpush1.bf16.msra.mxu0 0
        %3387 = vmatprep.subr.bf16.mxu0 0
        %3388 = vmatpush1.bf16.msra.mxu0 0
        %3389 = vmatprep.subr.bf16.mxu0 0
        %3390 = vmatpush1.bf16.msra.mxu0 0
        %3391 = vmatprep.subr.bf16.mxu0 0
        %3392 = vmatpush1.bf16.msra.mxu0 0
        %3393 = vmatprep.subr.bf16.mxu0 0
        %3394 = vmatpush1.bf16.msra.mxu0 0
        %3395 = vmatprep.subr.bf16.mxu0 0
        %3396 = vmatpush1.bf16.msra.mxu0 0
        %3397 = vmatprep.subr.bf16.mxu0 0
        %3398 = vmatpush1.bf16.msra.mxu0 0
        %3399 = vmatprep.subr.bf16.mxu0 0
        %3400 = vmatpush1.bf16.msra.mxu0 0
        %3401 = vmatprep.subr.bf16.mxu0 0
        %3402 = vmatpush1.bf16.msra.mxu0 0
        %3403 = vmatprep.subr.bf16.mxu0 0
        %3404 = vmatpush1.bf16.msra.mxu0 0
        %3405 = vmatprep.mubr.bf16.mxu0 0
        %3406 = vmatmul.mubr.bf16.gmra.mrb[0].mxu0 %v3326
        %v3407 = vpop.f32.mrb[0].mxu0
        %v3408 = vadd.f32 %v3193, %v3407
        %v3409 = vpop.f32.mrb[0].mxu0
        %v3410 = vpop.f32.mrb[0].mxu0
        %v3411 = vadd.f32 %v3196, %v3410
        %v3412 = vpop.f32.mrb[0].mxu0
        %3413 = vmatprep.mubr.bf16.mxu0 0
        %3414 = vmatmul.mubr.bf16.gmra.mrb[0].mxu0 %v3329
        %v3415 = vpop.f32.mrb[0].mxu0
        %v3416 = vadd.f32 %v3201, %v3415
        %v3417 = vpop.f32.mrb[0].mxu0
        %v3418 = vpop.f32.mrb[0].mxu0
        %v3419 = vadd.f32 %v3204, %v3418
        %v3420 = vpop.f32.mrb[0].mxu0
        %3421 = vmatprep.mubr.bf16.mxu0 0
        %3422 = vmatmul.mubr.bf16.gmra.mrb[0].mxu0 %v3332
        %v3423 = vpop.f32.mrb[0].mxu0
        %v3424 = vadd.f32 %v3209, %v3423
        %v3425 = vpop.f32.mrb[0].mxu0
        %v3426 = vpop.f32.mrb[0].mxu0
        %v3427 = vadd.f32 %v3212, %v3426
        %v3428 = vpop.f32.mrb[0].mxu0
        %3429 = vmatprep.mubr.bf16.mxu0 0
        %3430 = vmatmul.mubr.bf16.gmra.mrb[0].mxu0 %v3335
        %v3431 = vpop.f32.mrb[0].mxu0
        %v3432 = vadd.f32 %v3217, %v3431
        %v3433 = vpop.f32.mrb[0].mxu0
        %v3434 = vpop.f32.mrb[0].mxu0
        %v3435 = vadd.f32 %v3220, %v3434
        %v3436 = vpop.f32.mrb[0].mxu0
        %3437 = vmatprep.mubr.bf16.mxu0 0
        %3438 = vmatmul.mubr.bf16.gmra.mrb[0].mxu0 %v3338
        %v3439 = vpop.f32.mrb[0].mxu0
        %v3440 = vadd.f32 %v3225, %v3439
        %v3441 = vpop.f32.mrb[0].mxu0
        %v3442 = vpop.f32.mrb[0].mxu0
        %v3443 = vadd.f32 %v3228, %v3442
        %v3444 = vpop.f32.mrb[0].mxu0
        %3445 = vmatprep.mubr.bf16.mxu0 0
        %3446 = vmatmul.mubr.bf16.gmra.mrb[0].mxu0 %v3341
        %v3447 = vpop.f32.mrb[0].mxu0
        %v3448 = vadd.f32 %v3233, %v3447
        %v3449 = vpop.f32.mrb[0].mxu0
        %v3450 = vpop.f32.mrb[0].mxu0
        %v3451 = vadd.f32 %v3236, %v3450
        %v3452 = vpop.f32.mrb[0].mxu0
        %3453 = vmatprep.mubr.bf16.mxu0 0
        %3454 = vmatmul.mubr.bf16.gmra.mrb[0].mxu0 %v3344
        %v3455 = vpop.f32.mrb[0].mxu0
        %v3456 = vadd.f32 %v3241, %v3455
        %v3457 = vpop.f32.mrb[0].mxu0
        %v3458 = vpop.f32.mrb[0].mxu0
        %v3459 = vadd.f32 %v3244, %v3458
        %v3460 = vpop.f32.mrb[0].mxu0
        %3461 = vmatprep.mubr.bf16.mxu0 0
        %3462 = vmatmul.mubr.bf16.gmra.mrb[0].mxu0 %v3347
        %v3463 = vpop.f32.mrb[0].mxu0
        %v3464 = vadd.f32 %v3249, %v3463
        %v3465 = vpop.f32.mrb[0].mxu0
        %v3466 = vpop.f32.mrb[0].mxu0
        %v3467 = vadd.f32 %v3252, %v3466
        %v3468 = vpop.f32.mrb[0].mxu0
        %3469 = vmatprep.mubr.bf16.mxu0 0
        %3470 = vmatmul.mubr.bf16.gmra.mrb[0].mxu0 %v3350
        %v3471 = vpop.f32.mrb[0].mxu0
        %v3472 = vadd.f32 %v3257, %v3471
        %v3473 = vpop.f32.mrb[0].mxu0
        %v3474 = vpop.f32.mrb[0].mxu0
        %v3475 = vadd.f32 %v3260, %v3474
        %v3476 = vpop.f32.mrb[0].mxu0
        %3477 = vmatprep.mubr.bf16.mxu0 0
        %3478 = vmatmul.mubr.bf16.gmra.mrb[0].mxu0 %v3353
        %v3479 = vpop.f32.mrb[0].mxu0
        %v3480 = vadd.f32 %v3265, %v3479
        %v3481 = vpop.f32.mrb[0].mxu0
        %v3482 = vpop.f32.mrb[0].mxu0
        %v3483 = vadd.f32 %v3268, %v3482
        %v3484 = vpop.f32.mrb[0].mxu0
        %3485 = vmatprep.mubr.bf16.mxu0 0
        %3486 = vmatmul.mubr.bf16.gmra.mrb[0].mxu0 %v3356
        %v3487 = vpop.f32.mrb[0].mxu0
        %v3488 = vadd.f32 %v3273, %v3487
        %v3489 = vpop.f32.mrb[0].mxu0
        %v3490 = vpop.f32.mrb[0].mxu0
        %v3491 = vadd.f32 %v3276, %v3490
        %v3492 = vpop.f32.mrb[0].mxu0
        %3493 = vmatprep.mubr.bf16.mxu0 0
        %3494 = vmatmul.mubr.bf16.gmra.mrb[0].mxu0 %v3359
        %v3495 = vpop.f32.mrb[0].mxu0
        %v3496 = vadd.f32 %v3281, %v3495
        %v3497 = vpop.f32.mrb[0].mxu0
        %v3498 = vpop.f32.mrb[0].mxu0
        %v3499 = vadd.f32 %v3284, %v3498
        %v3500 = vpop.f32.mrb[0].mxu0
        %3501 = vmatprep.mubr.bf16.mxu0 0
        %3502 = vmatmul.mubr.bf16.gmra.mrb[0].mxu0 %v3362
        %v3503 = vpop.f32.mrb[0].mxu0
        %v3504 = vadd.f32 %v3289, %v3503
        %v3505 = vpop.f32.mrb[0].mxu0
        %v3506 = vpop.f32.mrb[0].mxu0
        %v3507 = vadd.f32 %v3292, %v3506
        %v3508 = vpop.f32.mrb[0].mxu0
        %3509 = vmatprep.mubr.bf16.mxu0 0
        %3510 = vmatmul.mubr.bf16.gmra.mrb[0].mxu0 %v3365
        %v3511 = vpop.f32.mrb[0].mxu0
        %v3512 = vadd.f32 %v3297, %v3511
        %v3513 = vpop.f32.mrb[0].mxu0
        %v3514 = vpop.f32.mrb[0].mxu0
        %v3515 = vadd.f32 %v3300, %v3514
        %v3516 = vpop.f32.mrb[0].mxu0
        %3517 = vmatprep.mubr.bf16.mxu0 0
        %3518 = vmatmul.mubr.bf16.gmra.mrb[0].mxu0 %v3368
        %v3519 = vpop.f32.mrb[0].mxu0
        %v3520 = vadd.f32 %v3305, %v3519
        %v3521 = vpop.f32.mrb[0].mxu0
        %v3522 = vpop.f32.mrb[0].mxu0
        %v3523 = vadd.f32 %v3308, %v3522
        %v3524 = vpop.f32.mrb[0].mxu0
        %3525 = vmatprep.mubr.bf16.mxu0 0
        %3526 = vmatmul.mubr.bf16.gmra.mrb[0].mxu0 %v3371
        %v3527 = vpop.f32.mrb[0].mxu0
        %v3528 = vadd.f32 %v3313, %v3527
        %v3529 = vpop.f32.mrb[0].mxu0
        %v3530 = vpop.f32.mrb[0].mxu0
        %v3531 = vadd.f32 %v3316, %v3530
        %v3532 = vpop.f32.mrb[0].mxu0
        %3533 = vdwg.mxu0
        %v3534 = vld [vmem:[#allocation3 + $0x2] sm:$0xff]
        %v3535 = vld [vmem:[#allocation3 + $0xa] sm:$0xff]
        %v3536 = vld [vmem:[#allocation3 + $0x1a] sm:$0xff]
        %v3537 = vld [vmem:[#allocation3 + $0x22] sm:$0xff]
        %v3538 = vld [vmem:[#allocation3 + $0x32] sm:$0xff]
        %v3539 = vld [vmem:[#allocation3 + $0x3a] sm:$0xff]
        %v3540 = vld [vmem:[#allocation3 + $0x4a] sm:$0xff]
        %v3541 = vld [vmem:[#allocation3 + $0x52] sm:$0xff]
        %v3542 = vld [vmem:[#allocation3 + $0x62] sm:$0xff]
        %v3543 = vld [vmem:[#allocation3 + $0x6a] sm:$0xff]
        %v3544 = vld [vmem:[#allocation3 + $0x7a] sm:$0xff]
        %v3545 = vld [vmem:[#allocation3 + $0x82] sm:$0xff]
        %v3546 = vld [vmem:[#allocation3 + $0x92] sm:$0xff]
        %v3547 = vld [vmem:[#allocation3 + $0x9a] sm:$0xff]
        %v3548 = vld [vmem:[#allocation3 + $0xaa] sm:$0xff]
        %v3549 = vld [vmem:[#allocation3 + $0xb2] sm:$0xff]
        %v3550 = vld [vmem:[#allocation3 + $0xc2] sm:$0xff]
        %v3551 = vld [vmem:[#allocation3 + $0xca] sm:$0xff]
        %v3552 = vld [vmem:[#allocation3 + $0xda] sm:$0xff]
        %v3553 = vld [vmem:[#allocation3 + $0xe2] sm:$0xff]
        %v3554 = vld [vmem:[#allocation3 + $0xf2] sm:$0xff]
        %v3555 = vld [vmem:[#allocation3 + $0xfa] sm:$0xff]
        %v3556 = vld [vmem:[#allocation3 + $0x10a] sm:$0xff]
        %v3557 = vld [vmem:[#allocation3 + $0x112] sm:$0xff]
        %v3558 = vld [vmem:[#allocation3 + $0x122] sm:$0xff]
        %v3559 = vld [vmem:[#allocation3 + $0x12a] sm:$0xff]
        %v3560 = vld [vmem:[#allocation3 + $0x13a] sm:$0xff]
        %v3561 = vld [vmem:[#allocation3 + $0x142] sm:$0xff]
        %v3562 = vld [vmem:[#allocation3 + $0x152] sm:$0xff]
        %v3563 = vld [vmem:[#allocation3 + $0x15a] sm:$0xff]
        %v3564 = vld [vmem:[#allocation3 + $0x16a] sm:$0xff]
        %v3565 = vld [vmem:[#allocation3 + $0x172] sm:$0xff]
        %v3566 = vpack.c.bf16 %v3535, %v3534
        %v3567 = vpack.c.bf16 %v3537, %v3536
        %v3568 = vpack.c.bf16 %v3539, %v3538
        %v3569 = vpack.c.bf16 %v3541, %v3540
        %v3570 = vpack.c.bf16 %v3543, %v3542
        %v3571 = vpack.c.bf16 %v3545, %v3544
        %v3572 = vpack.c.bf16 %v3547, %v3546
        %v3573 = vpack.c.bf16 %v3549, %v3548
        %v3574 = vpack.c.bf16 %v3551, %v3550
        %v3575 = vpack.c.bf16 %v3553, %v3552
        %v3576 = vpack.c.bf16 %v3555, %v3554
        %v3577 = vpack.c.bf16 %v3557, %v3556
        %v3578 = vpack.c.bf16 %v3559, %v3558
        %v3579 = vpack.c.bf16 %v3561, %v3560
        %v3580 = vpack.c.bf16 %v3563, %v3562
        %v3581 = vpack.c.bf16 %v3565, %v3564
        %s3582 = scalar_lea.vmem %s3, 16
        %v3583 = vld [vmem:[%s3582] sm:$0xf]
        %v3584 = vld [vmem:[%s3582 + $0x4] sm:$0xf]
        %v3587 = vunpack.c.l.b16 %v3583
        %v3588 = vunpack.c.l.b16 %v3584
        %v3589 = vpack.c.b16 %v3588, %v3587
        %v3592 = vsel %vm2914, %v3566, 0
        %v3595 = vsel %vm2914, %v3567, 0
        %v3598 = vsel %vm2914, %v3568, 0
        %v3601 = vsel %vm2914, %v3569, 0
        %v3604 = vsel %vm2914, %v3570, 0
        %v3607 = vsel %vm2914, %v3571, 0
        %v3610 = vsel %vm2914, %v3572, 0
        %v3613 = vsel %vm2914, %v3573, 0
        %v3616 = vsel %vm2914, %v3574, 0
        %v3619 = vsel %vm2914, %v3575, 0
        %v3622 = vsel %vm2914, %v3576, 0
        %v3625 = vsel %vm2914, %v3577, 0
        %v3628 = vsel %vm2914, %v3578, 0
        %v3631 = vsel %vm2914, %v3579, 0
        %v3634 = vsel %vm2914, %v3580, 0
        %v3637 = vsel %vm2914, %v3581, 0
        %3639 = vmatprep.subr.bf16.mxu0 0
        %3640 = vmatpush1.bf16.msra.mxu0 %v3589
        %3641 = vmatprep.subr.bf16.mxu0 0
        %3642 = vmatpush1.bf16.msra.mxu0 0
        %3643 = vmatprep.subr.bf16.mxu0 0
        %3644 = vmatpush1.bf16.msra.mxu0 0
        %3645 = vmatprep.subr.bf16.mxu0 0
        %3646 = vmatpush1.bf16.msra.mxu0 0
        %3647 = vmatprep.subr.bf16.mxu0 0
        %3648 = vmatpush1.bf16.msra.mxu0 0
        %3649 = vmatprep.subr.bf16.mxu0 0
        %3650 = vmatpush1.bf16.msra.mxu0 0
        %3651 = vmatprep.subr.bf16.mxu0 0
        %3652 = vmatpush1.bf16.msra.mxu0 0
        %3653 = vmatprep.subr.bf16.mxu0 0
        %3654 = vmatpush1.bf16.msra.mxu0 0
        %3655 = vmatprep.subr.bf16.mxu0 0
        %3656 = vmatpush1.bf16.msra.mxu0 0
        %3657 = vmatprep.subr.bf16.mxu0 0
        %3658 = vmatpush1.bf16.msra.mxu0 0
        %3659 = vmatprep.subr.bf16.mxu0 0
        %3660 = vmatpush1.bf16.msra.mxu0 0
        %3661 = vmatprep.subr.bf16.mxu0 0
        %3662 = vmatpush1.bf16.msra.mxu0 0
        %3663 = vmatprep.subr.bf16.mxu0 0
        %3664 = vmatpush1.bf16.msra.mxu0 0
        %3665 = vmatprep.subr.bf16.mxu0 0
        %3666 = vmatpush1.bf16.msra.mxu0 0
        %3667 = vmatprep.subr.bf16.mxu0 0
        %3668 = vmatpush1.bf16.msra.mxu0 0
        %3669 = vmatprep.subr.bf16.mxu0 0
        %3670 = vmatpush1.bf16.msra.mxu0 0
        %3671 = vmatprep.mubr.bf16.mxu0 0
        %3672 = vmatmul.mubr.bf16.gmra.mrb[0].mxu0 %v3592
        %v3673 = vpop.f32.mrb[0].mxu0
        %v3674 = vadd.f32 0.0, %v3673
        %v3675 = vpop.f32.mrb[0].mxu0
        %v3676 = vpop.f32.mrb[0].mxu0
        %v3677 = vadd.f32 0.0, %v3676
        %v3678 = vpop.f32.mrb[0].mxu0
        %3679 = vmatprep.mubr.bf16.mxu0 0
        %3680 = vmatmul.mubr.bf16.gmra.mrb[0].mxu0 %v3595
        %v3681 = vpop.f32.mrb[0].mxu0
        %v3682 = vadd.f32 0.0, %v3681
        %v3683 = vpop.f32.mrb[0].mxu0
        %v3684 = vpop.f32.mrb[0].mxu0
        %v3685 = vadd.f32 0.0, %v3684
        %v3686 = vpop.f32.mrb[0].mxu0
        %3687 = vmatprep.mubr.bf16.mxu0 0
        %3688 = vmatmul.mubr.bf16.gmra.mrb[0].mxu0 %v3598
        %v3689 = vpop.f32.mrb[0].mxu0
        %v3690 = vadd.f32 0.0, %v3689
        %v3691 = vpop.f32.mrb[0].mxu0
        %v3692 = vpop.f32.mrb[0].mxu0
        %v3693 = vadd.f32 0.0, %v3692
        %v3694 = vpop.f32.mrb[0].mxu0
        %3695 = vmatprep.mubr.bf16.mxu0 0
        %3696 = vmatmul.mubr.bf16.gmra.mrb[0].mxu0 %v3601
        %v3697 = vpop.f32.mrb[0].mxu0
        %v3698 = vadd.f32 0.0, %v3697
        %v3699 = vpop.f32.mrb[0].mxu0
        %v3700 = vpop.f32.mrb[0].mxu0
        %v3701 = vadd.f32 0.0, %v3700
        %v3702 = vpop.f32.mrb[0].mxu0
        %3703 = vmatprep.mubr.bf16.mxu0 0
        %3704 = vmatmul.mubr.bf16.gmra.mrb[0].mxu0 %v3604
        %v3705 = vpop.f32.mrb[0].mxu0
        %v3706 = vadd.f32 0.0, %v3705
        %v3707 = vpop.f32.mrb[0].mxu0
        %v3708 = vpop.f32.mrb[0].mxu0
        %v3709 = vadd.f32 0.0, %v3708
        %v3710 = vpop.f32.mrb[0].mxu0
        %3711 = vmatprep.mubr.bf16.mxu0 0
        %3712 = vmatmul.mubr.bf16.gmra.mrb[0].mxu0 %v3607
        %v3713 = vpop.f32.mrb[0].mxu0
        %v3714 = vadd.f32 0.0, %v3713
        %v3715 = vpop.f32.mrb[0].mxu0
        %v3716 = vpop.f32.mrb[0].mxu0
        %v3717 = vadd.f32 0.0, %v3716
        %v3718 = vpop.f32.mrb[0].mxu0
        %3719 = vmatprep.mubr.bf16.mxu0 0
        %3720 = vmatmul.mubr.bf16.gmra.mrb[0].mxu0 %v3610
        %v3721 = vpop.f32.mrb[0].mxu0
        %v3722 = vadd.f32 0.0, %v3721
        %v3723 = vpop.f32.mrb[0].mxu0
        %v3724 = vpop.f32.mrb[0].mxu0
        %v3725 = vadd.f32 0.0, %v3724
        %v3726 = vpop.f32.mrb[0].mxu0
        %3727 = vmatprep.mubr.bf16.mxu0 0
        %3728 = vmatmul.mubr.bf16.gmra.mrb[0].mxu0 %v3613
        %v3729 = vpop.f32.mrb[0].mxu0
        %v3730 = vadd.f32 0.0, %v3729
        %v3731 = vpop.f32.mrb[0].mxu0
        %v3732 = vpop.f32.mrb[0].mxu0
        %v3733 = vadd.f32 0.0, %v3732
        %v3734 = vpop.f32.mrb[0].mxu0
        %3735 = vmatprep.mubr.bf16.mxu0 0
        %3736 = vmatmul.mubr.bf16.gmra.mrb[0].mxu0 %v3616
        %v3737 = vpop.f32.mrb[0].mxu0
        %v3738 = vadd.f32 0.0, %v3737
        %v3739 = vpop.f32.mrb[0].mxu0
        %v3740 = vpop.f32.mrb[0].mxu0
        %v3741 = vadd.f32 0.0, %v3740
        %v3742 = vpop.f32.mrb[0].mxu0
        %3743 = vmatprep.mubr.bf16.mxu0 0
        %3744 = vmatmul.mubr.bf16.gmra.mrb[0].mxu0 %v3619
        %v3745 = vpop.f32.mrb[0].mxu0
        %v3746 = vadd.f32 0.0, %v3745
        %v3747 = vpop.f32.mrb[0].mxu0
        %v3748 = vpop.f32.mrb[0].mxu0
        %v3749 = vadd.f32 0.0, %v3748
        %v3750 = vpop.f32.mrb[0].mxu0
        %3751 = vmatprep.mubr.bf16.mxu0 0
        %3752 = vmatmul.mubr.bf16.gmra.mrb[0].mxu0 %v3622
        %v3753 = vpop.f32.mrb[0].mxu0
        %v3754 = vadd.f32 0.0, %v3753
        %v3755 = vpop.f32.mrb[0].mxu0
        %v3756 = vpop.f32.mrb[0].mxu0
        %v3757 = vadd.f32 0.0, %v3756
        %v3758 = vpop.f32.mrb[0].mxu0
        %3759 = vmatprep.mubr.bf16.mxu0 0
        %3760 = vmatmul.mubr.bf16.gmra.mrb[0].mxu0 %v3625
        %v3761 = vpop.f32.mrb[0].mxu0
        %v3762 = vadd.f32 0.0, %v3761
        %v3763 = vpop.f32.mrb[0].mxu0
        %v3764 = vpop.f32.mrb[0].mxu0
        %v3765 = vadd.f32 0.0, %v3764
        %v3766 = vpop.f32.mrb[0].mxu0
        %3767 = vmatprep.mubr.bf16.mxu0 0
        %3768 = vmatmul.mubr.bf16.gmra.mrb[0].mxu0 %v3628
        %v3769 = vpop.f32.mrb[0].mxu0
        %v3770 = vadd.f32 0.0, %v3769
        %v3771 = vpop.f32.mrb[0].mxu0
        %v3772 = vpop.f32.mrb[0].mxu0
        %v3773 = vadd.f32 0.0, %v3772
        %v3774 = vpop.f32.mrb[0].mxu0
        %3775 = vmatprep.mubr.bf16.mxu0 0
        %3776 = vmatmul.mubr.bf16.gmra.mrb[0].mxu0 %v3631
        %v3777 = vpop.f32.mrb[0].mxu0
        %v3778 = vadd.f32 0.0, %v3777
        %v3779 = vpop.f32.mrb[0].mxu0
        %v3780 = vpop.f32.mrb[0].mxu0
        %v3781 = vadd.f32 0.0, %v3780
        %v3782 = vpop.f32.mrb[0].mxu0
        %3783 = vmatprep.mubr.bf16.mxu0 0
        %3784 = vmatmul.mubr.bf16.gmra.mrb[0].mxu0 %v3634
        %v3785 = vpop.f32.mrb[0].mxu0
        %v3786 = vadd.f32 0.0, %v3785
        %v3787 = vpop.f32.mrb[0].mxu0
        %v3788 = vpop.f32.mrb[0].mxu0
        %v3789 = vadd.f32 0.0, %v3788
        %v3790 = vpop.f32.mrb[0].mxu0
        %3791 = vmatprep.mubr.bf16.mxu0 0
        %3792 = vmatmul.mubr.bf16.gmra.mrb[0].mxu0 %v3637
        %v3793 = vpop.f32.mrb[0].mxu0
        %v3794 = vadd.f32 0.0, %v3793
        %v3795 = vpop.f32.mrb[0].mxu0
        %v3796 = vpop.f32.mrb[0].mxu0
        %v3797 = vadd.f32 0.0, %v3796
        %v3798 = vpop.f32.mrb[0].mxu0
        %3799 = vdwg.mxu0
        %v3800 = vadd.f32 %v3408, %v3674
        %v3801 = vadd.f32 %v3411, %v3677
        %v3802 = vadd.f32 %v3416, %v3682
        %v3803 = vadd.f32 %v3419, %v3685
        %v3804 = vadd.f32 %v3424, %v3690
        %v3805 = vadd.f32 %v3427, %v3693
        %v3806 = vadd.f32 %v3432, %v3698
        %v3807 = vadd.f32 %v3435, %v3701
        %v3808 = vadd.f32 %v3440, %v3706
        %v3809 = vadd.f32 %v3443, %v3709
        %v3810 = vadd.f32 %v3448, %v3714
        %v3811 = vadd.f32 %v3451, %v3717
        %v3812 = vadd.f32 %v3456, %v3722
        %v3813 = vadd.f32 %v3459, %v3725
        %v3814 = vadd.f32 %v3464, %v3730
        %v3815 = vadd.f32 %v3467, %v3733
        %v3816 = vadd.f32 %v3472, %v3738
        %v3817 = vadd.f32 %v3475, %v3741
        %v3818 = vadd.f32 %v3480, %v3746
        %v3819 = vadd.f32 %v3483, %v3749
        %v3820 = vadd.f32 %v3488, %v3754
        %v3821 = vadd.f32 %v3491, %v3757
        %v3822 = vadd.f32 %v3496, %v3762
        %v3823 = vadd.f32 %v3499, %v3765
        %v3824 = vadd.f32 %v3504, %v3770
        %v3825 = vadd.f32 %v3507, %v3773
        %v3826 = vadd.f32 %v3512, %v3778
        %v3827 = vadd.f32 %v3515, %v3781
        %v3828 = vadd.f32 %v3520, %v3786
        %v3829 = vadd.f32 %v3523, %v3789
        %v3830 = vadd.f32 %v3528, %v3794
        %v3831 = vadd.f32 %v3531, %v3797
        %v3832 = vld [vmem:[%s2970] sm:$0xff]
        %v3833 = vld [vmem:[%s2970 + $0x8] sm:$0xff]
        %v3834 = vld [vmem:[%s2970 + $0x18] sm:$0xff]
        %v3835 = vld [vmem:[%s2970 + $0x20] sm:$0xff]
        %v3836 = vld [vmem:[%s2970 + $0x30] sm:$0xff]
        %v3837 = vld [vmem:[%s2970 + $0x38] sm:$0xff]
        %v3838 = vld [vmem:[%s2970 + $0x48] sm:$0xff]
        %v3839 = vld [vmem:[%s2970 + $0x50] sm:$0xff]
        %v3840 = vld [vmem:[%s2970 + $0x60] sm:$0xff]
        %v3841 = vld [vmem:[%s2970 + $0x68] sm:$0xff]
        %v3842 = vld [vmem:[%s2970 + $0x78] sm:$0xff]
        %v3843 = vld [vmem:[%s2970 + $0x80] sm:$0xff]
        %v3844 = vld [vmem:[%s2970 + $0x90] sm:$0xff]
        %v3845 = vld [vmem:[%s2970 + $0x98] sm:$0xff]
        %v3846 = vld [vmem:[%s2970 + $0xa8] sm:$0xff]
        %v3847 = vld [vmem:[%s2970 + $0xb0] sm:$0xff]
        %v3848 = vld [vmem:[%s2970 + $0xc0] sm:$0xff]
        %v3849 = vld [vmem:[%s2970 + $0xc8] sm:$0xff]
        %v3850 = vld [vmem:[%s2970 + $0xd8] sm:$0xff]
        %v3851 = vld [vmem:[%s2970 + $0xe0] sm:$0xff]
        %v3852 = vld [vmem:[%s2970 + $0xf0] sm:$0xff]
        %v3853 = vld [vmem:[%s2970 + $0xf8] sm:$0xff]
        %v3854 = vld [vmem:[%s2970 + $0x108] sm:$0xff]
        %v3855 = vld [vmem:[%s2970 + $0x110] sm:$0xff]
        %v3856 = vld [vmem:[%s2970 + $0x120] sm:$0xff]
        %v3857 = vld [vmem:[%s2970 + $0x128] sm:$0xff]
        %v3858 = vld [vmem:[%s2970 + $0x138] sm:$0xff]
        %v3859 = vld [vmem:[%s2970 + $0x140] sm:$0xff]
        %v3860 = vld [vmem:[%s2970 + $0x150] sm:$0xff]
        %v3861 = vld [vmem:[%s2970 + $0x158] sm:$0xff]
        %v3862 = vld [vmem:[%s2970 + $0x168] sm:$0xff]
        %v3863 = vld [vmem:[%s2970 + $0x170] sm:$0xff]
        %v3864 = vpack.c.bf16 %v3833, %v3832
        %v3865 = vpack.c.bf16 %v3835, %v3834
        %v3866 = vpack.c.bf16 %v3837, %v3836
        %v3867 = vpack.c.bf16 %v3839, %v3838
        %v3868 = vpack.c.bf16 %v3841, %v3840
        %v3869 = vpack.c.bf16 %v3843, %v3842
        %v3870 = vpack.c.bf16 %v3845, %v3844
        %v3871 = vpack.c.bf16 %v3847, %v3846
        %v3872 = vpack.c.bf16 %v3849, %v3848
        %v3873 = vpack.c.bf16 %v3851, %v3850
        %v3874 = vpack.c.bf16 %v3853, %v3852
        %v3875 = vpack.c.bf16 %v3855, %v3854
        %v3876 = vpack.c.bf16 %v3857, %v3856
        %v3877 = vpack.c.bf16 %v3859, %v3858
        %v3878 = vpack.c.bf16 %v3861, %v3860
        %v3879 = vpack.c.bf16 %v3863, %v3862
        %s3880 = scalar_lea.vmem %s3, 24
        %v3881 = vld [vmem:[%s3880] sm:$0xf]
        %v3882 = vld [vmem:[%s3880 + $0x4] sm:$0xf]
        %v3885 = vunpack.c.l.b16 %v3881
        %v3886 = vunpack.c.l.b16 %v3882
        %v3887 = vpack.c.b16 %v3886, %v3885
        %v3890 = vsel %vm2914, %v3864, 0
        %v3893 = vsel %vm2914, %v3865, 0
        %v3896 = vsel %vm2914, %v3866, 0
        %v3899 = vsel %vm2914, %v3867, 0
        %v3902 = vsel %vm2914, %v3868, 0
        %v3905 = vsel %vm2914, %v3869, 0
        %v3908 = vsel %vm2914, %v3870, 0
        %v3911 = vsel %vm2914, %v3871, 0
        %v3914 = vsel %vm2914, %v3872, 0
        %v3917 = vsel %vm2914, %v3873, 0
        %v3920 = vsel %vm2914, %v3874, 0
        %v3923 = vsel %vm2914, %v3875, 0
        %v3926 = vsel %vm2914, %v3876, 0
        %v3929 = vsel %vm2914, %v3877, 0
        %v3932 = vsel %vm2914, %v3878, 0
        %v3935 = vsel %vm2914, %v3879, 0
        %3937 = vmatprep.subr.bf16.mxu0 0
        %3938 = vmatpush1.bf16.msra.mxu0 %v3887
        %3939 = vmatprep.subr.bf16.mxu0 0
        %3940 = vmatpush1.bf16.msra.mxu0 0
        %3941 = vmatprep.subr.bf16.mxu0 0
        %3942 = vmatpush1.bf16.msra.mxu0 0
        %3943 = vmatprep.subr.bf16.mxu0 0
        %3944 = vmatpush1.bf16.msra.mxu0 0
        %3945 = vmatprep.subr.bf16.mxu0 0
        %3946 = vmatpush1.bf16.msra.mxu0 0
        %3947 = vmatprep.subr.bf16.mxu0 0
        %3948 = vmatpush1.bf16.msra.mxu0 0
        %3949 = vmatprep.subr.bf16.mxu0 0
        %3950 = vmatpush1.bf16.msra.mxu0 0
        %3951 = vmatprep.subr.bf16.mxu0 0
        %3952 = vmatpush1.bf16.msra.mxu0 0
        %3953 = vmatprep.subr.bf16.mxu0 0
        %3954 = vmatpush1.bf16.msra.mxu0 0
        %3955 = vmatprep.subr.bf16.mxu0 0
        %3956 = vmatpush1.bf16.msra.mxu0 0
        %3957 = vmatprep.subr.bf16.mxu0 0
        %3958 = vmatpush1.bf16.msra.mxu0 0
        %3959 = vmatprep.subr.bf16.mxu0 0
        %3960 = vmatpush1.bf16.msra.mxu0 0
        %3961 = vmatprep.subr.bf16.mxu0 0
        %3962 = vmatpush1.bf16.msra.mxu0 0
        %3963 = vmatprep.subr.bf16.mxu0 0
        %3964 = vmatpush1.bf16.msra.mxu0 0
        %3965 = vmatprep.subr.bf16.mxu0 0
        %3966 = vmatpush1.bf16.msra.mxu0 0
        %3967 = vmatprep.subr.bf16.mxu0 0
        %3968 = vmatpush1.bf16.msra.mxu0 0
        %3969 = vmatprep.mubr.bf16.mxu0 0
        %3970 = vmatmul.mubr.bf16.gmra.mrb[0].mxu0 %v3890
        %v3971 = vpop.f32.mrb[0].mxu0
        %v3972 = vadd.f32 0.0, %v3971
        %v3973 = vpop.f32.mrb[0].mxu0
        %v3974 = vpop.f32.mrb[0].mxu0
        %v3975 = vadd.f32 0.0, %v3974
        %v3976 = vpop.f32.mrb[0].mxu0
        %3977 = vmatprep.mubr.bf16.mxu0 0
        %3978 = vmatmul.mubr.bf16.gmra.mrb[0].mxu0 %v3893
        %v3979 = vpop.f32.mrb[0].mxu0
        %v3980 = vadd.f32 0.0, %v3979
        %v3981 = vpop.f32.mrb[0].mxu0
        %v3982 = vpop.f32.mrb[0].mxu0
        %v3983 = vadd.f32 0.0, %v3982
        %v3984 = vpop.f32.mrb[0].mxu0
        %3985 = vmatprep.mubr.bf16.mxu0 0
        %3986 = vmatmul.mubr.bf16.gmra.mrb[0].mxu0 %v3896
        %v3987 = vpop.f32.mrb[0].mxu0
        %v3988 = vadd.f32 0.0, %v3987
        %v3989 = vpop.f32.mrb[0].mxu0
        %v3990 = vpop.f32.mrb[0].mxu0
        %v3991 = vadd.f32 0.0, %v3990
        %v3992 = vpop.f32.mrb[0].mxu0
        %3993 = vmatprep.mubr.bf16.mxu0 0
        %3994 = vmatmul.mubr.bf16.gmra.mrb[0].mxu0 %v3899
        %v3995 = vpop.f32.mrb[0].mxu0
        %v3996 = vadd.f32 0.0, %v3995
        %v3997 = vpop.f32.mrb[0].mxu0
        %v3998 = vpop.f32.mrb[0].mxu0
        %v3999 = vadd.f32 0.0, %v3998
        %v4000 = vpop.f32.mrb[0].mxu0
        %4001 = vmatprep.mubr.bf16.mxu0 0
        %4002 = vmatmul.mubr.bf16.gmra.mrb[0].mxu0 %v3902
        %v4003 = vpop.f32.mrb[0].mxu0
        %v4004 = vadd.f32 0.0, %v4003
        %v4005 = vpop.f32.mrb[0].mxu0
        %v4006 = vpop.f32.mrb[0].mxu0
        %v4007 = vadd.f32 0.0, %v4006
        %v4008 = vpop.f32.mrb[0].mxu0
        %4009 = vmatprep.mubr.bf16.mxu0 0
        %4010 = vmatmul.mubr.bf16.gmra.mrb[0].mxu0 %v3905
        %v4011 = vpop.f32.mrb[0].mxu0
        %v4012 = vadd.f32 0.0, %v4011
        %v4013 = vpop.f32.mrb[0].mxu0
        %v4014 = vpop.f32.mrb[0].mxu0
        %v4015 = vadd.f32 0.0, %v4014
        %v4016 = vpop.f32.mrb[0].mxu0
        %4017 = vmatprep.mubr.bf16.mxu0 0
        %4018 = vmatmul.mubr.bf16.gmra.mrb[0].mxu0 %v3908
        %v4019 = vpop.f32.mrb[0].mxu0
        %v4020 = vadd.f32 0.0, %v4019
        %v4021 = vpop.f32.mrb[0].mxu0
        %v4022 = vpop.f32.mrb[0].mxu0
        %v4023 = vadd.f32 0.0, %v4022
        %v4024 = vpop.f32.mrb[0].mxu0
        %4025 = vmatprep.mubr.bf16.mxu0 0
        %4026 = vmatmul.mubr.bf16.gmra.mrb[0].mxu0 %v3911
        %v4027 = vpop.f32.mrb[0].mxu0
        %v4028 = vadd.f32 0.0, %v4027
        %v4029 = vpop.f32.mrb[0].mxu0
        %v4030 = vpop.f32.mrb[0].mxu0
        %v4031 = vadd.f32 0.0, %v4030
        %v4032 = vpop.f32.mrb[0].mxu0
        %4033 = vmatprep.mubr.bf16.mxu0 0
        %4034 = vmatmul.mubr.bf16.gmra.mrb[0].mxu0 %v3914
        %v4035 = vpop.f32.mrb[0].mxu0
        %v4036 = vadd.f32 0.0, %v4035
        %v4037 = vpop.f32.mrb[0].mxu0
        %v4038 = vpop.f32.mrb[0].mxu0
        %v4039 = vadd.f32 0.0, %v4038
        %v4040 = vpop.f32.mrb[0].mxu0
        %4041 = vmatprep.mubr.bf16.mxu0 0
        %4042 = vmatmul.mubr.bf16.gmra.mrb[0].mxu0 %v3917
        %v4043 = vpop.f32.mrb[0].mxu0
        %v4044 = vadd.f32 0.0, %v4043
        %v4045 = vpop.f32.mrb[0].mxu0
        %v4046 = vpop.f32.mrb[0].mxu0
        %v4047 = vadd.f32 0.0, %v4046
        %v4048 = vpop.f32.mrb[0].mxu0
        %4049 = vmatprep.mubr.bf16.mxu0 0
        %4050 = vmatmul.mubr.bf16.gmra.mrb[0].mxu0 %v3920
        %v4051 = vpop.f32.mrb[0].mxu0
        %v4052 = vadd.f32 0.0, %v4051
        %v4053 = vpop.f32.mrb[0].mxu0
        %v4054 = vpop.f32.mrb[0].mxu0
        %v4055 = vadd.f32 0.0, %v4054
        %v4056 = vpop.f32.mrb[0].mxu0
        %4057 = vmatprep.mubr.bf16.mxu0 0
        %4058 = vmatmul.mubr.bf16.gmra.mrb[0].mxu0 %v3923
        %v4059 = vpop.f32.mrb[0].mxu0
        %v4060 = vadd.f32 0.0, %v4059
        %v4061 = vpop.f32.mrb[0].mxu0
        %v4062 = vpop.f32.mrb[0].mxu0
        %v4063 = vadd.f32 0.0, %v4062
        %v4064 = vpop.f32.mrb[0].mxu0
        %4065 = vmatprep.mubr.bf16.mxu0 0
        %4066 = vmatmul.mubr.bf16.gmra.mrb[0].mxu0 %v3926
        %v4067 = vpop.f32.mrb[0].mxu0
        %v4068 = vadd.f32 0.0, %v4067
        %v4069 = vpop.f32.mrb[0].mxu0
        %v4070 = vpop.f32.mrb[0].mxu0
        %v4071 = vadd.f32 0.0, %v4070
        %v4072 = vpop.f32.mrb[0].mxu0
        %4073 = vmatprep.mubr.bf16.mxu0 0
        %4074 = vmatmul.mubr.bf16.gmra.mrb[0].mxu0 %v3929
        %v4075 = vpop.f32.mrb[0].mxu0
        %v4076 = vadd.f32 0.0, %v4075
        %v4077 = vpop.f32.mrb[0].mxu0
        %v4078 = vpop.f32.mrb[0].mxu0
        %v4079 = vadd.f32 0.0, %v4078
        %v4080 = vpop.f32.mrb[0].mxu0
        %4081 = vmatprep.mubr.bf16.mxu0 0
        %4082 = vmatmul.mubr.bf16.gmra.mrb[0].mxu0 %v3932
        %v4083 = vpop.f32.mrb[0].mxu0
        %v4084 = vadd.f32 0.0, %v4083
        %v4085 = vpop.f32.mrb[0].mxu0
        %v4086 = vpop.f32.mrb[0].mxu0
        %v4087 = vadd.f32 0.0, %v4086
        %v4088 = vpop.f32.mrb[0].mxu0
        %4089 = vmatprep.mubr.bf16.mxu0 0
        %4090 = vmatmul.mubr.bf16.gmra.mrb[0].mxu0 %v3935
        %v4091 = vpop.f32.mrb[0].mxu0
        %v4092 = vadd.f32 0.0, %v4091
        %v4093 = vpop.f32.mrb[0].mxu0
        %v4094 = vpop.f32.mrb[0].mxu0
        %v4095 = vadd.f32 0.0, %v4094
        %v4096 = vpop.f32.mrb[0].mxu0
        %4097 = vdwg.mxu0
        %v4098 = vadd.f32 %v3800, %v3972
        %v4099 = vadd.f32 %v3801, %v3975
        %v4100 = vadd.f32 %v3802, %v3980
        %v4101 = vadd.f32 %v3803, %v3983
        %v4102 = vadd.f32 %v3804, %v3988
        %v4103 = vadd.f32 %v3805, %v3991
        %v4104 = vadd.f32 %v3806, %v3996
        %v4105 = vadd.f32 %v3807, %v3999
        %v4106 = vadd.f32 %v3808, %v4004
        %v4107 = vadd.f32 %v3809, %v4007
        %v4108 = vadd.f32 %v3810, %v4012
        %v4109 = vadd.f32 %v3811, %v4015
        %v4110 = vadd.f32 %v3812, %v4020
        %v4111 = vadd.f32 %v3813, %v4023
        %v4112 = vadd.f32 %v3814, %v4028
        %v4113 = vadd.f32 %v3815, %v4031
        %v4114 = vadd.f32 %v3816, %v4036
        %v4115 = vadd.f32 %v3817, %v4039
        %v4116 = vadd.f32 %v3818, %v4044
        %v4117 = vadd.f32 %v3819, %v4047
        %v4118 = vadd.f32 %v3820, %v4052
        %v4119 = vadd.f32 %v3821, %v4055
        %v4120 = vadd.f32 %v3822, %v4060
        %v4121 = vadd.f32 %v3823, %v4063
        %v4122 = vadd.f32 %v3824, %v4068
        %v4123 = vadd.f32 %v3825, %v4071
        %v4124 = vadd.f32 %v3826, %v4076
        %v4125 = vadd.f32 %v3827, %v4079
        %v4126 = vadd.f32 %v3828, %v4084
        %v4127 = vadd.f32 %v3829, %v4087
        %v4128 = vadd.f32 %v3830, %v4092
        %v4129 = vadd.f32 %v3831, %v4095
        %v4130 = vld [vmem:[%s2970 + $0x1] sm:$0xff]
        %v4131 = vld [vmem:[%s2970 + $0x9] sm:$0xff]
        %v4132 = vld [vmem:[%s2970 + $0x19] sm:$0xff]
        %v4133 = vld [vmem:[%s2970 + $0x21] sm:$0xff]
        %v4134 = vld [vmem:[%s2970 + $0x31] sm:$0xff]
        %v4135 = vld [vmem:[%s2970 + $0x39] sm:$0xff]
        %v4136 = vld [vmem:[%s2970 + $0x49] sm:$0xff]
        %v4137 = vld [vmem:[%s2970 + $0x51] sm:$0xff]
        %v4138 = vld [vmem:[%s2970 + $0x61] sm:$0xff]
        %v4139 = vld [vmem:[%s2970 + $0x69] sm:$0xff]
        %v4140 = vld [vmem:[%s2970 + $0x79] sm:$0xff]
        %v4141 = vld [vmem:[%s2970 + $0x81] sm:$0xff]
        %v4142 = vld [vmem:[%s2970 + $0x91] sm:$0xff]
        %v4143 = vld [vmem:[%s2970 + $0x99] sm:$0xff]
        %v4144 = vld [vmem:[%s2970 + $0xa9] sm:$0xff]
        %v4145 = vld [vmem:[%s2970 + $0xb1] sm:$0xff]
        %v4146 = vld [vmem:[%s2970 + $0xc1] sm:$0xff]
        %v4147 = vld [vmem:[%s2970 + $0xc9] sm:$0xff]
        %v4148 = vld [vmem:[%s2970 + $0xd9] sm:$0xff]
        %v4149 = vld [vmem:[%s2970 + $0xe1] sm:$0xff]
        %v4150 = vld [vmem:[%s2970 + $0xf1] sm:$0xff]
        %v4151 = vld [vmem:[%s2970 + $0xf9] sm:$0xff]
        %v4152 = vld [vmem:[%s2970 + $0x109] sm:$0xff]
        %v4153 = vld [vmem:[%s2970 + $0x111] sm:$0xff]
        %v4154 = vld [vmem:[%s2970 + $0x121] sm:$0xff]
        %v4155 = vld [vmem:[%s2970 + $0x129] sm:$0xff]
        %v4156 = vld [vmem:[%s2970 + $0x139] sm:$0xff]
        %v4157 = vld [vmem:[%s2970 + $0x141] sm:$0xff]
        %v4158 = vld [vmem:[%s2970 + $0x151] sm:$0xff]
        %v4159 = vld [vmem:[%s2970 + $0x159] sm:$0xff]
        %v4160 = vld [vmem:[%s2970 + $0x169] sm:$0xff]
        %v4161 = vld [vmem:[%s2970 + $0x171] sm:$0xff]
        %v4162 = vpack.c.bf16 %v4131, %v4130
        %v4163 = vpack.c.bf16 %v4133, %v4132
        %v4164 = vpack.c.bf16 %v4135, %v4134
        %v4165 = vpack.c.bf16 %v4137, %v4136
        %v4166 = vpack.c.bf16 %v4139, %v4138
        %v4167 = vpack.c.bf16 %v4141, %v4140
        %v4168 = vpack.c.bf16 %v4143, %v4142
        %v4169 = vpack.c.bf16 %v4145, %v4144
        %v4170 = vpack.c.bf16 %v4147, %v4146
        %v4171 = vpack.c.bf16 %v4149, %v4148
        %v4172 = vpack.c.bf16 %v4151, %v4150
        %v4173 = vpack.c.bf16 %v4153, %v4152
        %v4174 = vpack.c.bf16 %v4155, %v4154
        %v4175 = vpack.c.bf16 %v4157, %v4156
        %v4176 = vpack.c.bf16 %v4159, %v4158
        %v4177 = vpack.c.bf16 %v4161, %v4160
        %s4178 = scalar_lea.vmem %s3, 32
        %v4179 = vld [vmem:[%s4178] sm:$0xf]
        %v4180 = vld [vmem:[%s4178 + $0x4] sm:$0xf]
        %v4183 = vunpack.c.l.b16 %v4179
        %v4184 = vunpack.c.l.b16 %v4180
        %v4185 = vpack.c.b16 %v4184, %v4183
        %v4188 = vsel %vm2914, %v4162, 0
        %v4191 = vsel %vm2914, %v4163, 0
        %v4194 = vsel %vm2914, %v4164, 0
        %v4197 = vsel %vm2914, %v4165, 0
        %v4200 = vsel %vm2914, %v4166, 0
        %v4203 = vsel %vm2914, %v4167, 0
        %v4206 = vsel %vm2914, %v4168, 0
        %v4209 = vsel %vm2914, %v4169, 0
        %v4212 = vsel %vm2914, %v4170, 0
        %v4215 = vsel %vm2914, %v4171, 0
        %v4218 = vsel %vm2914, %v4172, 0
        %v4221 = vsel %vm2914, %v4173, 0
        %v4224 = vsel %vm2914, %v4174, 0
        %v4227 = vsel %vm2914, %v4175, 0
        %v4230 = vsel %vm2914, %v4176, 0
        %v4233 = vsel %vm2914, %v4177, 0
        %4235 = vmatprep.subr.bf16.mxu0 0
        %4236 = vmatpush1.bf16.msra.mxu0 %v4185
        %4237 = vmatprep.subr.bf16.mxu0 0
        %4238 = vmatpush1.bf16.msra.mxu0 0
        %4239 = vmatprep.subr.bf16.mxu0 0
        %4240 = vmatpush1.bf16.msra.mxu0 0
        %4241 = vmatprep.subr.bf16.mxu0 0
        %4242 = vmatpush1.bf16.msra.mxu0 0
        %4243 = vmatprep.subr.bf16.mxu0 0
        %4244 = vmatpush1.bf16.msra.mxu0 0
        %4245 = vmatprep.subr.bf16.mxu0 0
        %4246 = vmatpush1.bf16.msra.mxu0 0
        %4247 = vmatprep.subr.bf16.mxu0 0
        %4248 = vmatpush1.bf16.msra.mxu0 0
        %4249 = vmatprep.subr.bf16.mxu0 0
        %4250 = vmatpush1.bf16.msra.mxu0 0
        %4251 = vmatprep.subr.bf16.mxu0 0
        %4252 = vmatpush1.bf16.msra.mxu0 0
        %4253 = vmatprep.subr.bf16.mxu0 0
        %4254 = vmatpush1.bf16.msra.mxu0 0
        %4255 = vmatprep.subr.bf16.mxu0 0
        %4256 = vmatpush1.bf16.msra.mxu0 0
        %4257 = vmatprep.subr.bf16.mxu0 0
        %4258 = vmatpush1.bf16.msra.mxu0 0
        %4259 = vmatprep.subr.bf16.mxu0 0
        %4260 = vmatpush1.bf16.msra.mxu0 0
        %4261 = vmatprep.subr.bf16.mxu0 0
        %4262 = vmatpush1.bf16.msra.mxu0 0
        %4263 = vmatprep.subr.bf16.mxu0 0
        %4264 = vmatpush1.bf16.msra.mxu0 0
        %4265 = vmatprep.subr.bf16.mxu0 0
        %4266 = vmatpush1.bf16.msra.mxu0 0
        %4267 = vmatprep.mubr.bf16.mxu0 0
        %4268 = vmatmul.mubr.bf16.gmra.mrb[0].mxu0 %v4188
        %v4269 = vpop.f32.mrb[0].mxu0
        %v4270 = vadd.f32 0.0, %v4269
        %v4271 = vpop.f32.mrb[0].mxu0
        %v4272 = vpop.f32.mrb[0].mxu0
        %v4273 = vadd.f32 0.0, %v4272
        %v4274 = vpop.f32.mrb[0].mxu0
        %4275 = vmatprep.mubr.bf16.mxu0 0
        %4276 = vmatmul.mubr.bf16.gmra.mrb[0].mxu0 %v4191
        %v4277 = vpop.f32.mrb[0].mxu0
        %v4278 = vadd.f32 0.0, %v4277
        %v4279 = vpop.f32.mrb[0].mxu0
        %v4280 = vpop.f32.mrb[0].mxu0
        %v4281 = vadd.f32 0.0, %v4280
        %v4282 = vpop.f32.mrb[0].mxu0
        %4283 = vmatprep.mubr.bf16.mxu0 0
        %4284 = vmatmul.mubr.bf16.gmra.mrb[0].mxu0 %v4194
        %v4285 = vpop.f32.mrb[0].mxu0
        %v4286 = vadd.f32 0.0, %v4285
        %v4287 = vpop.f32.mrb[0].mxu0
        %v4288 = vpop.f32.mrb[0].mxu0
        %v4289 = vadd.f32 0.0, %v4288
        %v4290 = vpop.f32.mrb[0].mxu0
        %4291 = vmatprep.mubr.bf16.mxu0 0
        %4292 = vmatmul.mubr.bf16.gmra.mrb[0].mxu0 %v4197
        %v4293 = vpop.f32.mrb[0].mxu0
        %v4294 = vadd.f32 0.0, %v4293
        %v4295 = vpop.f32.mrb[0].mxu0
        %v4296 = vpop.f32.mrb[0].mxu0
        %v4297 = vadd.f32 0.0, %v4296
        %v4298 = vpop.f32.mrb[0].mxu0
        %4299 = vmatprep.mubr.bf16.mxu0 0
        %4300 = vmatmul.mubr.bf16.gmra.mrb[0].mxu0 %v4200
        %v4301 = vpop.f32.mrb[0].mxu0
        %v4302 = vadd.f32 0.0, %v4301
        %v4303 = vpop.f32.mrb[0].mxu0
        %v4304 = vpop.f32.mrb[0].mxu0
        %v4305 = vadd.f32 0.0, %v4304
        %v4306 = vpop.f32.mrb[0].mxu0
        %4307 = vmatprep.mubr.bf16.mxu0 0
        %4308 = vmatmul.mubr.bf16.gmra.mrb[0].mxu0 %v4203
        %v4309 = vpop.f32.mrb[0].mxu0
        %v4310 = vadd.f32 0.0, %v4309
        %v4311 = vpop.f32.mrb[0].mxu0
        %v4312 = vpop.f32.mrb[0].mxu0
        %v4313 = vadd.f32 0.0, %v4312
        %v4314 = vpop.f32.mrb[0].mxu0
        %4315 = vmatprep.mubr.bf16.mxu0 0
        %4316 = vmatmul.mubr.bf16.gmra.mrb[0].mxu0 %v4206
        %v4317 = vpop.f32.mrb[0].mxu0
        %v4318 = vadd.f32 0.0, %v4317
        %v4319 = vpop.f32.mrb[0].mxu0
        %v4320 = vpop.f32.mrb[0].mxu0
        %v4321 = vadd.f32 0.0, %v4320
        %v4322 = vpop.f32.mrb[0].mxu0
        %4323 = vmatprep.mubr.bf16.mxu0 0
        %4324 = vmatmul.mubr.bf16.gmra.mrb[0].mxu0 %v4209
        %v4325 = vpop.f32.mrb[0].mxu0
        %v4326 = vadd.f32 0.0, %v4325
        %v4327 = vpop.f32.mrb[0].mxu0
        %v4328 = vpop.f32.mrb[0].mxu0
        %v4329 = vadd.f32 0.0, %v4328
        %v4330 = vpop.f32.mrb[0].mxu0
        %4331 = vmatprep.mubr.bf16.mxu0 0
        %4332 = vmatmul.mubr.bf16.gmra.mrb[0].mxu0 %v4212
        %v4333 = vpop.f32.mrb[0].mxu0
        %v4334 = vadd.f32 0.0, %v4333
        %v4335 = vpop.f32.mrb[0].mxu0
        %v4336 = vpop.f32.mrb[0].mxu0
        %v4337 = vadd.f32 0.0, %v4336
        %v4338 = vpop.f32.mrb[0].mxu0
        %4339 = vmatprep.mubr.bf16.mxu0 0
        %4340 = vmatmul.mubr.bf16.gmra.mrb[0].mxu0 %v4215
        %v4341 = vpop.f32.mrb[0].mxu0
        %v4342 = vadd.f32 0.0, %v4341
        %v4343 = vpop.f32.mrb[0].mxu0
        %v4344 = vpop.f32.mrb[0].mxu0
        %v4345 = vadd.f32 0.0, %v4344
        %v4346 = vpop.f32.mrb[0].mxu0
        %4347 = vmatprep.mubr.bf16.mxu0 0
        %4348 = vmatmul.mubr.bf16.gmra.mrb[0].mxu0 %v4218
        %v4349 = vpop.f32.mrb[0].mxu0
        %v4350 = vadd.f32 0.0, %v4349
        %v4351 = vpop.f32.mrb[0].mxu0
        %v4352 = vpop.f32.mrb[0].mxu0
        %v4353 = vadd.f32 0.0, %v4352
        %v4354 = vpop.f32.mrb[0].mxu0
        %4355 = vmatprep.mubr.bf16.mxu0 0
        %4356 = vmatmul.mubr.bf16.gmra.mrb[0].mxu0 %v4221
        %v4357 = vpop.f32.mrb[0].mxu0
        %v4358 = vadd.f32 0.0, %v4357
        %v4359 = vpop.f32.mrb[0].mxu0
        %v4360 = vpop.f32.mrb[0].mxu0
        %v4361 = vadd.f32 0.0, %v4360
        %v4362 = vpop.f32.mrb[0].mxu0
        %4363 = vmatprep.mubr.bf16.mxu0 0
        %4364 = vmatmul.mubr.bf16.gmra.mrb[0].mxu0 %v4224
        %v4365 = vpop.f32.mrb[0].mxu0
        %v4366 = vadd.f32 0.0, %v4365
        %v4367 = vpop.f32.mrb[0].mxu0
        %v4368 = vpop.f32.mrb[0].mxu0
        %v4369 = vadd.f32 0.0, %v4368
        %v4370 = vpop.f32.mrb[0].mxu0
        %4371 = vmatprep.mubr.bf16.mxu0 0
        %4372 = vmatmul.mubr.bf16.gmra.mrb[0].mxu0 %v4227
        %v4373 = vpop.f32.mrb[0].mxu0
        %v4374 = vadd.f32 0.0, %v4373
        %v4375 = vpop.f32.mrb[0].mxu0
        %v4376 = vpop.f32.mrb[0].mxu0
        %v4377 = vadd.f32 0.0, %v4376
        %v4378 = vpop.f32.mrb[0].mxu0
        %4379 = vmatprep.mubr.bf16.mxu0 0
        %4380 = vmatmul.mubr.bf16.gmra.mrb[0].mxu0 %v4230
        %v4381 = vpop.f32.mrb[0].mxu0
        %v4382 = vadd.f32 0.0, %v4381
        %v4383 = vpop.f32.mrb[0].mxu0
        %v4384 = vpop.f32.mrb[0].mxu0
        %v4385 = vadd.f32 0.0, %v4384
        %v4386 = vpop.f32.mrb[0].mxu0
        %4387 = vmatprep.mubr.bf16.mxu0 0
        %4388 = vmatmul.mubr.bf16.gmra.mrb[0].mxu0 %v4233
        %v4389 = vpop.f32.mrb[0].mxu0
        %v4390 = vadd.f32 0.0, %v4389
        %v4391 = vpop.f32.mrb[0].mxu0
        %v4392 = vpop.f32.mrb[0].mxu0
        %v4393 = vadd.f32 0.0, %v4392
        %v4394 = vpop.f32.mrb[0].mxu0
        %4395 = vdwg.mxu0
        %v4396 = vadd.f32 %v4098, %v4270
        %v4397 = vadd.f32 %v4099, %v4273
        %v4398 = vadd.f32 %v4100, %v4278
        %v4399 = vadd.f32 %v4101, %v4281
        %v4400 = vadd.f32 %v4102, %v4286
        %v4401 = vadd.f32 %v4103, %v4289
        %v4402 = vadd.f32 %v4104, %v4294
        %v4403 = vadd.f32 %v4105, %v4297
        %v4404 = vadd.f32 %v4106, %v4302
        %v4405 = vadd.f32 %v4107, %v4305
        %v4406 = vadd.f32 %v4108, %v4310
        %v4407 = vadd.f32 %v4109, %v4313
        %v4408 = vadd.f32 %v4110, %v4318
        %v4409 = vadd.f32 %v4111, %v4321
        %v4410 = vadd.f32 %v4112, %v4326
        %v4411 = vadd.f32 %v4113, %v4329
        %v4412 = vadd.f32 %v4114, %v4334
        %v4413 = vadd.f32 %v4115, %v4337
        %v4414 = vadd.f32 %v4116, %v4342
        %v4415 = vadd.f32 %v4117, %v4345
        %v4416 = vadd.f32 %v4118, %v4350
        %v4417 = vadd.f32 %v4119, %v4353
        %v4418 = vadd.f32 %v4120, %v4358
        %v4419 = vadd.f32 %v4121, %v4361
        %v4420 = vadd.f32 %v4122, %v4366
        %v4421 = vadd.f32 %v4123, %v4369
        %v4422 = vadd.f32 %v4124, %v4374
        %v4423 = vadd.f32 %v4125, %v4377
        %v4424 = vadd.f32 %v4126, %v4382
        %v4425 = vadd.f32 %v4127, %v4385
        %v4426 = vadd.f32 %v4128, %v4390
        %v4427 = vadd.f32 %v4129, %v4393
        %v4428 = vld [vmem:[%s2970 + $0x2] sm:$0xff]
        %v4429 = vld [vmem:[%s2970 + $0xa] sm:$0xff]
        %v4430 = vld [vmem:[%s2970 + $0x1a] sm:$0xff]
        %v4431 = vld [vmem:[%s2970 + $0x22] sm:$0xff]
        %v4432 = vld [vmem:[%s2970 + $0x32] sm:$0xff]
        %v4433 = vld [vmem:[%s2970 + $0x3a] sm:$0xff]
        %v4434 = vld [vmem:[%s2970 + $0x4a] sm:$0xff]
        %v4435 = vld [vmem:[%s2970 + $0x52] sm:$0xff]
        %v4436 = vld [vmem:[%s2970 + $0x62] sm:$0xff]
        %v4437 = vld [vmem:[%s2970 + $0x6a] sm:$0xff]
        %v4438 = vld [vmem:[%s2970 + $0x7a] sm:$0xff]
        %v4439 = vld [vmem:[%s2970 + $0x82] sm:$0xff]
        %v4440 = vld [vmem:[%s2970 + $0x92] sm:$0xff]
        %v4441 = vld [vmem:[%s2970 + $0x9a] sm:$0xff]
        %v4442 = vld [vmem:[%s2970 + $0xaa] sm:$0xff]
        %v4443 = vld [vmem:[%s2970 + $0xb2] sm:$0xff]
        %v4444 = vld [vmem:[%s2970 + $0xc2] sm:$0xff]
        %v4445 = vld [vmem:[%s2970 + $0xca] sm:$0xff]
        %v4446 = vld [vmem:[%s2970 + $0xda] sm:$0xff]
        %v4447 = vld [vmem:[%s2970 + $0xe2] sm:$0xff]
        %v4448 = vld [vmem:[%s2970 + $0xf2] sm:$0xff]
        %v4449 = vld [vmem:[%s2970 + $0xfa] sm:$0xff]
        %v4450 = vld [vmem:[%s2970 + $0x10a] sm:$0xff]
        %v4451 = vld [vmem:[%s2970 + $0x112] sm:$0xff]
        %v4452 = vld [vmem:[%s2970 + $0x122] sm:$0xff]
        %v4453 = vld [vmem:[%s2970 + $0x12a] sm:$0xff]
        %v4454 = vld [vmem:[%s2970 + $0x13a] sm:$0xff]
        %v4455 = vld [vmem:[%s2970 + $0x142] sm:$0xff]
        %v4456 = vld [vmem:[%s2970 + $0x152] sm:$0xff]
        %v4457 = vld [vmem:[%s2970 + $0x15a] sm:$0xff]
        %v4458 = vld [vmem:[%s2970 + $0x16a] sm:$0xff]
        %v4459 = vld [vmem:[%s2970 + $0x172] sm:$0xff]
        %v4460 = vpack.c.bf16 %v4429, %v4428
        %v4461 = vpack.c.bf16 %v4431, %v4430
        %v4462 = vpack.c.bf16 %v4433, %v4432
        %v4463 = vpack.c.bf16 %v4435, %v4434
        %v4464 = vpack.c.bf16 %v4437, %v4436
        %v4465 = vpack.c.bf16 %v4439, %v4438
        %v4466 = vpack.c.bf16 %v4441, %v4440
        %v4467 = vpack.c.bf16 %v4443, %v4442
        %v4468 = vpack.c.bf16 %v4445, %v4444
        %v4469 = vpack.c.bf16 %v4447, %v4446
        %v4470 = vpack.c.bf16 %v4449, %v4448
        %v4471 = vpack.c.bf16 %v4451, %v4450
        %v4472 = vpack.c.bf16 %v4453, %v4452
        %v4473 = vpack.c.bf16 %v4455, %v4454
        %v4474 = vpack.c.bf16 %v4457, %v4456
        %v4475 = vpack.c.bf16 %v4459, %v4458
        %s4476 = scalar_lea.vmem %s3, 40
        %v4477 = vld [vmem:[%s4476] sm:$0xf]
        %v4478 = vld [vmem:[%s4476 + $0x4] sm:$0xf]
        %v4481 = vunpack.c.l.b16 %v4477
        %v4482 = vunpack.c.l.b16 %v4478
        %v4483 = vpack.c.b16 %v4482, %v4481
        %v4486 = vsel %vm2914, %v4460, 0
        %v4489 = vsel %vm2914, %v4461, 0
        %v4492 = vsel %vm2914, %v4462, 0
        %v4495 = vsel %vm2914, %v4463, 0
        %v4498 = vsel %vm2914, %v4464, 0
        %v4501 = vsel %vm2914, %v4465, 0
        %v4504 = vsel %vm2914, %v4466, 0
        %v4507 = vsel %vm2914, %v4467, 0
        %v4510 = vsel %vm2914, %v4468, 0
        %v4513 = vsel %vm2914, %v4469, 0
        %v4516 = vsel %vm2914, %v4470, 0
        %v4519 = vsel %vm2914, %v4471, 0
        %v4522 = vsel %vm2914, %v4472, 0
        %v4525 = vsel %vm2914, %v4473, 0
        %v4528 = vsel %vm2914, %v4474, 0
        %v4531 = vsel %vm2914, %v4475, 0
        %4533 = vmatprep.subr.bf16.mxu0 0
        %4534 = vmatpush1.bf16.msra.mxu0 %v4483
        %4535 = vmatprep.subr.bf16.mxu0 0
        %4536 = vmatpush1.bf16.msra.mxu0 0
        %4537 = vmatprep.subr.bf16.mxu0 0
        %4538 = vmatpush1.bf16.msra.mxu0 0
        %4539 = vmatprep.subr.bf16.mxu0 0
        %4540 = vmatpush1.bf16.msra.mxu0 0
        %4541 = vmatprep.subr.bf16.mxu0 0
        %4542 = vmatpush1.bf16.msra.mxu0 0
        %4543 = vmatprep.subr.bf16.mxu0 0
        %4544 = vmatpush1.bf16.msra.mxu0 0
        %4545 = vmatprep.subr.bf16.mxu0 0
        %4546 = vmatpush1.bf16.msra.mxu0 0
        %4547 = vmatprep.subr.bf16.mxu0 0
        %4548 = vmatpush1.bf16.msra.mxu0 0
        %4549 = vmatprep.subr.bf16.mxu0 0
        %4550 = vmatpush1.bf16.msra.mxu0 0
        %4551 = vmatprep.subr.bf16.mxu0 0
        %4552 = vmatpush1.bf16.msra.mxu0 0
        %4553 = vmatprep.subr.bf16.mxu0 0
        %4554 = vmatpush1.bf16.msra.mxu0 0
        %4555 = vmatprep.subr.bf16.mxu0 0
        %4556 = vmatpush1.bf16.msra.mxu0 0
        %4557 = vmatprep.subr.bf16.mxu0 0
        %4558 = vmatpush1.bf16.msra.mxu0 0
        %4559 = vmatprep.subr.bf16.mxu0 0
        %4560 = vmatpush1.bf16.msra.mxu0 0
        %4561 = vmatprep.subr.bf16.mxu0 0
        %4562 = vmatpush1.bf16.msra.mxu0 0
        %4563 = vmatprep.subr.bf16.mxu0 0
        %4564 = vmatpush1.bf16.msra.mxu0 0
        %4565 = vmatprep.mubr.bf16.mxu0 0
        %4566 = vmatmul.mubr.bf16.gmra.mrb[0].mxu0 %v4486
        %v4567 = vpop.f32.mrb[0].mxu0
        %v4568 = vadd.f32 0.0, %v4567
        %v4569 = vpop.f32.mrb[0].mxu0
        %v4570 = vpop.f32.mrb[0].mxu0
        %v4571 = vadd.f32 0.0, %v4570
        %v4572 = vpop.f32.mrb[0].mxu0
        %4573 = vmatprep.mubr.bf16.mxu0 0
        %4574 = vmatmul.mubr.bf16.gmra.mrb[0].mxu0 %v4489
        %v4575 = vpop.f32.mrb[0].mxu0
        %v4576 = vadd.f32 0.0, %v4575
        %v4577 = vpop.f32.mrb[0].mxu0
        %v4578 = vpop.f32.mrb[0].mxu0
        %v4579 = vadd.f32 0.0, %v4578
        %v4580 = vpop.f32.mrb[0].mxu0
        %4581 = vmatprep.mubr.bf16.mxu0 0
        %4582 = vmatmul.mubr.bf16.gmra.mrb[0].mxu0 %v4492
        %v4583 = vpop.f32.mrb[0].mxu0
        %v4584 = vadd.f32 0.0, %v4583
        %v4585 = vpop.f32.mrb[0].mxu0
        %v4586 = vpop.f32.mrb[0].mxu0
        %v4587 = vadd.f32 0.0, %v4586
        %v4588 = vpop.f32.mrb[0].mxu0
        %4589 = vmatprep.mubr.bf16.mxu0 0
        %4590 = vmatmul.mubr.bf16.gmra.mrb[0].mxu0 %v4495
        %v4591 = vpop.f32.mrb[0].mxu0
        %v4592 = vadd.f32 0.0, %v4591
        %v4593 = vpop.f32.mrb[0].mxu0
        %v4594 = vpop.f32.mrb[0].mxu0
        %v4595 = vadd.f32 0.0, %v4594
        %v4596 = vpop.f32.mrb[0].mxu0
        %4597 = vmatprep.mubr.bf16.mxu0 0
        %4598 = vmatmul.mubr.bf16.gmra.mrb[0].mxu0 %v4498
        %v4599 = vpop.f32.mrb[0].mxu0
        %v4600 = vadd.f32 0.0, %v4599
        %v4601 = vpop.f32.mrb[0].mxu0
        %v4602 = vpop.f32.mrb[0].mxu0
        %v4603 = vadd.f32 0.0, %v4602
        %v4604 = vpop.f32.mrb[0].mxu0
        %4605 = vmatprep.mubr.bf16.mxu0 0
        %4606 = vmatmul.mubr.bf16.gmra.mrb[0].mxu0 %v4501
        %v4607 = vpop.f32.mrb[0].mxu0
        %v4608 = vadd.f32 0.0, %v4607
        %v4609 = vpop.f32.mrb[0].mxu0
        %v4610 = vpop.f32.mrb[0].mxu0
        %v4611 = vadd.f32 0.0, %v4610
        %v4612 = vpop.f32.mrb[0].mxu0
        %4613 = vmatprep.mubr.bf16.mxu0 0
        %4614 = vmatmul.mubr.bf16.gmra.mrb[0].mxu0 %v4504
        %v4615 = vpop.f32.mrb[0].mxu0
        %v4616 = vadd.f32 0.0, %v4615
        %v4617 = vpop.f32.mrb[0].mxu0
        %v4618 = vpop.f32.mrb[0].mxu0
        %v4619 = vadd.f32 0.0, %v4618
        %v4620 = vpop.f32.mrb[0].mxu0
        %4621 = vmatprep.mubr.bf16.mxu0 0
        %4622 = vmatmul.mubr.bf16.gmra.mrb[0].mxu0 %v4507
        %v4623 = vpop.f32.mrb[0].mxu0
        %v4624 = vadd.f32 0.0, %v4623
        %v4625 = vpop.f32.mrb[0].mxu0
        %v4626 = vpop.f32.mrb[0].mxu0
        %v4627 = vadd.f32 0.0, %v4626
        %v4628 = vpop.f32.mrb[0].mxu0
        %4629 = vmatprep.mubr.bf16.mxu0 0
        %4630 = vmatmul.mubr.bf16.gmra.mrb[0].mxu0 %v4510
        %v4631 = vpop.f32.mrb[0].mxu0
        %v4632 = vadd.f32 0.0, %v4631
        %v4633 = vpop.f32.mrb[0].mxu0
        %v4634 = vpop.f32.mrb[0].mxu0
        %v4635 = vadd.f32 0.0, %v4634
        %v4636 = vpop.f32.mrb[0].mxu0
        %4637 = vmatprep.mubr.bf16.mxu0 0
        %4638 = vmatmul.mubr.bf16.gmra.mrb[0].mxu0 %v4513
        %v4639 = vpop.f32.mrb[0].mxu0
        %v4640 = vadd.f32 0.0, %v4639
        %v4641 = vpop.f32.mrb[0].mxu0
        %v4642 = vpop.f32.mrb[0].mxu0
        %v4643 = vadd.f32 0.0, %v4642
        %v4644 = vpop.f32.mrb[0].mxu0
        %4645 = vmatprep.mubr.bf16.mxu0 0
        %4646 = vmatmul.mubr.bf16.gmra.mrb[0].mxu0 %v4516
        %v4647 = vpop.f32.mrb[0].mxu0
        %v4648 = vadd.f32 0.0, %v4647
        %v4649 = vpop.f32.mrb[0].mxu0
        %v4650 = vpop.f32.mrb[0].mxu0
        %v4651 = vadd.f32 0.0, %v4650
        %v4652 = vpop.f32.mrb[0].mxu0
        %4653 = vmatprep.mubr.bf16.mxu0 0
        %4654 = vmatmul.mubr.bf16.gmra.mrb[0].mxu0 %v4519
        %v4655 = vpop.f32.mrb[0].mxu0
        %v4656 = vadd.f32 0.0, %v4655
        %v4657 = vpop.f32.mrb[0].mxu0
        %v4658 = vpop.f32.mrb[0].mxu0
        %v4659 = vadd.f32 0.0, %v4658
        %v4660 = vpop.f32.mrb[0].mxu0
        %4661 = vmatprep.mubr.bf16.mxu0 0
        %4662 = vmatmul.mubr.bf16.gmra.mrb[0].mxu0 %v4522
        %v4663 = vpop.f32.mrb[0].mxu0
        %v4664 = vadd.f32 0.0, %v4663
        %v4665 = vpop.f32.mrb[0].mxu0
        %v4666 = vpop.f32.mrb[0].mxu0
        %v4667 = vadd.f32 0.0, %v4666
        %v4668 = vpop.f32.mrb[0].mxu0
        %4669 = vmatprep.mubr.bf16.mxu0 0
        %4670 = vmatmul.mubr.bf16.gmra.mrb[0].mxu0 %v4525
        %v4671 = vpop.f32.mrb[0].mxu0
        %v4672 = vadd.f32 0.0, %v4671
        %v4673 = vpop.f32.mrb[0].mxu0
        %v4674 = vpop.f32.mrb[0].mxu0
        %v4675 = vadd.f32 0.0, %v4674
        %v4676 = vpop.f32.mrb[0].mxu0
        %4677 = vmatprep.mubr.bf16.mxu0 0
        %4678 = vmatmul.mubr.bf16.gmra.mrb[0].mxu0 %v4528
        %v4679 = vpop.f32.mrb[0].mxu0
        %v4680 = vadd.f32 0.0, %v4679
        %v4681 = vpop.f32.mrb[0].mxu0
        %v4682 = vpop.f32.mrb[0].mxu0
        %v4683 = vadd.f32 0.0, %v4682
        %v4684 = vpop.f32.mrb[0].mxu0
        %4685 = vmatprep.mubr.bf16.mxu0 0
        %4686 = vmatmul.mubr.bf16.gmra.mrb[0].mxu0 %v4531
        %v4687 = vpop.f32.mrb[0].mxu0
        %v4688 = vadd.f32 0.0, %v4687
        %v4689 = vpop.f32.mrb[0].mxu0
        %v4690 = vpop.f32.mrb[0].mxu0
        %v4691 = vadd.f32 0.0, %v4690
        %v4692 = vpop.f32.mrb[0].mxu0
        %4693 = vdwg.mxu0
        %v4694 = vadd.f32 %v4396, %v4568
        %v4695 = vadd.f32 %v4397, %v4571
        %v4696 = vadd.f32 %v4398, %v4576
        %v4697 = vadd.f32 %v4399, %v4579
        %v4698 = vadd.f32 %v4400, %v4584
        %v4699 = vadd.f32 %v4401, %v4587
        %v4700 = vadd.f32 %v4402, %v4592
        %v4701 = vadd.f32 %v4403, %v4595
        %v4702 = vadd.f32 %v4404, %v4600
        %v4703 = vadd.f32 %v4405, %v4603
        %v4704 = vadd.f32 %v4406, %v4608
        %v4705 = vadd.f32 %v4407, %v4611
        %v4706 = vadd.f32 %v4408, %v4616
        %v4707 = vadd.f32 %v4409, %v4619
        %v4708 = vadd.f32 %v4410, %v4624
        %v4709 = vadd.f32 %v4411, %v4627
        %v4710 = vadd.f32 %v4412, %v4632
        %v4711 = vadd.f32 %v4413, %v4635
        %v4712 = vadd.f32 %v4414, %v4640
        %v4713 = vadd.f32 %v4415, %v4643
        %v4714 = vadd.f32 %v4416, %v4648
        %v4715 = vadd.f32 %v4417, %v4651
        %v4716 = vadd.f32 %v4418, %v4656
        %v4717 = vadd.f32 %v4419, %v4659
        %v4718 = vadd.f32 %v4420, %v4664
        %v4719 = vadd.f32 %v4421, %v4667
        %v4720 = vadd.f32 %v4422, %v4672
        %v4721 = vadd.f32 %v4423, %v4675
        %v4722 = vadd.f32 %v4424, %v4680
        %v4723 = vadd.f32 %v4425, %v4683
        %v4724 = vadd.f32 %v4426, %v4688
        %v4725 = vadd.f32 %v4427, %v4691
        %s4726 = scalar_lea.vmem [#allocation3], 48
        %v4727 = vld [vmem:[%s4726] sm:$0xff]
        %v4728 = vld [vmem:[%s4726 + $0x8] sm:$0xff]
        %v4729 = vld [vmem:[%s4726 + $0x18] sm:$0xff]
        %v4730 = vld [vmem:[%s4726 + $0x20] sm:$0xff]
        %v4731 = vld [vmem:[%s4726 + $0x30] sm:$0xff]
        %v4732 = vld [vmem:[%s4726 + $0x38] sm:$0xff]
        %v4733 = vld [vmem:[%s4726 + $0x48] sm:$0xff]
        %v4734 = vld [vmem:[%s4726 + $0x50] sm:$0xff]
        %v4735 = vld [vmem:[%s4726 + $0x60] sm:$0xff]
        %v4736 = vld [vmem:[%s4726 + $0x68] sm:$0xff]
        %v4737 = vld [vmem:[%s4726 + $0x78] sm:$0xff]
        %v4738 = vld [vmem:[%s4726 + $0x80] sm:$0xff]
        %v4739 = vld [vmem:[%s4726 + $0x90] sm:$0xff]
        %v4740 = vld [vmem:[%s4726 + $0x98] sm:$0xff]
        %v4741 = vld [vmem:[%s4726 + $0xa8] sm:$0xff]
        %v4742 = vld [vmem:[%s4726 + $0xb0] sm:$0xff]
        %v4743 = vld [vmem:[%s4726 + $0xc0] sm:$0xff]
        %v4744 = vld [vmem:[%s4726 + $0xc8] sm:$0xff]
        %v4745 = vld [vmem:[%s4726 + $0xd8] sm:$0xff]
        %v4746 = vld [vmem:[%s4726 + $0xe0] sm:$0xff]
        %v4747 = vld [vmem:[%s4726 + $0xf0] sm:$0xff]
        %v4748 = vld [vmem:[%s4726 + $0xf8] sm:$0xff]
        %v4749 = vld [vmem:[%s4726 + $0x108] sm:$0xff]
        %v4750 = vld [vmem:[%s4726 + $0x110] sm:$0xff]
        %v4751 = vld [vmem:[%s4726 + $0x120] sm:$0xff]
        %v4752 = vld [vmem:[%s4726 + $0x128] sm:$0xff]
        %v4753 = vld [vmem:[%s4726 + $0x138] sm:$0xff]
        %v4754 = vld [vmem:[%s4726 + $0x140] sm:$0xff]
        %v4755 = vld [vmem:[%s4726 + $0x150] sm:$0xff]
        %v4756 = vld [vmem:[%s4726 + $0x158] sm:$0xff]
        %v4757 = vld [vmem:[%s4726 + $0x168] sm:$0xff]
        %v4758 = vld [vmem:[%s4726 + $0x170] sm:$0xff]
        %v4759 = vpack.c.bf16 %v4728, %v4727
        %v4760 = vpack.c.bf16 %v4730, %v4729
        %v4761 = vpack.c.bf16 %v4732, %v4731
        %v4762 = vpack.c.bf16 %v4734, %v4733
        %v4763 = vpack.c.bf16 %v4736, %v4735
        %v4764 = vpack.c.bf16 %v4738, %v4737
        %v4765 = vpack.c.bf16 %v4740, %v4739
        %v4766 = vpack.c.bf16 %v4742, %v4741
        %v4767 = vpack.c.bf16 %v4744, %v4743
        %v4768 = vpack.c.bf16 %v4746, %v4745
        %v4769 = vpack.c.bf16 %v4748, %v4747
        %v4770 = vpack.c.bf16 %v4750, %v4749
        %v4771 = vpack.c.bf16 %v4752, %v4751
        %v4772 = vpack.c.bf16 %v4754, %v4753
        %v4773 = vpack.c.bf16 %v4756, %v4755
        %v4774 = vpack.c.bf16 %v4758, %v4757
        %s4775 = scalar_lea.vmem %s3, 48
        %v4776 = vld [vmem:[%s4775] sm:$0xf]
        %v4777 = vld [vmem:[%s4775 + $0x4] sm:$0xf]
        %v4780 = vunpack.c.l.b16 %v4776
        %v4781 = vunpack.c.l.b16 %v4777
        %v4782 = vpack.c.b16 %v4781, %v4780
        %v4785 = vsel %vm2914, %v4759, 0
        %v4788 = vsel %vm2914, %v4760, 0
        %v4791 = vsel %vm2914, %v4761, 0
        %v4794 = vsel %vm2914, %v4762, 0
        %v4797 = vsel %vm2914, %v4763, 0
        %v4800 = vsel %vm2914, %v4764, 0
        %v4803 = vsel %vm2914, %v4765, 0
        %v4806 = vsel %vm2914, %v4766, 0
        %v4809 = vsel %vm2914, %v4767, 0
        %v4812 = vsel %vm2914, %v4768, 0
        %v4815 = vsel %vm2914, %v4769, 0
        %v4818 = vsel %vm2914, %v4770, 0
        %v4821 = vsel %vm2914, %v4771, 0
        %v4824 = vsel %vm2914, %v4772, 0
        %v4827 = vsel %vm2914, %v4773, 0
        %v4830 = vsel %vm2914, %v4774, 0
        %4832 = vmatprep.subr.bf16.mxu0 0
        %4833 = vmatpush1.bf16.msra.mxu0 %v4782
        %4834 = vmatprep.subr.bf16.mxu0 0
        %4835 = vmatpush1.bf16.msra.mxu0 0
        %4836 = vmatprep.subr.bf16.mxu0 0
        %4837 = vmatpush1.bf16.msra.mxu0 0
        %4838 = vmatprep.subr.bf16.mxu0 0
        %4839 = vmatpush1.bf16.msra.mxu0 0
        %4840 = vmatprep.subr.bf16.mxu0 0
        %4841 = vmatpush1.bf16.msra.mxu0 0
        %4842 = vmatprep.subr.bf16.mxu0 0
        %4843 = vmatpush1.bf16.msra.mxu0 0
        %4844 = vmatprep.subr.bf16.mxu0 0
        %4845 = vmatpush1.bf16.msra.mxu0 0
        %4846 = vmatprep.subr.bf16.mxu0 0
        %4847 = vmatpush1.bf16.msra.mxu0 0
        %4848 = vmatprep.subr.bf16.mxu0 0
        %4849 = vmatpush1.bf16.msra.mxu0 0
        %4850 = vmatprep.subr.bf16.mxu0 0
        %4851 = vmatpush1.bf16.msra.mxu0 0
        %4852 = vmatprep.subr.bf16.mxu0 0
        %4853 = vmatpush1.bf16.msra.mxu0 0
        %4854 = vmatprep.subr.bf16.mxu0 0
        %4855 = vmatpush1.bf16.msra.mxu0 0
        %4856 = vmatprep.subr.bf16.mxu0 0
        %4857 = vmatpush1.bf16.msra.mxu0 0
        %4858 = vmatprep.subr.bf16.mxu0 0
        %4859 = vmatpush1.bf16.msra.mxu0 0
        %4860 = vmatprep.subr.bf16.mxu0 0
        %4861 = vmatpush1.bf16.msra.mxu0 0
        %4862 = vmatprep.subr.bf16.mxu0 0
        %4863 = vmatpush1.bf16.msra.mxu0 0
        %4864 = vmatprep.mubr.bf16.mxu0 0
        %4865 = vmatmul.mubr.bf16.gmra.mrb[0].mxu0 %v4785
        %v4866 = vpop.f32.mrb[0].mxu0
        %v4867 = vadd.f32 0.0, %v4866
        %v4868 = vpop.f32.mrb[0].mxu0
        %v4869 = vpop.f32.mrb[0].mxu0
        %v4870 = vadd.f32 0.0, %v4869
        %v4871 = vpop.f32.mrb[0].mxu0
        %4872 = vmatprep.mubr.bf16.mxu0 0
        %4873 = vmatmul.mubr.bf16.gmra.mrb[0].mxu0 %v4788
        %v4874 = vpop.f32.mrb[0].mxu0
        %v4875 = vadd.f32 0.0, %v4874
        %v4876 = vpop.f32.mrb[0].mxu0
        %v4877 = vpop.f32.mrb[0].mxu0
        %v4878 = vadd.f32 0.0, %v4877
        %v4879 = vpop.f32.mrb[0].mxu0
        %4880 = vmatprep.mubr.bf16.mxu0 0
        %4881 = vmatmul.mubr.bf16.gmra.mrb[0].mxu0 %v4791
        %v4882 = vpop.f32.mrb[0].mxu0
        %v4883 = vadd.f32 0.0, %v4882
        %v4884 = vpop.f32.mrb[0].mxu0
        %v4885 = vpop.f32.mrb[0].mxu0
        %v4886 = vadd.f32 0.0, %v4885
        %v4887 = vpop.f32.mrb[0].mxu0
        %4888 = vmatprep.mubr.bf16.mxu0 0
        %4889 = vmatmul.mubr.bf16.gmra.mrb[0].mxu0 %v4794
        %v4890 = vpop.f32.mrb[0].mxu0
        %v4891 = vadd.f32 0.0, %v4890
        %v4892 = vpop.f32.mrb[0].mxu0
        %v4893 = vpop.f32.mrb[0].mxu0
        %v4894 = vadd.f32 0.0, %v4893
        %v4895 = vpop.f32.mrb[0].mxu0
        %4896 = vmatprep.mubr.bf16.mxu0 0
        %4897 = vmatmul.mubr.bf16.gmra.mrb[0].mxu0 %v4797
        %v4898 = vpop.f32.mrb[0].mxu0
        %v4899 = vadd.f32 0.0, %v4898
        %v4900 = vpop.f32.mrb[0].mxu0
        %v4901 = vpop.f32.mrb[0].mxu0
        %v4902 = vadd.f32 0.0, %v4901
        %v4903 = vpop.f32.mrb[0].mxu0
        %4904 = vmatprep.mubr.bf16.mxu0 0
        %4905 = vmatmul.mubr.bf16.gmra.mrb[0].mxu0 %v4800
        %v4906 = vpop.f32.mrb[0].mxu0
        %v4907 = vadd.f32 0.0, %v4906
        %v4908 = vpop.f32.mrb[0].mxu0
        %v4909 = vpop.f32.mrb[0].mxu0
        %v4910 = vadd.f32 0.0, %v4909
        %v4911 = vpop.f32.mrb[0].mxu0
        %4912 = vmatprep.mubr.bf16.mxu0 0
        %4913 = vmatmul.mubr.bf16.gmra.mrb[0].mxu0 %v4803
        %v4914 = vpop.f32.mrb[0].mxu0
        %v4915 = vadd.f32 0.0, %v4914
        %v4916 = vpop.f32.mrb[0].mxu0
        %v4917 = vpop.f32.mrb[0].mxu0
        %v4918 = vadd.f32 0.0, %v4917
        %v4919 = vpop.f32.mrb[0].mxu0
        %4920 = vmatprep.mubr.bf16.mxu0 0
        %4921 = vmatmul.mubr.bf16.gmra.mrb[0].mxu0 %v4806
        %v4922 = vpop.f32.mrb[0].mxu0
        %v4923 = vadd.f32 0.0, %v4922
        %v4924 = vpop.f32.mrb[0].mxu0
        %v4925 = vpop.f32.mrb[0].mxu0
        %v4926 = vadd.f32 0.0, %v4925
        %v4927 = vpop.f32.mrb[0].mxu0
        %4928 = vmatprep.mubr.bf16.mxu0 0
        %4929 = vmatmul.mubr.bf16.gmra.mrb[0].mxu0 %v4809
        %v4930 = vpop.f32.mrb[0].mxu0
        %v4931 = vadd.f32 0.0, %v4930
        %v4932 = vpop.f32.mrb[0].mxu0
        %v4933 = vpop.f32.mrb[0].mxu0
        %v4934 = vadd.f32 0.0, %v4933
        %v4935 = vpop.f32.mrb[0].mxu0
        %4936 = vmatprep.mubr.bf16.mxu0 0
        %4937 = vmatmul.mubr.bf16.gmra.mrb[0].mxu0 %v4812
        %v4938 = vpop.f32.mrb[0].mxu0
        %v4939 = vadd.f32 0.0, %v4938
        %v4940 = vpop.f32.mrb[0].mxu0
        %v4941 = vpop.f32.mrb[0].mxu0
        %v4942 = vadd.f32 0.0, %v4941
        %v4943 = vpop.f32.mrb[0].mxu0
        %4944 = vmatprep.mubr.bf16.mxu0 0
        %4945 = vmatmul.mubr.bf16.gmra.mrb[0].mxu0 %v4815
        %v4946 = vpop.f32.mrb[0].mxu0
        %v4947 = vadd.f32 0.0, %v4946
        %v4948 = vpop.f32.mrb[0].mxu0
        %v4949 = vpop.f32.mrb[0].mxu0
        %v4950 = vadd.f32 0.0, %v4949
        %v4951 = vpop.f32.mrb[0].mxu0
        %4952 = vmatprep.mubr.bf16.mxu0 0
        %4953 = vmatmul.mubr.bf16.gmra.mrb[0].mxu0 %v4818
        %v4954 = vpop.f32.mrb[0].mxu0
        %v4955 = vadd.f32 0.0, %v4954
        %v4956 = vpop.f32.mrb[0].mxu0
        %v4957 = vpop.f32.mrb[0].mxu0
        %v4958 = vadd.f32 0.0, %v4957
        %v4959 = vpop.f32.mrb[0].mxu0
        %4960 = vmatprep.mubr.bf16.mxu0 0
        %4961 = vmatmul.mubr.bf16.gmra.mrb[0].mxu0 %v4821
        %v4962 = vpop.f32.mrb[0].mxu0
        %v4963 = vadd.f32 0.0, %v4962
        %v4964 = vpop.f32.mrb[0].mxu0
        %v4965 = vpop.f32.mrb[0].mxu0
        %v4966 = vadd.f32 0.0, %v4965
        %v4967 = vpop.f32.mrb[0].mxu0
        %4968 = vmatprep.mubr.bf16.mxu0 0
        %4969 = vmatmul.mubr.bf16.gmra.mrb[0].mxu0 %v4824
        %v4970 = vpop.f32.mrb[0].mxu0
        %v4971 = vadd.f32 0.0, %v4970
        %v4972 = vpop.f32.mrb[0].mxu0
        %v4973 = vpop.f32.mrb[0].mxu0
        %v4974 = vadd.f32 0.0, %v4973
        %v4975 = vpop.f32.mrb[0].mxu0
        %4976 = vmatprep.mubr.bf16.mxu0 0
        %4977 = vmatmul.mubr.bf16.gmra.mrb[0].mxu0 %v4827
        %v4978 = vpop.f32.mrb[0].mxu0
        %v4979 = vadd.f32 0.0, %v4978
        %v4980 = vpop.f32.mrb[0].mxu0
        %v4981 = vpop.f32.mrb[0].mxu0
        %v4982 = vadd.f32 0.0, %v4981
        %v4983 = vpop.f32.mrb[0].mxu0
        %4984 = vmatprep.mubr.bf16.mxu0 0
        %4985 = vmatmul.mubr.bf16.gmra.mrb[0].mxu0 %v4830
        %v4986 = vpop.f32.mrb[0].mxu0
        %v4987 = vadd.f32 0.0, %v4986
        %v4988 = vpop.f32.mrb[0].mxu0
        %v4989 = vpop.f32.mrb[0].mxu0
        %v4990 = vadd.f32 0.0, %v4989
        %v4991 = vpop.f32.mrb[0].mxu0
        %4992 = vdwg.mxu0
        %v4993 = vadd.f32 %v4694, %v4867
        %v4994 = vadd.f32 %v4695, %v4870
        %v4995 = vadd.f32 %v4696, %v4875
        %v4996 = vadd.f32 %v4697, %v4878
        %v4997 = vadd.f32 %v4698, %v4883
        %v4998 = vadd.f32 %v4699, %v4886
        %v4999 = vadd.f32 %v4700, %v4891
        %v5000 = vadd.f32 %v4701, %v4894
        %v5001 = vadd.f32 %v4702, %v4899
        %v5002 = vadd.f32 %v4703, %v4902
        %v5003 = vadd.f32 %v4704, %v4907
        %v5004 = vadd.f32 %v4705, %v4910
        %v5005 = vadd.f32 %v4706, %v4915
        %v5006 = vadd.f32 %v4707, %v4918
        %v5007 = vadd.f32 %v4708, %v4923
        %v5008 = vadd.f32 %v4709, %v4926
        %v5009 = vadd.f32 %v4710, %v4931
        %v5010 = vadd.f32 %v4711, %v4934
        %v5011 = vadd.f32 %v4712, %v4939
        %v5012 = vadd.f32 %v4713, %v4942
        %v5013 = vadd.f32 %v4714, %v4947
        %v5014 = vadd.f32 %v4715, %v4950
        %v5015 = vadd.f32 %v4716, %v4955
        %v5016 = vadd.f32 %v4717, %v4958
        %v5017 = vadd.f32 %v4718, %v4963
        %v5018 = vadd.f32 %v4719, %v4966
        %v5019 = vadd.f32 %v4720, %v4971
        %v5020 = vadd.f32 %v4721, %v4974
        %v5021 = vadd.f32 %v4722, %v4979
        %v5022 = vadd.f32 %v4723, %v4982
        %v5023 = vadd.f32 %v4724, %v4987
        %v5024 = vadd.f32 %v4725, %v4990
        %v5025 = vld [vmem:[%s4726 + $0x1] sm:$0xff]
        %v5026 = vld [vmem:[%s4726 + $0x9] sm:$0xff]
        %v5027 = vld [vmem:[%s4726 + $0x19] sm:$0xff]
        %v5028 = vld [vmem:[%s4726 + $0x21] sm:$0xff]
        %v5029 = vld [vmem:[%s4726 + $0x31] sm:$0xff]
        %v5030 = vld [vmem:[%s4726 + $0x39] sm:$0xff]
        %v5031 = vld [vmem:[%s4726 + $0x49] sm:$0xff]
        %v5032 = vld [vmem:[%s4726 + $0x51] sm:$0xff]
        %v5033 = vld [vmem:[%s4726 + $0x61] sm:$0xff]
        %v5034 = vld [vmem:[%s4726 + $0x69] sm:$0xff]
        %v5035 = vld [vmem:[%s4726 + $0x79] sm:$0xff]
        %v5036 = vld [vmem:[%s4726 + $0x81] sm:$0xff]
        %v5037 = vld [vmem:[%s4726 + $0x91] sm:$0xff]
        %v5038 = vld [vmem:[%s4726 + $0x99] sm:$0xff]
        %v5039 = vld [vmem:[%s4726 + $0xa9] sm:$0xff]
        %v5040 = vld [vmem:[%s4726 + $0xb1] sm:$0xff]
        %v5041 = vld [vmem:[%s4726 + $0xc1] sm:$0xff]
        %v5042 = vld [vmem:[%s4726 + $0xc9] sm:$0xff]
        %v5043 = vld [vmem:[%s4726 + $0xd9] sm:$0xff]
        %v5044 = vld [vmem:[%s4726 + $0xe1] sm:$0xff]
        %v5045 = vld [vmem:[%s4726 + $0xf1] sm:$0xff]
        %v5046 = vld [vmem:[%s4726 + $0xf9] sm:$0xff]
        %v5047 = vld [vmem:[%s4726 + $0x109] sm:$0xff]
        %v5048 = vld [vmem:[%s4726 + $0x111] sm:$0xff]
        %v5049 = vld [vmem:[%s4726 + $0x121] sm:$0xff]
        %v5050 = vld [vmem:[%s4726 + $0x129] sm:$0xff]
        %v5051 = vld [vmem:[%s4726 + $0x139] sm:$0xff]
        %v5052 = vld [vmem:[%s4726 + $0x141] sm:$0xff]
        %v5053 = vld [vmem:[%s4726 + $0x151] sm:$0xff]
        %v5054 = vld [vmem:[%s4726 + $0x159] sm:$0xff]
        %v5055 = vld [vmem:[%s4726 + $0x169] sm:$0xff]
        %v5056 = vld [vmem:[%s4726 + $0x171] sm:$0xff]
        %v5057 = vpack.c.bf16 %v5026, %v5025
        %v5058 = vpack.c.bf16 %v5028, %v5027
        %v5059 = vpack.c.bf16 %v5030, %v5029
        %v5060 = vpack.c.bf16 %v5032, %v5031
        %v5061 = vpack.c.bf16 %v5034, %v5033
        %v5062 = vpack.c.bf16 %v5036, %v5035
        %v5063 = vpack.c.bf16 %v5038, %v5037
        %v5064 = vpack.c.bf16 %v5040, %v5039
        %v5065 = vpack.c.bf16 %v5042, %v5041
        %v5066 = vpack.c.bf16 %v5044, %v5043
        %v5067 = vpack.c.bf16 %v5046, %v5045
        %v5068 = vpack.c.bf16 %v5048, %v5047
        %v5069 = vpack.c.bf16 %v5050, %v5049
        %v5070 = vpack.c.bf16 %v5052, %v5051
        %v5071 = vpack.c.bf16 %v5054, %v5053
        %v5072 = vpack.c.bf16 %v5056, %v5055
        %s5073 = scalar_lea.vmem %s3, 56
        %v5074 = vld [vmem:[%s5073] sm:$0xf]
        %v5075 = vld [vmem:[%s5073 + $0x4] sm:$0xf]
        %v5078 = vunpack.c.l.b16 %v5074
        %v5079 = vunpack.c.l.b16 %v5075
        %v5080 = vpack.c.b16 %v5079, %v5078
        %v5083 = vsel %vm2914, %v5057, 0
        %v5086 = vsel %vm2914, %v5058, 0
        %v5089 = vsel %vm2914, %v5059, 0
        %v5092 = vsel %vm2914, %v5060, 0
        %v5095 = vsel %vm2914, %v5061, 0
        %v5098 = vsel %vm2914, %v5062, 0
        %v5101 = vsel %vm2914, %v5063, 0
        %v5104 = vsel %vm2914, %v5064, 0
        %v5107 = vsel %vm2914, %v5065, 0
        %v5110 = vsel %vm2914, %v5066, 0
        %v5113 = vsel %vm2914, %v5067, 0
        %v5116 = vsel %vm2914, %v5068, 0
        %v5119 = vsel %vm2914, %v5069, 0
        %v5122 = vsel %vm2914, %v5070, 0
        %v5125 = vsel %vm2914, %v5071, 0
        %v5128 = vsel %vm2914, %v5072, 0
        %5130 = vmatprep.subr.bf16.mxu0 0
        %5131 = vmatpush1.bf16.msra.mxu0 %v5080
        %5132 = vmatprep.subr.bf16.mxu0 0
        %5133 = vmatpush1.bf16.msra.mxu0 0
        %5134 = vmatprep.subr.bf16.mxu0 0
        %5135 = vmatpush1.bf16.msra.mxu0 0
        %5136 = vmatprep.subr.bf16.mxu0 0
        %5137 = vmatpush1.bf16.msra.mxu0 0
        %5138 = vmatprep.subr.bf16.mxu0 0
        %5139 = vmatpush1.bf16.msra.mxu0 0
        %5140 = vmatprep.subr.bf16.mxu0 0
        %5141 = vmatpush1.bf16.msra.mxu0 0
        %5142 = vmatprep.subr.bf16.mxu0 0
        %5143 = vmatpush1.bf16.msra.mxu0 0
        %5144 = vmatprep.subr.bf16.mxu0 0
        %5145 = vmatpush1.bf16.msra.mxu0 0
        %5146 = vmatprep.subr.bf16.mxu0 0
        %5147 = vmatpush1.bf16.msra.mxu0 0
        %5148 = vmatprep.subr.bf16.mxu0 0
        %5149 = vmatpush1.bf16.msra.mxu0 0
        %5150 = vmatprep.subr.bf16.mxu0 0
        %5151 = vmatpush1.bf16.msra.mxu0 0
        %5152 = vmatprep.subr.bf16.mxu0 0
        %5153 = vmatpush1.bf16.msra.mxu0 0
        %5154 = vmatprep.subr.bf16.mxu0 0
        %5155 = vmatpush1.bf16.msra.mxu0 0
        %5156 = vmatprep.subr.bf16.mxu0 0
        %5157 = vmatpush1.bf16.msra.mxu0 0
        %5158 = vmatprep.subr.bf16.mxu0 0
        %5159 = vmatpush1.bf16.msra.mxu0 0
        %5160 = vmatprep.subr.bf16.mxu0 0
        %5161 = vmatpush1.bf16.msra.mxu0 0
        %5162 = vmatprep.mubr.bf16.mxu0 0
        %5163 = vmatmul.mubr.bf16.gmra.mrb[0].mxu0 %v5083
        %v5164 = vpop.f32.mrb[0].mxu0
        %v5165 = vadd.f32 0.0, %v5164
        %v5166 = vpop.f32.mrb[0].mxu0
        %v5167 = vpop.f32.mrb[0].mxu0
        %v5168 = vadd.f32 0.0, %v5167
        %v5169 = vpop.f32.mrb[0].mxu0
        %5170 = vmatprep.mubr.bf16.mxu0 0
        %5171 = vmatmul.mubr.bf16.gmra.mrb[0].mxu0 %v5086
        %v5172 = vpop.f32.mrb[0].mxu0
        %v5173 = vadd.f32 0.0, %v5172
        %v5174 = vpop.f32.mrb[0].mxu0
        %v5175 = vpop.f32.mrb[0].mxu0
        %v5176 = vadd.f32 0.0, %v5175
        %v5177 = vpop.f32.mrb[0].mxu0
        %5178 = vmatprep.mubr.bf16.mxu0 0
        %5179 = vmatmul.mubr.bf16.gmra.mrb[0].mxu0 %v5089
        %v5180 = vpop.f32.mrb[0].mxu0
        %v5181 = vadd.f32 0.0, %v5180
        %v5182 = vpop.f32.mrb[0].mxu0
        %v5183 = vpop.f32.mrb[0].mxu0
        %v5184 = vadd.f32 0.0, %v5183
        %v5185 = vpop.f32.mrb[0].mxu0
        %5186 = vmatprep.mubr.bf16.mxu0 0
        %5187 = vmatmul.mubr.bf16.gmra.mrb[0].mxu0 %v5092
        %v5188 = vpop.f32.mrb[0].mxu0
        %v5189 = vadd.f32 0.0, %v5188
        %v5190 = vpop.f32.mrb[0].mxu0
        %v5191 = vpop.f32.mrb[0].mxu0
        %v5192 = vadd.f32 0.0, %v5191
        %v5193 = vpop.f32.mrb[0].mxu0
        %5194 = vmatprep.mubr.bf16.mxu0 0
        %5195 = vmatmul.mubr.bf16.gmra.mrb[0].mxu0 %v5095
        %v5196 = vpop.f32.mrb[0].mxu0
        %v5197 = vadd.f32 0.0, %v5196
        %v5198 = vpop.f32.mrb[0].mxu0
        %v5199 = vpop.f32.mrb[0].mxu0
        %v5200 = vadd.f32 0.0, %v5199
        %v5201 = vpop.f32.mrb[0].mxu0
        %5202 = vmatprep.mubr.bf16.mxu0 0
        %5203 = vmatmul.mubr.bf16.gmra.mrb[0].mxu0 %v5098
        %v5204 = vpop.f32.mrb[0].mxu0
        %v5205 = vadd.f32 0.0, %v5204
        %v5206 = vpop.f32.mrb[0].mxu0
        %v5207 = vpop.f32.mrb[0].mxu0
        %v5208 = vadd.f32 0.0, %v5207
        %v5209 = vpop.f32.mrb[0].mxu0
        %5210 = vmatprep.mubr.bf16.mxu0 0
        %5211 = vmatmul.mubr.bf16.gmra.mrb[0].mxu0 %v5101
        %v5212 = vpop.f32.mrb[0].mxu0
        %v5213 = vadd.f32 0.0, %v5212
        %v5214 = vpop.f32.mrb[0].mxu0
        %v5215 = vpop.f32.mrb[0].mxu0
        %v5216 = vadd.f32 0.0, %v5215
        %v5217 = vpop.f32.mrb[0].mxu0
        %5218 = vmatprep.mubr.bf16.mxu0 0
        %5219 = vmatmul.mubr.bf16.gmra.mrb[0].mxu0 %v5104
        %v5220 = vpop.f32.mrb[0].mxu0
        %v5221 = vadd.f32 0.0, %v5220
        %v5222 = vpop.f32.mrb[0].mxu0
        %v5223 = vpop.f32.mrb[0].mxu0
        %v5224 = vadd.f32 0.0, %v5223
        %v5225 = vpop.f32.mrb[0].mxu0
        %5226 = vmatprep.mubr.bf16.mxu0 0
        %5227 = vmatmul.mubr.bf16.gmra.mrb[0].mxu0 %v5107
        %v5228 = vpop.f32.mrb[0].mxu0
        %v5229 = vadd.f32 0.0, %v5228
        %v5230 = vpop.f32.mrb[0].mxu0
        %v5231 = vpop.f32.mrb[0].mxu0
        %v5232 = vadd.f32 0.0, %v5231
        %v5233 = vpop.f32.mrb[0].mxu0
        %5234 = vmatprep.mubr.bf16.mxu0 0
        %5235 = vmatmul.mubr.bf16.gmra.mrb[0].mxu0 %v5110
        %v5236 = vpop.f32.mrb[0].mxu0
        %v5237 = vadd.f32 0.0, %v5236
        %v5238 = vpop.f32.mrb[0].mxu0
        %v5239 = vpop.f32.mrb[0].mxu0
        %v5240 = vadd.f32 0.0, %v5239
        %v5241 = vpop.f32.mrb[0].mxu0
        %5242 = vmatprep.mubr.bf16.mxu0 0
        %5243 = vmatmul.mubr.bf16.gmra.mrb[0].mxu0 %v5113
        %v5244 = vpop.f32.mrb[0].mxu0
        %v5245 = vadd.f32 0.0, %v5244
        %v5246 = vpop.f32.mrb[0].mxu0
        %v5247 = vpop.f32.mrb[0].mxu0
        %v5248 = vadd.f32 0.0, %v5247
        %v5249 = vpop.f32.mrb[0].mxu0
        %5250 = vmatprep.mubr.bf16.mxu0 0
        %5251 = vmatmul.mubr.bf16.gmra.mrb[0].mxu0 %v5116
        %v5252 = vpop.f32.mrb[0].mxu0
        %v5253 = vadd.f32 0.0, %v5252
        %v5254 = vpop.f32.mrb[0].mxu0
        %v5255 = vpop.f32.mrb[0].mxu0
        %v5256 = vadd.f32 0.0, %v5255
        %v5257 = vpop.f32.mrb[0].mxu0
        %5258 = vmatprep.mubr.bf16.mxu0 0
        %5259 = vmatmul.mubr.bf16.gmra.mrb[0].mxu0 %v5119
        %v5260 = vpop.f32.mrb[0].mxu0
        %v5261 = vadd.f32 0.0, %v5260
        %v5262 = vpop.f32.mrb[0].mxu0
        %v5263 = vpop.f32.mrb[0].mxu0
        %v5264 = vadd.f32 0.0, %v5263
        %v5265 = vpop.f32.mrb[0].mxu0
        %5266 = vmatprep.mubr.bf16.mxu0 0
        %5267 = vmatmul.mubr.bf16.gmra.mrb[0].mxu0 %v5122
        %v5268 = vpop.f32.mrb[0].mxu0
        %v5269 = vadd.f32 0.0, %v5268
        %v5270 = vpop.f32.mrb[0].mxu0
        %v5271 = vpop.f32.mrb[0].mxu0
        %v5272 = vadd.f32 0.0, %v5271
        %v5273 = vpop.f32.mrb[0].mxu0
        %5274 = vmatprep.mubr.bf16.mxu0 0
        %5275 = vmatmul.mubr.bf16.gmra.mrb[0].mxu0 %v5125
        %v5276 = vpop.f32.mrb[0].mxu0
        %v5277 = vadd.f32 0.0, %v5276
        %v5278 = vpop.f32.mrb[0].mxu0
        %v5279 = vpop.f32.mrb[0].mxu0
        %v5280 = vadd.f32 0.0, %v5279
        %v5281 = vpop.f32.mrb[0].mxu0
        %5282 = vmatprep.mubr.bf16.mxu0 0
        %5283 = vmatmul.mubr.bf16.gmra.mrb[0].mxu0 %v5128
        %v5284 = vpop.f32.mrb[0].mxu0
        %v5285 = vadd.f32 0.0, %v5284
        %v5286 = vpop.f32.mrb[0].mxu0
        %v5287 = vpop.f32.mrb[0].mxu0
        %v5288 = vadd.f32 0.0, %v5287
        %v5289 = vpop.f32.mrb[0].mxu0
        %5290 = vdwg.mxu0
        %v5291 = vadd.f32 %v4993, %v5165
        %v5292 = vadd.f32 %v4994, %v5168
        %v5293 = vadd.f32 %v4995, %v5173
        %v5294 = vadd.f32 %v4996, %v5176
        %v5295 = vadd.f32 %v4997, %v5181
        %v5296 = vadd.f32 %v4998, %v5184
        %v5297 = vadd.f32 %v4999, %v5189
        %v5298 = vadd.f32 %v5000, %v5192
        %v5299 = vadd.f32 %v5001, %v5197
        %v5300 = vadd.f32 %v5002, %v5200
        %v5301 = vadd.f32 %v5003, %v5205
        %v5302 = vadd.f32 %v5004, %v5208
        %v5303 = vadd.f32 %v5005, %v5213
        %v5304 = vadd.f32 %v5006, %v5216
        %v5305 = vadd.f32 %v5007, %v5221
        %v5306 = vadd.f32 %v5008, %v5224
        %v5307 = vadd.f32 %v5009, %v5229
        %v5308 = vadd.f32 %v5010, %v5232
        %v5309 = vadd.f32 %v5011, %v5237
        %v5310 = vadd.f32 %v5012, %v5240
        %v5311 = vadd.f32 %v5013, %v5245
        %v5312 = vadd.f32 %v5014, %v5248
        %v5313 = vadd.f32 %v5015, %v5253
        %v5314 = vadd.f32 %v5016, %v5256
        %v5315 = vadd.f32 %v5017, %v5261
        %v5316 = vadd.f32 %v5018, %v5264
        %v5317 = vadd.f32 %v5019, %v5269
        %v5318 = vadd.f32 %v5020, %v5272
        %v5319 = vadd.f32 %v5021, %v5277
        %v5320 = vadd.f32 %v5022, %v5280
        %v5321 = vadd.f32 %v5023, %v5285
        %v5322 = vadd.f32 %v5024, %v5288
        %v5323 = vld [vmem:[%s4726 + $0x2] sm:$0xff]
        %v5324 = vld [vmem:[%s4726 + $0xa] sm:$0xff]
        %v5325 = vld [vmem:[%s4726 + $0x1a] sm:$0xff]
        %v5326 = vld [vmem:[%s4726 + $0x22] sm:$0xff]
        %v5327 = vld [vmem:[%s4726 + $0x32] sm:$0xff]
        %v5328 = vld [vmem:[%s4726 + $0x3a] sm:$0xff]
        %v5329 = vld [vmem:[%s4726 + $0x4a] sm:$0xff]
        %v5330 = vld [vmem:[%s4726 + $0x52] sm:$0xff]
        %v5331 = vld [vmem:[%s4726 + $0x62] sm:$0xff]
        %v5332 = vld [vmem:[%s4726 + $0x6a] sm:$0xff]
        %v5333 = vld [vmem:[%s4726 + $0x7a] sm:$0xff]
        %v5334 = vld [vmem:[%s4726 + $0x82] sm:$0xff]
        %v5335 = vld [vmem:[%s4726 + $0x92] sm:$0xff]
        %v5336 = vld [vmem:[%s4726 + $0x9a] sm:$0xff]
        %v5337 = vld [vmem:[%s4726 + $0xaa] sm:$0xff]
        %v5338 = vld [vmem:[%s4726 + $0xb2] sm:$0xff]
        %v5339 = vld [vmem:[%s4726 + $0xc2] sm:$0xff]
        %v5340 = vld [vmem:[%s4726 + $0xca] sm:$0xff]
        %v5341 = vld [vmem:[%s4726 + $0xda] sm:$0xff]
        %v5342 = vld [vmem:[%s4726 + $0xe2] sm:$0xff]
        %v5343 = vld [vmem:[%s4726 + $0xf2] sm:$0xff]
        %v5344 = vld [vmem:[%s4726 + $0xfa] sm:$0xff]
        %v5345 = vld [vmem:[%s4726 + $0x10a] sm:$0xff]
        %v5346 = vld [vmem:[%s4726 + $0x112] sm:$0xff]
        %v5347 = vld [vmem:[%s4726 + $0x122] sm:$0xff]
        %v5348 = vld [vmem:[%s4726 + $0x12a] sm:$0xff]
        %v5349 = vld [vmem:[%s4726 + $0x13a] sm:$0xff]
        %v5350 = vld [vmem:[%s4726 + $0x142] sm:$0xff]
        %v5351 = vld [vmem:[%s4726 + $0x152] sm:$0xff]
        %v5352 = vld [vmem:[%s4726 + $0x15a] sm:$0xff]
        %v5353 = vld [vmem:[%s4726 + $0x16a] sm:$0xff]
        %v5354 = vld [vmem:[%s4726 + $0x172] sm:$0xff]
        %v5355 = vpack.c.bf16 %v5324, %v5323
        %v5356 = vpack.c.bf16 %v5326, %v5325
        %v5357 = vpack.c.bf16 %v5328, %v5327
        %v5358 = vpack.c.bf16 %v5330, %v5329
        %v5359 = vpack.c.bf16 %v5332, %v5331
        %v5360 = vpack.c.bf16 %v5334, %v5333
        %v5361 = vpack.c.bf16 %v5336, %v5335
        %v5362 = vpack.c.bf16 %v5338, %v5337
        %v5363 = vpack.c.bf16 %v5340, %v5339
        %v5364 = vpack.c.bf16 %v5342, %v5341
        %v5365 = vpack.c.bf16 %v5344, %v5343
        %v5366 = vpack.c.bf16 %v5346, %v5345
        %v5367 = vpack.c.bf16 %v5348, %v5347
        %v5368 = vpack.c.bf16 %v5350, %v5349
        %v5369 = vpack.c.bf16 %v5352, %v5351
        %v5370 = vpack.c.bf16 %v5354, %v5353
        %s5371 = scalar_lea.vmem %s3, 64
        %v5372 = vld [vmem:[%s5371] sm:$0xf]
        %v5373 = vld [vmem:[%s5371 + $0x4] sm:$0xf]
        %v5376 = vunpack.c.l.b16 %v5372
        %v5377 = vunpack.c.l.b16 %v5373
        %v5378 = vpack.c.b16 %v5377, %v5376
        %v5381 = vsel %vm2914, %v5355, 0
        %v5384 = vsel %vm2914, %v5356, 0
        %v5387 = vsel %vm2914, %v5357, 0
        %v5390 = vsel %vm2914, %v5358, 0
        %v5393 = vsel %vm2914, %v5359, 0
        %v5396 = vsel %vm2914, %v5360, 0
        %v5399 = vsel %vm2914, %v5361, 0
        %v5402 = vsel %vm2914, %v5362, 0
        %v5405 = vsel %vm2914, %v5363, 0
        %v5408 = vsel %vm2914, %v5364, 0
        %v5411 = vsel %vm2914, %v5365, 0
        %v5414 = vsel %vm2914, %v5366, 0
        %v5417 = vsel %vm2914, %v5367, 0
        %v5420 = vsel %vm2914, %v5368, 0
        %v5423 = vsel %vm2914, %v5369, 0
        %v5426 = vsel %vm2914, %v5370, 0
        %5428 = vmatprep.subr.bf16.mxu0 0
        %5429 = vmatpush1.bf16.msra.mxu0 %v5378
        %5430 = vmatprep.subr.bf16.mxu0 0
        %5431 = vmatpush1.bf16.msra.mxu0 0
        %5432 = vmatprep.subr.bf16.mxu0 0
        %5433 = vmatpush1.bf16.msra.mxu0 0
        %5434 = vmatprep.subr.bf16.mxu0 0
        %5435 = vmatpush1.bf16.msra.mxu0 0
        %5436 = vmatprep.subr.bf16.mxu0 0
        %5437 = vmatpush1.bf16.msra.mxu0 0
        %5438 = vmatprep.subr.bf16.mxu0 0
        %5439 = vmatpush1.bf16.msra.mxu0 0
        %5440 = vmatprep.subr.bf16.mxu0 0
        %5441 = vmatpush1.bf16.msra.mxu0 0
        %5442 = vmatprep.subr.bf16.mxu0 0
        %5443 = vmatpush1.bf16.msra.mxu0 0
        %5444 = vmatprep.subr.bf16.mxu0 0
        %5445 = vmatpush1.bf16.msra.mxu0 0
        %5446 = vmatprep.subr.bf16.mxu0 0
        %5447 = vmatpush1.bf16.msra.mxu0 0
        %5448 = vmatprep.subr.bf16.mxu0 0
        %5449 = vmatpush1.bf16.msra.mxu0 0
        %5450 = vmatprep.subr.bf16.mxu0 0
        %5451 = vmatpush1.bf16.msra.mxu0 0
        %5452 = vmatprep.subr.bf16.mxu0 0
        %5453 = vmatpush1.bf16.msra.mxu0 0
        %5454 = vmatprep.subr.bf16.mxu0 0
        %5455 = vmatpush1.bf16.msra.mxu0 0
        %5456 = vmatprep.subr.bf16.mxu0 0
        %5457 = vmatpush1.bf16.msra.mxu0 0
        %5458 = vmatprep.subr.bf16.mxu0 0
        %5459 = vmatpush1.bf16.msra.mxu0 0
        %5460 = vmatprep.mubr.bf16.mxu0 0
        %5461 = vmatmul.mubr.bf16.gmra.mrb[0].mxu0 %v5381
        %v5462 = vpop.f32.mrb[0].mxu0
        %v5463 = vadd.f32 0.0, %v5462
        %v5464 = vpop.f32.mrb[0].mxu0
        %v5465 = vpop.f32.mrb[0].mxu0
        %v5466 = vadd.f32 0.0, %v5465
        %v5467 = vpop.f32.mrb[0].mxu0
        %5468 = vmatprep.mubr.bf16.mxu0 0
        %5469 = vmatmul.mubr.bf16.gmra.mrb[0].mxu0 %v5384
        %v5470 = vpop.f32.mrb[0].mxu0
        %v5471 = vadd.f32 0.0, %v5470
        %v5472 = vpop.f32.mrb[0].mxu0
        %v5473 = vpop.f32.mrb[0].mxu0
        %v5474 = vadd.f32 0.0, %v5473
        %v5475 = vpop.f32.mrb[0].mxu0
        %5476 = vmatprep.mubr.bf16.mxu0 0
        %5477 = vmatmul.mubr.bf16.gmra.mrb[0].mxu0 %v5387
        %v5478 = vpop.f32.mrb[0].mxu0
        %v5479 = vadd.f32 0.0, %v5478
        %v5480 = vpop.f32.mrb[0].mxu0
        %v5481 = vpop.f32.mrb[0].mxu0
        %v5482 = vadd.f32 0.0, %v5481
        %v5483 = vpop.f32.mrb[0].mxu0
        %5484 = vmatprep.mubr.bf16.mxu0 0
        %5485 = vmatmul.mubr.bf16.gmra.mrb[0].mxu0 %v5390
        %v5486 = vpop.f32.mrb[0].mxu0
        %v5487 = vadd.f32 0.0, %v5486
        %v5488 = vpop.f32.mrb[0].mxu0
        %v5489 = vpop.f32.mrb[0].mxu0
        %v5490 = vadd.f32 0.0, %v5489
        %v5491 = vpop.f32.mrb[0].mxu0
        %5492 = vmatprep.mubr.bf16.mxu0 0
        %5493 = vmatmul.mubr.bf16.gmra.mrb[0].mxu0 %v5393
        %v5494 = vpop.f32.mrb[0].mxu0
        %v5495 = vadd.f32 0.0, %v5494
        %v5496 = vpop.f32.mrb[0].mxu0
        %v5497 = vpop.f32.mrb[0].mxu0
        %v5498 = vadd.f32 0.0, %v5497
        %v5499 = vpop.f32.mrb[0].mxu0
        %5500 = vmatprep.mubr.bf16.mxu0 0
        %5501 = vmatmul.mubr.bf16.gmra.mrb[0].mxu0 %v5396
        %v5502 = vpop.f32.mrb[0].mxu0
        %v5503 = vadd.f32 0.0, %v5502
        %v5504 = vpop.f32.mrb[0].mxu0
        %v5505 = vpop.f32.mrb[0].mxu0
        %v5506 = vadd.f32 0.0, %v5505
        %v5507 = vpop.f32.mrb[0].mxu0
        %5508 = vmatprep.mubr.bf16.mxu0 0
        %5509 = vmatmul.mubr.bf16.gmra.mrb[0].mxu0 %v5399
        %v5510 = vpop.f32.mrb[0].mxu0
        %v5511 = vadd.f32 0.0, %v5510
        %v5512 = vpop.f32.mrb[0].mxu0
        %v5513 = vpop.f32.mrb[0].mxu0
        %v5514 = vadd.f32 0.0, %v5513
        %v5515 = vpop.f32.mrb[0].mxu0
        %5516 = vmatprep.mubr.bf16.mxu0 0
        %5517 = vmatmul.mubr.bf16.gmra.mrb[0].mxu0 %v5402
        %v5518 = vpop.f32.mrb[0].mxu0
        %v5519 = vadd.f32 0.0, %v5518
        %v5520 = vpop.f32.mrb[0].mxu0
        %v5521 = vpop.f32.mrb[0].mxu0
        %v5522 = vadd.f32 0.0, %v5521
        %v5523 = vpop.f32.mrb[0].mxu0
        %5524 = vmatprep.mubr.bf16.mxu0 0
        %5525 = vmatmul.mubr.bf16.gmra.mrb[0].mxu0 %v5405
        %v5526 = vpop.f32.mrb[0].mxu0
        %v5527 = vadd.f32 0.0, %v5526
        %v5528 = vpop.f32.mrb[0].mxu0
        %v5529 = vpop.f32.mrb[0].mxu0
        %v5530 = vadd.f32 0.0, %v5529
        %v5531 = vpop.f32.mrb[0].mxu0
        %5532 = vmatprep.mubr.bf16.mxu0 0
        %5533 = vmatmul.mubr.bf16.gmra.mrb[0].mxu0 %v5408
        %v5534 = vpop.f32.mrb[0].mxu0
        %v5535 = vadd.f32 0.0, %v5534
        %v5536 = vpop.f32.mrb[0].mxu0
        %v5537 = vpop.f32.mrb[0].mxu0
        %v5538 = vadd.f32 0.0, %v5537
        %v5539 = vpop.f32.mrb[0].mxu0
        %5540 = vmatprep.mubr.bf16.mxu0 0
        %5541 = vmatmul.mubr.bf16.gmra.mrb[0].mxu0 %v5411
        %v5542 = vpop.f32.mrb[0].mxu0
        %v5543 = vadd.f32 0.0, %v5542
        %v5544 = vpop.f32.mrb[0].mxu0
        %v5545 = vpop.f32.mrb[0].mxu0
        %v5546 = vadd.f32 0.0, %v5545
        %v5547 = vpop.f32.mrb[0].mxu0
        %5548 = vmatprep.mubr.bf16.mxu0 0
        %5549 = vmatmul.mubr.bf16.gmra.mrb[0].mxu0 %v5414
        %v5550 = vpop.f32.mrb[0].mxu0
        %v5551 = vadd.f32 0.0, %v5550
        %v5552 = vpop.f32.mrb[0].mxu0
        %v5553 = vpop.f32.mrb[0].mxu0
        %v5554 = vadd.f32 0.0, %v5553
        %v5555 = vpop.f32.mrb[0].mxu0
        %5556 = vmatprep.mubr.bf16.mxu0 0
        %5557 = vmatmul.mubr.bf16.gmra.mrb[0].mxu0 %v5417
        %v5558 = vpop.f32.mrb[0].mxu0
        %v5559 = vadd.f32 0.0, %v5558
        %v5560 = vpop.f32.mrb[0].mxu0
        %v5561 = vpop.f32.mrb[0].mxu0
        %v5562 = vadd.f32 0.0, %v5561
        %v5563 = vpop.f32.mrb[0].mxu0
        %5564 = vmatprep.mubr.bf16.mxu0 0
        %5565 = vmatmul.mubr.bf16.gmra.mrb[0].mxu0 %v5420
        %v5566 = vpop.f32.mrb[0].mxu0
        %v5567 = vadd.f32 0.0, %v5566
        %v5568 = vpop.f32.mrb[0].mxu0
        %v5569 = vpop.f32.mrb[0].mxu0
        %v5570 = vadd.f32 0.0, %v5569
        %v5571 = vpop.f32.mrb[0].mxu0
        %5572 = vmatprep.mubr.bf16.mxu0 0
        %5573 = vmatmul.mubr.bf16.gmra.mrb[0].mxu0 %v5423
        %v5574 = vpop.f32.mrb[0].mxu0
        %v5575 = vadd.f32 0.0, %v5574
        %v5576 = vpop.f32.mrb[0].mxu0
        %v5577 = vpop.f32.mrb[0].mxu0
        %v5578 = vadd.f32 0.0, %v5577
        %v5579 = vpop.f32.mrb[0].mxu0
        %5580 = vmatprep.mubr.bf16.mxu0 0
        %5581 = vmatmul.mubr.bf16.gmra.mrb[0].mxu0 %v5426
        %v5582 = vpop.f32.mrb[0].mxu0
        %v5583 = vadd.f32 0.0, %v5582
        %v5584 = vpop.f32.mrb[0].mxu0
        %v5585 = vpop.f32.mrb[0].mxu0
        %v5586 = vadd.f32 0.0, %v5585
        %v5587 = vpop.f32.mrb[0].mxu0
        %5588 = vdwg.mxu0
        %v5589 = vadd.f32 %v5291, %v5463
        %v5590 = vadd.f32 %v5292, %v5466
        %v5591 = vadd.f32 %v5293, %v5471
        %v5592 = vadd.f32 %v5294, %v5474
        %v5593 = vadd.f32 %v5295, %v5479
        %v5594 = vadd.f32 %v5296, %v5482
        %v5595 = vadd.f32 %v5297, %v5487
        %v5596 = vadd.f32 %v5298, %v5490
        %v5597 = vadd.f32 %v5299, %v5495
        %v5598 = vadd.f32 %v5300, %v5498
        %v5599 = vadd.f32 %v5301, %v5503
        %v5600 = vadd.f32 %v5302, %v5506
        %v5601 = vadd.f32 %v5303, %v5511
        %v5602 = vadd.f32 %v5304, %v5514
        %v5603 = vadd.f32 %v5305, %v5519
        %v5604 = vadd.f32 %v5306, %v5522
        %v5605 = vadd.f32 %v5307, %v5527
        %v5606 = vadd.f32 %v5308, %v5530
        %v5607 = vadd.f32 %v5309, %v5535
        %v5608 = vadd.f32 %v5310, %v5538
        %v5609 = vadd.f32 %v5311, %v5543
        %v5610 = vadd.f32 %v5312, %v5546
        %v5611 = vadd.f32 %v5313, %v5551
        %v5612 = vadd.f32 %v5314, %v5554
        %v5613 = vadd.f32 %v5315, %v5559
        %v5614 = vadd.f32 %v5316, %v5562
        %v5615 = vadd.f32 %v5317, %v5567
        %v5616 = vadd.f32 %v5318, %v5570
        %v5617 = vadd.f32 %v5319, %v5575
        %v5618 = vadd.f32 %v5320, %v5578
        %v5619 = vadd.f32 %v5321, %v5583
        %v5620 = vadd.f32 %v5322, %v5586
        %v5621 = vld [vmem:[%s4] sm:$0x1]
        %v5623 = vlaneseq
        %v5624 = vshrl.u32 %v5623, 7
        %v5625 = vsub.s32 0, %v5624
        %v5626 = vrot.slane %v5621, %v5625
        %v5628 = vadd.f32 %v5589, %v5626
        %v5629 = vadd.f32 %v5590, %v5626
        %v5630 = vadd.f32 %v5591, %v5626
        %v5631 = vadd.f32 %v5592, %v5626
        %v5632 = vadd.f32 %v5593, %v5626
        %v5633 = vadd.f32 %v5594, %v5626
        %v5634 = vadd.f32 %v5595, %v5626
        %v5635 = vadd.f32 %v5596, %v5626
        %v5636 = vadd.f32 %v5597, %v5626
        %v5637 = vadd.f32 %v5598, %v5626
        %v5638 = vadd.f32 %v5599, %v5626
        %v5639 = vadd.f32 %v5600, %v5626
        %v5640 = vadd.f32 %v5601, %v5626
        %v5641 = vadd.f32 %v5602, %v5626
        %v5642 = vadd.f32 %v5603, %v5626
        %v5643 = vadd.f32 %v5604, %v5626
        %v5644 = vadd.f32 %v5605, %v5626
        %v5645 = vadd.f32 %v5606, %v5626
        %v5646 = vadd.f32 %v5607, %v5626
        %v5647 = vadd.f32 %v5608, %v5626
        %v5648 = vadd.f32 %v5609, %v5626
        %v5649 = vadd.f32 %v5610, %v5626
        %v5650 = vadd.f32 %v5611, %v5626
        %v5651 = vadd.f32 %v5612, %v5626
        %v5652 = vadd.f32 %v5613, %v5626
        %v5653 = vadd.f32 %v5614, %v5626
        %v5654 = vadd.f32 %v5615, %v5626
        %v5655 = vadd.f32 %v5616, %v5626
        %v5656 = vadd.f32 %v5617, %v5626
        %v5657 = vadd.f32 %v5618, %v5626
        %v5658 = vadd.f32 %v5619, %v5626
        %v5659 = vadd.f32 %v5620, %v5626
        %v5660 = vmax.f32 %v5628, 0.0
        %v5661 = vmax.f32 %v5629, 0.0
        %v5662 = vmax.f32 %v5630, 0.0
        %v5663 = vmax.f32 %v5631, 0.0
        %v5664 = vmax.f32 %v5632, 0.0
        %v5665 = vmax.f32 %v5633, 0.0
        %v5666 = vmax.f32 %v5634, 0.0
        %v5667 = vmax.f32 %v5635, 0.0
        %v5668 = vmax.f32 %v5636, 0.0
        %v5669 = vmax.f32 %v5637, 0.0
        %v5670 = vmax.f32 %v5638, 0.0
        %v5671 = vmax.f32 %v5639, 0.0
        %v5672 = vmax.f32 %v5640, 0.0
        %v5673 = vmax.f32 %v5641, 0.0
        %v5674 = vmax.f32 %v5642, 0.0
        %v5675 = vmax.f32 %v5643, 0.0
        %v5676 = vmax.f32 %v5644, 0.0
        %v5677 = vmax.f32 %v5645, 0.0
        %v5678 = vmax.f32 %v5646, 0.0
        %v5679 = vmax.f32 %v5647, 0.0
        %v5680 = vmax.f32 %v5648, 0.0
        %v5681 = vmax.f32 %v5649, 0.0
        %v5682 = vmax.f32 %v5650, 0.0
        %v5683 = vmax.f32 %v5651, 0.0
        %v5684 = vmax.f32 %v5652, 0.0
        %v5685 = vmax.f32 %v5653, 0.0
        %v5686 = vmax.f32 %v5654, 0.0
        %v5687 = vmax.f32 %v5655, 0.0
        %v5688 = vmax.f32 %v5656, 0.0
        %v5689 = vmax.f32 %v5657, 0.0
        %v5690 = vmax.f32 %v5658, 0.0
        %v5691 = vmax.f32 %v5659, 0.0
        %vm5692 = vcmask 261120
        %v5693 = vsel %vm5692, %v5660, 0.0
        %v5694 = vsel %vm5692, %v5661, 0.0
        %v5695 = vadd.f32 %v5693, %v5694
        %v5696 = vsel %vm5692, %v5662, 0.0
        %v5697 = vadd.f32 %v5695, %v5696
        %v5698 = vsel %vm5692, %v5663, 0.0
        %v5699 = vadd.f32 %v5697, %v5698
        %v5700 = vsel %vm5692, %v5664, 0.0
        %v5701 = vadd.f32 %v5699, %v5700
        %v5702 = vsel %vm5692, %v5665, 0.0
        %v5703 = vadd.f32 %v5701, %v5702
        %v5704 = vsel %vm5692, %v5666, 0.0
        %v5705 = vadd.f32 %v5703, %v5704
        %v5706 = vsel %vm5692, %v5667, 0.0
        %v5707 = vadd.f32 %v5705, %v5706
        %v5708 = vsel %vm5692, %v5668, 0.0
        %v5709 = vadd.f32 %v5707, %v5708
        %v5710 = vsel %vm5692, %v5669, 0.0
        %v5711 = vadd.f32 %v5709, %v5710
        %v5712 = vsel %vm5692, %v5670, 0.0
        %v5713 = vadd.f32 %v5711, %v5712
        %v5714 = vsel %vm5692, %v5671, 0.0
        %v5715 = vadd.f32 %v5713, %v5714
        %v5716 = vsel %vm5692, %v5672, 0.0
        %v5717 = vadd.f32 %v5715, %v5716
        %v5718 = vsel %vm5692, %v5673, 0.0
        %v5719 = vadd.f32 %v5717, %v5718
        %v5720 = vsel %vm5692, %v5674, 0.0
        %v5721 = vadd.f32 %v5719, %v5720
        %v5722 = vsel %vm5692, %v5675, 0.0
        %v5723 = vadd.f32 %v5721, %v5722
        %v5724 = vsel %vm5692, %v5676, 0.0
        %v5725 = vadd.f32 %v5723, %v5724
        %v5726 = vsel %vm5692, %v5677, 0.0
        %v5727 = vadd.f32 %v5725, %v5726
        %v5728 = vsel %vm5692, %v5678, 0.0
        %v5729 = vadd.f32 %v5727, %v5728
        %v5730 = vsel %vm5692, %v5679, 0.0
        %v5731 = vadd.f32 %v5729, %v5730
        %v5732 = vsel %vm5692, %v5680, 0.0
        %v5733 = vadd.f32 %v5731, %v5732
        %v5734 = vsel %vm5692, %v5681, 0.0
        %v5735 = vadd.f32 %v5733, %v5734
        %v5736 = vsel %vm5692, %v5682, 0.0
        %v5737 = vadd.f32 %v5735, %v5736
        %v5738 = vsel %vm5692, %v5683, 0.0
        %v5739 = vadd.f32 %v5737, %v5738
        %v5740 = vsel %vm5692, %v5684, 0.0
        %v5741 = vadd.f32 %v5739, %v5740
        %v5742 = vsel %vm5692, %v5685, 0.0
        %v5743 = vadd.f32 %v5741, %v5742
        %v5744 = vsel %vm5692, %v5686, 0.0
        %v5745 = vadd.f32 %v5743, %v5744
        %v5746 = vsel %vm5692, %v5687, 0.0
        %v5747 = vadd.f32 %v5745, %v5746
        %v5748 = vsel %vm5692, %v5688, 0.0
        %v5749 = vadd.f32 %v5747, %v5748
        %v5750 = vsel %vm5692, %v5689, 0.0
        %v5751 = vadd.f32 %v5749, %v5750
        %v5752 = vsel %vm5692, %v5690, 0.0
        %v5753 = vadd.f32 %v5751, %v5752
        %v5754 = vsel %vm5692, %v5691, 0.0
        %v5755 = vadd.f32 %v5753, %v5754
        %v5756 = vrot.slane %v5755, 4
        %v5757 = vadd.f32 %v5755, %v5756
        %v5758 = vrot.slane %v5757, 2
        %v5759 = vadd.f32 %v5757, %v5758
        %v5760 = vrot.slane %v5759, 1
        %v5761 = vadd.f32 %v5759, %v5760
        %v5762 = vmul.f32 %v5761, 0.00390625
        %vm5763 = vcmask 253952
        %5764 = vst.msk [vmem:[%s307] sm:$0x1] %vm5763, %v5762
        %v5765 = vpack.c.bf16 %v5762, %v5762
        %v5766 = vld [vmem:[%s5] sm:$0xf]
        %v5767 = vld [vmem:[%s5 + $0x4] sm:$0xf]
        %v5768 = vld [vmem:[%s5 + $0x8] sm:$0xf]
        %v5769 = vld [vmem:[%s5 + $0xc] sm:$0xf]
        %v5770 = vld [vmem:[%s6] sm:$0x1]
        %v5775 = vunpack.c.l.b16 %v5766
        %v5776 = vunpack.c.l.b16 %v5767
        %v5777 = vunpack.c.l.b16 %v5768
        %v5778 = vunpack.c.l.b16 %v5769
        %v5779 = vpack.c.b16 %v5776, %v5775
        %v5780 = vpack.c.b16 %v5778, %v5777
        %v5784 = vsel %vm5692, %v5765, 0
        %5786 = vmatprep.subr.bf16.mxu0 0
        %5787 = vmatpush1.bf16.msra.mxu0 %v5779
        %5788 = vmatprep.subr.bf16.mxu0 0
        %5789 = vmatpush1.bf16.msra.mxu0 %v5780
        %5790 = vmatprep.subr.bf16.mxu0 0
        %5791 = vmatpush1.bf16.msra.mxu0 0
        %5792 = vmatprep.subr.bf16.mxu0 0
        %5793 = vmatpush1.bf16.msra.mxu0 0
        %5794 = vmatprep.subr.bf16.mxu0 0
        %5795 = vmatpush1.bf16.msra.mxu0 0
        %5796 = vmatprep.subr.bf16.mxu0 0
        %5797 = vmatpush1.bf16.msra.mxu0 0
        %5798 = vmatprep.subr.bf16.mxu0 0
        %5799 = vmatpush1.bf16.msra.mxu0 0
        %5800 = vmatprep.subr.bf16.mxu0 0
        %5801 = vmatpush1.bf16.msra.mxu0 0
        %5802 = vmatprep.subr.bf16.mxu0 0
        %5803 = vmatpush1.bf16.msra.mxu0 0
        %5804 = vmatprep.subr.bf16.mxu0 0
        %5805 = vmatpush1.bf16.msra.mxu0 0
        %5806 = vmatprep.subr.bf16.mxu0 0
        %5807 = vmatpush1.bf16.msra.mxu0 0
        %5808 = vmatprep.subr.bf16.mxu0 0
        %5809 = vmatpush1.bf16.msra.mxu0 0
        %5810 = vmatprep.subr.bf16.mxu0 0
        %5811 = vmatpush1.bf16.msra.mxu0 0
        %5812 = vmatprep.subr.bf16.mxu0 0
        %5813 = vmatpush1.bf16.msra.mxu0 0
        %5814 = vmatprep.subr.bf16.mxu0 0
        %5815 = vmatpush1.bf16.msra.mxu0 0
        %5816 = vmatprep.subr.bf16.mxu0 0
        %5817 = vmatpush1.bf16.msra.mxu0 0
        %5818 = vmatprep.mubr.bf16.mxu0 0
        %5819 = vmatmul.mubr.bf16.gmra.mrb[0].mxu0 %v5784
        %v5820 = vpop.f32.mrb[0].mxu0
        %v5821 = vadd.f32 %v5770, %v5820
        %v5822 = vpop.f32.mrb[0].mxu0
        %v5823 = vpop.f32.mrb[0].mxu0
        %v5824 = vpop.f32.mrb[0].mxu0
        %5825 = vdwg.mxu0
        %vm5826 = vcmask 32768
        %v5827 = vsel %vm5826, %v5821, -inf
        %5828 = vmax.xlane.f32.xlu0 %v5827
        %v5829 = vpop.xlane.xlu0 %5828
        %v5830 = vsub.f32 %v5821, %v5829
        %v5831 = vmul.f32 %v5830, 1.442695
        %v5832 = vpow.pop %v5831
        %v5833 = vsel %vm5826, %v5832, 0.0
        %5834 = vadd.xlane.f32.xlu0 %v5833
        %v5835 = vpop.xlane.xlu0 %5834
        %v5836 = vrcp.pop %v5835
        %v5837 = vmul.f32 %v5832, %v5836
        %5838 = vst.msk [vmem:[%s301] sm:$0x1] %vm5826, %v5837
        %s5839 = sand.u32 %s186, 1
        %s5840 = scalar_lea.sflag [#allocation5], %s5839
        %s5841 = sand.u32 %s186, 1
        %s5842 = scalar_lea.vmem [#allocation4], %s5841
        %s5843 = sand.u32 %s212, 1
        %s5844 = scalar_lea.sflag [#allocation7], %s5843
        %s5845 = sand.u32 %s212, 1
        %s5846 = scalar_lea.vmem [#allocation6], %s5845
        // Predicated region
        $region49: #{pretrained_nn_forward.1} parent=47 // pred_check
          %p5847 = pneg %p196
        $region50: #{pretrained_nn_forward.1} parent=47 // pred_check_branch
          %5849 = sbr.rel (%p5847) target = $region52
        $region51: #{pretrained_nn_forward.1} parent=47 // pred_region
          %s5851 = ssub.s32 16, 16
          %5852 = vsyncadd %s5840, %s5851
          %s5853 = smul.addr %s26, 16
          %s5854 = scalar_lea.hbm %s7, %s5853
          %s5856 = sshll.u32 %s5842, 4
          %s5857 = int_to_ptr.vmem [resolvable:$true] %s5856
          %5859 = dma.vmem_to_hbm [thread:$0]  %s5857, 16, %s5854, %s5840
        $region52: #{pretrained_nn_forward.1} parent=47 // pred_fallthru
          _
        // Predicated region
        $region53: #{pretrained_nn_forward.1} parent=47 // pred_check
          %p5860 = pneg %p222
        $region54: #{pretrained_nn_forward.1} parent=47 // pred_check_branch
          %5862 = sbr.rel (%p5860) target = $region56
        $region55: #{pretrained_nn_forward.1} parent=47 // pred_region
          %s5864 = ssub.s32 16, 16
          %5865 = vsyncadd %s5844, %s5864
          %s5866 = smul.addr %s26, 16
          %s5867 = scalar_lea.hbm %s8, %s5866
          %s5869 = sshll.u32 %s5846, 4
          %s5870 = int_to_ptr.vmem [resolvable:$true] %s5869
          %5872 = dma.vmem_to_hbm [thread:$0]  %s5870, 16, %s5867, %s5844
        $region56: #{pretrained_nn_forward.1} parent=47 // pred_fallthru
          _
      $region48: #{pretrained_nn_forward.1} parent=5 // pred_fallthru
        _
      %p5873 = scmp.le.s32.totalorder 2, %s21
      // Predicated region
      $region57: #{pretrained_nn_forward.1} parent=5 // pred_check
        %p5874 = pneg %p5873
      $region58: #{pretrained_nn_forward.1} parent=5 // pred_check_branch
        %5876 = sbr.rel (%p5874) target = $region60
      $region59: #{pretrained_nn_forward.1} parent=5 // pred_region
        %s5877 = ssub.s32 %s21, 2
        // Predicated region
        $region61: #{pretrained_nn_forward.1} parent=59 // pred_check
          %p5878 = pneg %p202
        $region62: #{pretrained_nn_forward.1} parent=59 // pred_check_branch
          %5880 = sbr.rel (%p5878) target = $region64
        $region63: #{pretrained_nn_forward.1} parent=59 // pred_region
          %s5881 = sand.u32 %s187, 1
          %s5882 = scalar_lea.sflag [#allocation5], %s5881
          %s5883 = sand.u32 %s187, 1
          %s5884 = scalar_lea.vmem [#allocation4], %s5883
          %5885 = dma.done %s5882, 16
        $region64: #{pretrained_nn_forward.1} parent=59 // pred_fallthru
          _
        // Predicated region
        $region65: #{pretrained_nn_forward.1} parent=59 // pred_check
          %p5886 = pneg %p228
        $region66: #{pretrained_nn_forward.1} parent=59 // pred_check_branch
          %5888 = sbr.rel (%p5886) target = $region68
        $region67: #{pretrained_nn_forward.1} parent=59 // pred_region
          %s5889 = sand.u32 %s213, 1
          %s5890 = scalar_lea.sflag [#allocation7], %s5889
          %s5891 = sand.u32 %s213, 1
          %s5892 = scalar_lea.vmem [#allocation6], %s5891
          %5893 = dma.done %s5890, 16
        $region68: #{pretrained_nn_forward.1} parent=59 // pred_fallthru
          _
      $region60: #{pretrained_nn_forward.1} parent=5 // pred_fallthru
        _
    $region6: #{pretrained_nn_forward.1} parent=1 // loop_footer
      %s25 = sadd.s32 1, %s21
    $region7: #{pretrained_nn_forward.1} parent=1 // loop_footer_branch
      %20 = sbr.rel target = $region3
    $region8: #{pretrained_nn_forward.1} parent=1 // loop_exit
      _
    %5894 = vsyncpa [#allocation5], 1
    %s5895 = scalar_lea.sflag [#allocation5], 1
    %5896 = vsyncpa %s5895, 1
    %5897 = vsyncpa [#allocation7], 1
    %s5898 = scalar_lea.sflag [#allocation7], 1
    %5899 = vsyncpa %s5898, 1

</llo_original>
